<compile_context>
chip_gen: v7x
topology: tpu7x:2x2x1
jax: 0.10.0
libtpu: 0.0.40
codegen_flags: <defaults>
</compile_context>

<pallas_src>
from functools import partial
from math import floor

import numpy as np
import jax
import jax.numpy as jnp
from jax import lax
from jax.experimental import pallas as pl
from jax.experimental.pallas import tpu as pltpu

KH = 5          # conv kernel size
CSTRIDE = 2     # conv stride
CPAD = 2        # conv zero padding
PK = 3          # max-pool window
PSTRIDE = 2     # max-pool stride
LANE = 128
MXU_DTYPE = jnp.bfloat16   # MXU operand dtype (f32 accumulation); exact for 0/1 gathers


def _rup(n, m):
    return ((n + m - 1) // m) * m


# ----------------------------- size helpers (mirror the PyTorch ones) -----------------------------

def calc_conv_layer_size(W, H, C, kernel_num, kernel_size, stride, padding):
    return (floor((W - kernel_size + 2 * padding) / stride + 1),
            floor((H - kernel_size + 2 * padding) / stride + 1),
            kernel_num)


def calc_max_pool_size(W, H, C, pool_size, stride):
    return (floor((W - pool_size) / stride + 1),
            floor((H - pool_size) / stride + 1),
            C)


def network_dims(img_dim, batch):
    """All intermediate sizes of the MixedNetwork conv stack + explicit lane/sublane pads.
    img_dim is (C, dim2, dim3) of the NCHW observation; named (H, W) here -- the spec's
    square 25x25 image makes the width/height naming ambiguity moot."""
    C, H, W = img_dim
    w1, h1, c1 = calc_conv_layer_size(W, H, C, 16, KH, CSTRIDE, CPAD)
    pw1, ph1, _ = calc_max_pool_size(w1, h1, c1, PK, PSTRIDE)
    w2, h2, c2 = calc_conv_layer_size(pw1, ph1, c1, 64, KH, CSTRIDE, CPAD)
    pw2, ph2, _ = calc_max_pool_size(w2, h2, c2, PK, PSTRIDE)
    d = dict(B=batch, C=C, H=H, W=W,
             C1=c1, OH1=h1, OW1=w1, PH1=ph1, PW1=pw1,
             C2=c2, OH2=h2, OW2=w2, PH2=ph2, PW2=pw2,
             FC_IN=ph2 * pw2 * c2)
    # lane (last-dim) pads: every matmul K/N becomes a 128 multiple (256 where it matters)
    d['WCp'] = _rup(W * C, LANE)
    d['N1p'] = _rup(w1 * c1, LANE)
    d['P1Cp'] = _rup(pw1 * c1, LANE)
    d['N2p'] = _rup(w2 * c2, LANE)
    d['P2Cp'] = _rup(pw2 * c2, LANE)
    # sublane (row) pads
    d['R1p'] = _rup(batch * h1, 8)
    d['RP1p'] = _rup(batch * ph1, 8)
    d['R2p'] = _rup(batch * h2, 8)
    d['RP2p'] = _rup(batch * ph2, 8)
    d['Bp'] = _rup(batch, 8)
    d['BIASW'] = max(d['N1p'], d['N2p'], 256)
    return d


# ----------------------------- static 0/1 gather constants (numpy, built once) -----------------------------

def _pool_col_select(n_in, n_out, C, in_pad, out_pad):
    """(in_pad, PK*out_pad): window offset j maps input col (w=2*pw+j, c) -> output col (pw, c)."""
    M = np.zeros((in_pad, PK * out_pad), np.float32)
    for j in range(PK):
        for pw in range(n_out):
            w = PSTRIDE * pw + j
            if w < n_in:
                for c in range(C):
                    M[w * C + c, j * out_pad + pw * C + c] = 1.0
    return M


def _pool_row_select(B, n_in, n_out, in_rows_pad, out_rows_pad):
    """(PK*out_rows_pad, in_rows_pad): window offset i, row (b, p) gathers input row (b, 2*p+i)."""
    M = np.zeros((PK * out_rows_pad, in_rows_pad), np.float32)
    for i in range(PK):
        for b in range(B):
            for p in range(n_out):
                r = PSTRIDE * p + i
                if r < n_in:
                    M[i * out_rows_pad + b * n_out + p, b * n_in + r] = 1.0
    return M


def _conv_row_select(B, n_in, n_out, in_rows_pad, out_rows_pad):
    """(KH, out_rows_pad, in_rows_pad): offset kh, row (b, oh) gathers input row
    (b, 2*oh + kh - 2); all-zero row when out of range (== zero padding)."""
    S = np.zeros((KH, out_rows_pad, in_rows_pad), np.float32)
    for kh in range(KH):
        for b in range(B):
            for oh in range(n_out):
                h = CSTRIDE * oh + kh - CPAD
                if 0 <= h < n_in:
                    S[kh, b * n_out + oh, b * n_in + h] = 1.0
    return S


def _conv_placement(n_in, n_out):
    """(n_in, n_out, KH): P[w, ow, kw] = 1 iff w == 2*ow + kw - 2 (in range)."""
    P = np.zeros((n_in, n_out, KH), np.float32)
    for ow in range(n_out):
        for kw in range(KH):
            w = CSTRIDE * ow + kw - CPAD
            if 0 <= w < n_in:
                P[w, ow, kw] = 1.0
    return P


# ----------------------------- weight-dependent prep (one-time, hoisted out of forward) -----------------------------

def _banded_conv_weights(w_flat, placement, c_in, c_out, in_pad, out_pad):
    """Stacked-K banded weight matrix (KH*in_pad, out_pad); block kh holds
    T[(w, c), (ow, co)] = W[co, c, kh, kw] with kw = w - 2*ow + 2 (zeros elsewhere / in pads)."""
    w4 = w_flat.reshape(c_in, KH, KH, c_out)                 # (c, kh, kw, co)  PyTorch OIHW order
    t = jnp.einsum('wok,chkn->hwcon', placement, w4)         # (kh, w_in, c, w_out, co)
    k, w_in, _, w_out, _ = t.shape
    t = t.reshape(k, w_in * c_in, w_out * c_out)
    tp = jnp.zeros((k, in_pad, out_pad), jnp.float32)
    tp = tp.at[:, :w_in * c_in, :w_out * c_out].set(t)
    return tp.reshape(k * in_pad, out_pad)


def prepare_params(params, img_dim, sensor_dim, batch):
    """One-time packing of weights + gather constants into 13 lane-padded, mostly-bf16
    kernel operands.  Runs once per weight update, not per forward step."""
    d = network_dims(img_dim, batch)
    assert d['PH2'] == 1, "TODO(synk): PH2>1 head row-gather not implemented (25x25 spec -> PH2==1)"
    assert d['PW2'] * d['C2'] <= LANE and sensor_dim <= LANE
    f32 = jnp.float32

    # conv weights -> stacked-K banded matrices (one MXU matmul per conv layer)
    t1 = _banded_conv_weights(params['w_conv1'], jnp.asarray(_conv_placement(d['W'], d['OW1'])),
                              d['C'], d['C1'], d['WCp'], d['N1p'])
    t2 = _banded_conv_weights(params['w_conv2'], jnp.asarray(_conv_placement(d['PW1'], d['OW2'])),
                              d['C1'], d['C2'], d['P1Cp'], d['N2p'])

    # pooling / conv row-gather constants (0/1 -> exact in bf16)
    pc1 = _pool_col_select(d['OW1'], d['PW1'], d['C1'], d['N1p'], d['P1Cp'])
    pr1 = _pool_row_select(batch, d['OH1'], d['PH1'], d['R1p'], d['RP1p'])
    s2 = _conv_row_select(batch, d['PH1'], d['OH2'], d['RP1p'], d['R2p'])
    pc2 = _pool_col_select(d['OW2'], d['PW2'], d['C2'], d['N2p'], d['P2Cp'])
    pr2 = _pool_row_select(batch, d['OH2'], d['PH2'], d['R2p'], d['RP2p'])

    # small FC weights packed into one lane-dense slab: [img-FC ; sensor-FC ; value head].
    # image-FC rows reordered so PyTorch's channel-major Flatten maps onto (pw, c) columns.
    wis = np.zeros((d['PW2'] * d['C2'],), np.int32)
    for pw in range(d['PW2']):
        for c in range(d['C2']):
            wis[pw * d['C2'] + c] = c * (d['PH2'] * d['PW2']) + pw
    fcs = jnp.zeros((3 * LANE, 128), f32)
    fcs = fcs.at[0:d['PW2'] * d['C2'], :].set(params['w_img'][wis])
    fcs = fcs.at[LANE:LANE + sensor_dim, :].set(params['w_num'])
    fcs = fcs.at[2 * LANE:3 * LANE, 0:1].set(params['w3'])

    # all biases packed into one (8, BIASW) f32 slab (one DMA instead of seven padded tiles)
    bias = jnp.zeros((8, d['BIASW']), f32)
    bias = bias.at[0, :d['OW1'] * d['C1']].set(jnp.tile(params['b_conv1'][0], d['OW1']))
    bias = bias.at[1, :d['OW2'] * d['C2']].set(jnp.tile(params['b_conv2'][0], d['OW2']))
    bias = bias.at[2, :128].set(params['b_img'][0])
    bias = bias.at[3, :128].set(params['b_num'][0])
    bias = bias.at[4, :256].set(params['b1'][0])
    bias = bias.at[5, :128].set(params['b2'][0])
    bias = bias.at[6, 0].set(params['b3'][0, 0])

    cast = lambda x: jnp.asarray(x, MXU_DTYPE)
    return dict(t1=cast(t1), pc1=cast(pc1), pr1=cast(pr1), s2=cast(s2),
                t2=cast(t2), pc2=cast(pc2), pr2=cast(pr2),
                fcs=cast(fcs), w1=cast(params['w1']), w2=cast(params['w2']),
                bias=bias)


# ----------------------------- the fused Pallas kernel -----------------------------

def _make_kernel(d):
    N1p, N2p = d['N1p'], d['N2p']
    P1Cp, P2Cp = d['P1Cp'], d['P2Cp']
    RP1p, RP2p = d['RP1p'], d['RP2p']

    def kernel(a1_ref, sens_ref,
               t1_ref, pc1_ref, pr1_ref,
               s2_ref, t2_ref, pc2_ref, pr2_ref,
               fcs_ref, w1_ref, w2_ref, bias_ref,
               o_ref):
        dot = lambda a, b: jnp.dot(a, b, preferred_element_type=jnp.float32)
        bf = lambda x: x.astype(MXU_DTYPE)

        def max3(x, n, axis):
            """Tree max over the 3 pooling-window slices (VPU; slices are 8/128 aligned)."""
            if axis == 1:
                a, b, c = x[:, 0:n], x[:, n:2 * n], x[:, 2 * n:3 * n]
            else:
                a, b, c = x[0:n], x[n:2 * n], x[2 * n:3 * n]
            return jnp.maximum(jnp.maximum(a, b), c)

        # conv1 + ReLU: kernel-height gathers were folded into a1 (in the wrapper); the
        # kernel-width / channel contraction is ONE stacked-K banded matmul.
        h1 = bf(jnp.maximum(dot(a1_ref[...], t1_ref[...]) + bias_ref[0:1, 0:N1p], 0.0))

        # maxpool1: one column-window matmul + lane-slice max, one stacked row-window
        # gather matmul + sublane-slice max.
        cm1 = bf(max3(dot(h1, pc1_ref[...]), P1Cp, axis=1))
        p1 = bf(max3(dot(pr1_ref[...], cm1), RP1p, axis=0))

        # conv2 + ReLU: 5 independent tiny row gathers -> 128-aligned lane concat ->
        # one stacked-K matmul (no serialized accumulate chain).
        a2 = bf(jnp.concatenate([dot(s2_ref[kh], p1) for kh in range(KH)], axis=1))
        h2 = bf(jnp.maximum(dot(a2, t2_ref[...]) + bias_ref[1:2, 0:N2p], 0.0))

        # maxpool2
        cm2 = bf(max3(dot(h2, pc2_ref[...]), P2Cp, axis=1))
        p2 = bf(max3(dot(pr2_ref[...], cm2), RP2p, axis=0))

        # image-branch FC (PH2 == 1: the flatten row-select is the identity)
        xi = bf(jnp.maximum(dot(p2, fcs_ref[0:LANE, :]) + bias_ref[2:3, 0:128], 0.0))
        # sensor-branch FC
        y = bf(jnp.maximum(dot(sens_ref[...], fcs_ref[LANE:2 * LANE, :]) + bias_ref[3:4, 0:128], 0.0))

        # combined MLP (concat removed: w1 sliced into image / sensor halves in-kernel)
        z = bf(jnp.maximum(dot(xi, w1_ref[0:128, :]) + dot(y, w1_ref[128:256, :])
                           + bias_ref[4:5, 0:256], 0.0))
        z = bf(jnp.maximum(dot(z, w2_ref[...]) + bias_ref[5:6, 0:128], 0.0))
        # value head; output kept 128-lane dense (unmasked stores), value lives in column 0
        o_ref[...] = dot(z, fcs_ref[2 * LANE:3 * LANE, :]) + bias_ref[6:7, 0:128]

    return kernel


# ----------------------------- forward (CNNCritic.forward) -----------------------------

@partial(jax.jit, static_argnums=(2, 3))
def cnn_critic_forward(prep, obs, img_dim, sensor_dim):
    C, H, W = img_dim
    B = obs.shape[0]
    d = network_dims(img_dim, B)
    assert prep['pr1'].shape == (PK * d['RP1p'], d['R1p']), \
        "prepare_params() was built for a different batch size"

    # split_obs: image channels + flattened/truncated sensor channel (tiny XLA glue)
    sensors = obs[:, C].reshape(B, H * W)[:, :sensor_dim]
    sens = jnp.zeros((d['Bp'], LANE), jnp.float32).at[:B, :sensor_dim].set(sensors)

    # conv1 kernel-height row gathers + zero padding folded into the input layout
    # (pure XLA data movement on a few-KB tensor, off the kernel's MXU critical path)
    img = obs[:, :C].transpose(0, 2, 3, 1)                        # (B, H, W, C) channels-last
    imgp = jnp.pad(img, ((0, 0), (CPAD, CPAD), (0, 0), (0, 0)))
    chunks = []
    for kh in range(KH):
        rows = imgp[:, kh:kh + CSTRIDE * d['OH1']:CSTRIDE]         # (B, OH1, W, C)
        rows = rows.reshape(B * d['OH1'], W * C)
        chunks.append(jnp.pad(rows, ((0, d['R1p'] - B * d['OH1']),
                                     (0, d['WCp'] - W * C))))
    a1 = jnp.concatenate(chunks, axis=1)                           # (R1p, KH*WCp)

    vmem = pl.BlockSpec(memory_space=pltpu.MemorySpace.VMEM)
    out = pl.pallas_call(
        _make_kernel(d),
        out_shape=jax.ShapeDtypeStruct((d['Bp'], LANE), jnp.float32),
        in_specs=[vmem] * 13,
        out_specs=vmem,
    )(a1.astype(MXU_DTYPE), sens.astype(MXU_DTYPE),
      prep['t1'], prep['pc1'], prep['pr1'],
      prep['s2'], prep['t2'], prep['pc2'], prep['pr2'],
      prep['fcs'], prep['w1'], prep['w2'], prep['bias'])

    # CNNCritic: torch.squeeze(v_net(obs), -1)
    return out[:B, 0]


# ----------------------------- parameters -----------------------------

def init_params(key, img_dim, sensor_dim):
    C = img_dim[0]
    fc_in = network_dims(img_dim, 1)['FC_IN']
    keys = jax.random.split(key, 14)

    def u(k, shape, fan_in):
        bound = 1.0 / jnp.sqrt(jnp.float32(fan_in))
        return jax.random.uniform(k, shape, jnp.float32, -bound, bound)

    return {
        # conv weights stored pre-flattened: (Cin*kh*kw, Cout), rows in (c, kh, kw) order
        'w_conv1': u(keys[0], (C * 5 * 5, 16), C * 5 * 5),
        'b_conv1': u(keys[1], (1, 16), C * 5 * 5),
        'w_conv2': u(keys[2], (16 * 5 * 5, 64), 16 * 5 * 5),
        'b_conv2': u(keys[3], (1, 64), 16 * 5 * 5),
        # linear weights stored as (in, out)
        'w_img': u(keys[4], (fc_in, 128), fc_in),
        'b_img': u(keys[5], (1, 128), fc_in),
        'w_num': u(keys[6], (sensor_dim, 128), sensor_dim),
        'b_num': u(keys[7], (1, 128), sensor_dim),
        'w1': u(keys[8], (256, 256), 256),
        'b1': u(keys[9], (1, 256), 256),
        'w2': u(keys[10], (256, 128), 256),
        'b2': u(keys[11], (1, 128), 256),
        'w3': u(keys[12], (128, 1), 128),
        'b3': u(keys[13], (1, 1), 128),
    }


# ----------------------------- pure-JAX (f32) reference for validation -----------------------------

def ref_forward(params, obs, img_dim, sensor_dim):
    C, H, W = img_dim
    B = obs.shape[0]
    img = obs[:, :C]
    sensors = obs[:, C].reshape(B, -1)[:, :sensor_dim]

    wc1 = params['w_conv1'].T.reshape(16, C, 5, 5)
    x = lax.conv_general_dilated(img, wc1, (2, 2), [(2, 2), (2, 2)],
                                 dimension_numbers=('NCHW', 'OIHW', 'NCHW'))
    x = jnp.maximum(x + params['b_conv1'].reshape(1, 16, 1, 1), 0.0)
    x = lax.reduce_window(x, -jnp.inf, lax.max, (1, 1, 3, 3), (1, 1, 2, 2), 'VALID')

    wc2 = params['w_conv2'].T.reshape(64, 16, 5, 5)
    x = lax.conv_general_dilated(x, wc2, (2, 2), [(2, 2), (2, 2)],
                                 dimension_numbers=('NCHW', 'OIHW', 'NCHW'))
    x = jnp.maximum(x + params['b_conv2'].reshape(1, 64, 1, 1), 0.0)
    x = lax.reduce_window(x, -jnp.inf, lax.max, (1, 1, 3, 3), (1, 1, 2, 2), 'VALID')

    x = x.reshape(B, -1)
    x = jnp.maximum(x @ params['w_img'] + params['b_img'], 0.0)
    y = jnp.maximum(sensors @ params['w_num'] + params['b_num'], 0.0)
    z = jnp.concatenate([x, y], axis=1)
    z = jnp.maximum(z @ params['w1'] + params['b1'], 0.0)
    z = jnp.maximum(z @ params['w2'] + params['b2'], 0.0)
    z = z @ params['w3'] + params['b3']
    return z[:, 0]


# ----------------------------- main -----------------------------

if __name__ == "__main__":
    B = 2
    img_dim = (3, 25, 25)       # (channel, width, height) as in MixedNetwork
    sensor_dim = 32

    key = jax.random.PRNGKey(0)
    k_obs, k_param = jax.random.split(key)

    # obs: image channels + one channel carrying the (padded) sensor vector
    obs = jax.random.normal(k_obs, (B, img_dim[0] + 1, img_dim[1], img_dim[2]),
                            dtype=jnp.float32)
    params = init_params(k_param, img_dim, sensor_dim)

    # one-time weight packing (hoisted out of the per-step forward)
    prep = prepare_params(params, img_dim, sensor_dim, B)

    out = jax.block_until_ready(cnn_critic_forward(prep, obs, img_dim, sensor_dim))

    ref = jax.block_until_ready(ref_forward(params, obs, img_dim, sensor_dim))
    assert out.shape == (B,)
    # bf16 MXU operands (f32 accumulation) => slightly looser tolerance than pure f32
    assert jnp.allclose(out, ref, rtol=2e-2, atol=2e-2), (out, ref)

    print("KERNEL_OK")
</pallas_src>

<mosaic_0001>
module attributes {stable_mosaic.version = 11 : i64} {
  func.func @kernel(%arg0: memref<32x640xbf16, #tpu.memory_space<vmem>>, %arg1: memref<8x128xbf16, #tpu.memory_space<vmem>>, %arg2: memref<640x256xbf16, #tpu.memory_space<vmem>>, %arg3: memref<256x384xbf16, #tpu.memory_space<vmem>>, %arg4: memref<48x32xbf16, #tpu.memory_space<vmem>>, %arg5: memref<5x8x16xbf16, #tpu.memory_space<vmem>>, %arg6: memref<640x256xbf16, #tpu.memory_space<vmem>>, %arg7: memref<256x384xbf16, #tpu.memory_space<vmem>>, %arg8: memref<24x8xbf16, #tpu.memory_space<vmem>>, %arg9: memref<384x128xbf16, #tpu.memory_space<vmem>>, %arg10: memref<256x256xbf16, #tpu.memory_space<vmem>>, %arg11: memref<256x128xbf16, #tpu.memory_space<vmem>>, %arg12: memref<8x256xf32, #tpu.memory_space<vmem>>, %arg13: memref<8x128xf32, #tpu.memory_space<vmem>>) attributes {dimension_semantics = [], scalar_prefetch = 0 : i64, scratch_operands = 0 : i64, tpu.core_type = #tpu.core_type<tc>} {
    %c0 = arith.constant 0 : index
    %c0_0 = arith.constant 0 : index
    %0 = vector.load %arg0[%c0, %c0_0] : memref<32x640xbf16, #tpu.memory_space<vmem>>, vector<32x640xbf16>
    %c0_1 = arith.constant 0 : index
    %c0_2 = arith.constant 0 : index
    %1 = vector.load %arg2[%c0_1, %c0_2] : memref<640x256xbf16, #tpu.memory_space<vmem>>, vector<640x256xbf16>
    %cst = arith.constant dense<0.000000e+00> : vector<32x256xf32>
    %2 = tpu.matmul %0, %1, %cst {dimension_numbers = #tpu.dot_dimension_numbers<[1], [0], [0], [1], [0, 0, 1, 1], [], []>} : vector<32x640xbf16>, vector<640x256xbf16>, vector<32x256xf32> -> vector<32x256xf32>
    %c0_3 = arith.constant 0 : index
    %c0_4 = arith.constant 0 : index
    %3 = vector.load %arg12[%c0_3, %c0_4] : memref<8x256xf32, #tpu.memory_space<vmem>>, vector<1x256xf32>
    %4 = vector.broadcast %3 : vector<1x256xf32> to vector<32x256xf32>
    %5 = arith.addf %2, %4 : vector<32x256xf32>
    %cst_5 = arith.constant 0.000000e+00 : f32
    %6 = vector.broadcast %cst_5 : f32 to vector<32x256xf32>
    %7 = arith.maximumf %5, %6 : vector<32x256xf32>
    %8 = arith.truncf %7 : vector<32x256xf32> to vector<32x256xbf16>
    %c0_6 = arith.constant 0 : index
    %c0_7 = arith.constant 0 : index
    %9 = vector.load %arg3[%c0_6, %c0_7] : memref<256x384xbf16, #tpu.memory_space<vmem>>, vector<256x384xbf16>
    %cst_8 = arith.constant dense<0.000000e+00> : vector<32x384xf32>
    %10 = tpu.matmul %8, %9, %cst_8 {dimension_numbers = #tpu.dot_dimension_numbers<[1], [0], [0], [1], [0, 0, 1, 1], [], []>} : vector<32x256xbf16>, vector<256x384xbf16>, vector<32x384xf32> -> vector<32x384xf32>
    %11 = vector.extract_strided_slice %10 {offsets = [0, 0], sizes = [32, 128], strides = [1, 1]} : vector<32x384xf32> to vector<32x128xf32>
    %12 = vector.extract_strided_slice %10 {offsets = [0, 128], sizes = [32, 128], strides = [1, 1]} : vector<32x384xf32> to vector<32x128xf32>
    %13 = vector.extract_strided_slice %10 {offsets = [0, 256], sizes = [32, 128], strides = [1, 1]} : vector<32x384xf32> to vector<32x128xf32>
    %14 = arith.maximumf %11, %12 : vector<32x128xf32>
    %15 = arith.maximumf %14, %13 : vector<32x128xf32>
    %16 = arith.truncf %15 : vector<32x128xf32> to vector<32x128xbf16>
    %c0_9 = arith.constant 0 : index
    %c0_10 = arith.constant 0 : index
    %17 = vector.load %arg4[%c0_9, %c0_10] : memref<48x32xbf16, #tpu.memory_space<vmem>>, vector<48x32xbf16>
    %cst_11 = arith.constant dense<0.000000e+00> : vector<48x128xf32>
    %18 = tpu.matmul %17, %16, %cst_11 {dimension_numbers = #tpu.dot_dimension_numbers<[1], [0], [0], [1], [0, 0, 1, 1], [], []>} : vector<48x32xbf16>, vector<32x128xbf16>, vector<48x128xf32> -> vector<48x128xf32>
    %19 = vector.extract_strided_slice %18 {offsets = [0, 0], sizes = [16, 128], strides = [1, 1]} : vector<48x128xf32> to vector<16x128xf32>
    %20 = vector.extract_strided_slice %18 {offsets = [16, 0], sizes = [16, 128], strides = [1, 1]} : vector<48x128xf32> to vector<16x128xf32>
    %21 = vector.extract_strided_slice %18 {offsets = [32, 0], sizes = [16, 128], strides = [1, 1]} : vector<48x128xf32> to vector<16x128xf32>
    %22 = arith.maximumf %19, %20 : vector<16x128xf32>
    %23 = arith.maximumf %22, %21 : vector<16x128xf32>
    %24 = arith.truncf %23 : vector<16x128xf32> to vector<16x128xbf16>
    %c0_12 = arith.constant 0 : index
    %c0_13 = arith.constant 0 : index
    %c0_14 = arith.constant 0 : index
    %25 = vector.load %arg5[%c0_12, %c0_13, %c0_14] : memref<5x8x16xbf16, #tpu.memory_space<vmem>>, vector<1x8x16xbf16>
    %26 = vector.shape_cast %25 : vector<1x8x16xbf16> to vector<8x16xbf16>
    %cst_15 = arith.constant dense<0.000000e+00> : vector<8x128xf32>
    %27 = tpu.matmul %26, %24, %cst_15 {dimension_numbers = #tpu.dot_dimension_numbers<[1], [0], [0], [1], [0, 0, 1, 1], [], []>} : vector<8x16xbf16>, vector<16x128xbf16>, vector<8x128xf32> -> vector<8x128xf32>
    %c1 = arith.constant 1 : index
    %c0_16 = arith.constant 0 : index
    %c0_17 = arith.constant 0 : index
    %28 = vector.load %arg5[%c1, %c0_16, %c0_17] : memref<5x8x16xbf16, #tpu.memory_space<vmem>>, vector<1x8x16xbf16>
    %29 = vector.shape_cast %28 : vector<1x8x16xbf16> to vector<8x16xbf16>
    %cst_18 = arith.constant dense<0.000000e+00> : vector<8x128xf32>
    %30 = tpu.matmul %29, %24, %cst_18 {dimension_numbers = #tpu.dot_dimension_numbers<[1], [0], [0], [1], [0, 0, 1, 1], [], []>} : vector<8x16xbf16>, vector<16x128xbf16>, vector<8x128xf32> -> vector<8x128xf32>
    %c2 = arith.constant 2 : index
    %c0_19 = arith.constant 0 : index
    %c0_20 = arith.constant 0 : index
    %31 = vector.load %arg5[%c2, %c0_19, %c0_20] : memref<5x8x16xbf16, #tpu.memory_space<vmem>>, vector<1x8x16xbf16>
    %32 = vector.shape_cast %31 : vector<1x8x16xbf16> to vector<8x16xbf16>
    %cst_21 = arith.constant dense<0.000000e+00> : vector<8x128xf32>
    %33 = tpu.matmul %32, %24, %cst_21 {dimension_numbers = #tpu.dot_dimension_numbers<[1], [0], [0], [1], [0, 0, 1, 1], [], []>} : vector<8x16xbf16>, vector<16x128xbf16>, vector<8x128xf32> -> vector<8x128xf32>
    %c3 = arith.constant 3 : index
    %c0_22 = arith.constant 0 : index
    %c0_23 = arith.constant 0 : index
    %34 = vector.load %arg5[%c3, %c0_22, %c0_23] : memref<5x8x16xbf16, #tpu.memory_space<vmem>>, vector<1x8x16xbf16>
    %35 = vector.shape_cast %34 : vector<1x8x16xbf16> to vector<8x16xbf16>
    %cst_24 = arith.constant dense<0.000000e+00> : vector<8x128xf32>
    %36 = tpu.matmul %35, %24, %cst_24 {dimension_numbers = #tpu.dot_dimension_numbers<[1], [0], [0], [1], [0, 0, 1, 1], [], []>} : vector<8x16xbf16>, vector<16x128xbf16>, vector<8x128xf32> -> vector<8x128xf32>
    %c4 = arith.constant 4 : index
    %c0_25 = arith.constant 0 : index
    %c0_26 = arith.constant 0 : index
    %37 = vector.load %arg5[%c4, %c0_25, %c0_26] : memref<5x8x16xbf16, #tpu.memory_space<vmem>>, vector<1x8x16xbf16>
    %38 = vector.shape_cast %37 : vector<1x8x16xbf16> to vector<8x16xbf16>
    %cst_27 = arith.constant dense<0.000000e+00> : vector<8x128xf32>
    %39 = tpu.matmul %38, %24, %cst_27 {dimension_numbers = #tpu.dot_dimension_numbers<[1], [0], [0], [1], [0, 0, 1, 1], [], []>} : vector<8x16xbf16>, vector<16x128xbf16>, vector<8x128xf32> -> vector<8x128xf32>
    %40 = tpu.concatenate %27, %30, %33, %36, %39 in 1 : vector<8x128xf32>, vector<8x128xf32>, vector<8x128xf32>, vector<8x128xf32>, vector<8x128xf32> -> vector<8x640xf32>
    %41 = arith.truncf %40 : vector<8x640xf32> to vector<8x640xbf16>
    %c0_28 = arith.constant 0 : index
    %c0_29 = arith.constant 0 : index
    %42 = vector.load %arg6[%c0_28, %c0_29] : memref<640x256xbf16, #tpu.memory_space<vmem>>, vector<640x256xbf16>
    %cst_30 = arith.constant dense<0.000000e+00> : vector<8x256xf32>
    %43 = tpu.matmul %41, %42, %cst_30 {dimension_numbers = #tpu.dot_dimension_numbers<[1], [0], [0], [1], [0, 0, 1, 1], [], []>} : vector<8x640xbf16>, vector<640x256xbf16>, vector<8x256xf32> -> vector<8x256xf32>
    %c1_31 = arith.constant 1 : index
    %c0_32 = arith.constant 0 : index
    %44 = vector.load %arg12[%c1_31, %c0_32] : memref<8x256xf32, #tpu.memory_space<vmem>>, vector<1x256xf32>
    %45 = vector.broadcast %44 : vector<1x256xf32> to vector<8x256xf32>
    %46 = arith.addf %43, %45 : vector<8x256xf32>
    %cst_33 = arith.constant 0.000000e+00 : f32
    %47 = vector.broadcast %cst_33 : f32 to vector<8x256xf32>
    %48 = arith.maximumf %46, %47 : vector<8x256xf32>
    %49 = arith.truncf %48 : vector<8x256xf32> to vector<8x256xbf16>
    %c0_34 = arith.constant 0 : index
    %c0_35 = arith.constant 0 : index
    %50 = vector.load %arg7[%c0_34, %c0_35] : memref<256x384xbf16, #tpu.memory_space<vmem>>, vector<256x384xbf16>
    %cst_36 = arith.constant dense<0.000000e+00> : vector<8x384xf32>
    %51 = tpu.matmul %49, %50, %cst_36 {dimension_numbers = #tpu.dot_dimension_numbers<[1], [0], [0], [1], [0, 0, 1, 1], [], []>} : vector<8x256xbf16>, vector<256x384xbf16>, vector<8x384xf32> -> vector<8x384xf32>
    %52 = vector.extract_strided_slice %51 {offsets = [0, 0], sizes = [8, 128], strides = [1, 1]} : vector<8x384xf32> to vector<8x128xf32>
    %53 = vector.extract_strided_slice %51 {offsets = [0, 128], sizes = [8, 128], strides = [1, 1]} : vector<8x384xf32> to vector<8x128xf32>
    %54 = vector.extract_strided_slice %51 {offsets = [0, 256], sizes = [8, 128], strides = [1, 1]} : vector<8x384xf32> to vector<8x128xf32>
    %55 = arith.maximumf %52, %53 : vector<8x128xf32>
    %56 = arith.maximumf %55, %54 : vector<8x128xf32>
    %57 = arith.truncf %56 : vector<8x128xf32> to vector<8x128xbf16>
    %c0_37 = arith.constant 0 : index
    %c0_38 = arith.constant 0 : index
    %58 = vector.load %arg8[%c0_37, %c0_38] : memref<24x8xbf16, #tpu.memory_space<vmem>>, vector<24x8xbf16>
    %cst_39 = arith.constant dense<0.000000e+00> : vector<24x128xf32>
    %59 = tpu.matmul %58, %57, %cst_39 {dimension_numbers = #tpu.dot_dimension_numbers<[1], [0], [0], [1], [0, 0, 1, 1], [], []>} : vector<24x8xbf16>, vector<8x128xbf16>, vector<24x128xf32> -> vector<24x128xf32>
    %60 = vector.extract_strided_slice %59 {offsets = [0, 0], sizes = [8, 128], strides = [1, 1]} : vector<24x128xf32> to vector<8x128xf32>
    %61 = vector.extract_strided_slice %59 {offsets = [8, 0], sizes = [8, 128], strides = [1, 1]} : vector<24x128xf32> to vector<8x128xf32>
    %62 = vector.extract_strided_slice %59 {offsets = [16, 0], sizes = [8, 128], strides = [1, 1]} : vector<24x128xf32> to vector<8x128xf32>
    %63 = arith.maximumf %60, %61 : vector<8x128xf32>
    %64 = arith.maximumf %63, %62 : vector<8x128xf32>
    %65 = arith.truncf %64 : vector<8x128xf32> to vector<8x128xbf16>
    %c0_40 = arith.constant 0 : index
    %c0_41 = arith.constant 0 : index
    %66 = vector.load %arg9[%c0_40, %c0_41] : memref<384x128xbf16, #tpu.memory_space<vmem>>, vector<128x128xbf16>
    %cst_42 = arith.constant dense<0.000000e+00> : vector<8x128xf32>
    %67 = tpu.matmul %65, %66, %cst_42 {dimension_numbers = #tpu.dot_dimension_numbers<[1], [0], [0], [1], [0, 0, 1, 1], [], []>} : vector<8x128xbf16>, vector<128x128xbf16>, vector<8x128xf32> -> vector<8x128xf32>
    %c2_43 = arith.constant 2 : index
    %c0_44 = arith.constant 0 : index
    %68 = vector.load %arg12[%c2_43, %c0_44] : memref<8x256xf32, #tpu.memory_space<vmem>>, vector<1x128xf32>
    %69 = vector.broadcast %68 : vector<1x128xf32> to vector<8x128xf32>
    %70 = arith.addf %67, %69 : vector<8x128xf32>
    %cst_45 = arith.constant 0.000000e+00 : f32
    %71 = vector.broadcast %cst_45 : f32 to vector<8x128xf32>
    %72 = arith.maximumf %70, %71 : vector<8x128xf32>
    %73 = arith.truncf %72 : vector<8x128xf32> to vector<8x128xbf16>
    %c0_46 = arith.constant 0 : index
    %c0_47 = arith.constant 0 : index
    %74 = vector.load %arg1[%c0_46, %c0_47] : memref<8x128xbf16, #tpu.memory_space<vmem>>, vector<8x128xbf16>
    %c128 = arith.constant 128 : index
    %c0_48 = arith.constant 0 : index
    %75 = vector.load %arg9[%c128, %c0_48] : memref<384x128xbf16, #tpu.memory_space<vmem>>, vector<128x128xbf16>
    %cst_49 = arith.constant dense<0.000000e+00> : vector<8x128xf32>
    %76 = tpu.matmul %74, %75, %cst_49 {dimension_numbers = #tpu.dot_dimension_numbers<[1], [0], [0], [1], [0, 0, 1, 1], [], []>} : vector<8x128xbf16>, vector<128x128xbf16>, vector<8x128xf32> -> vector<8x128xf32>
    %c3_50 = arith.constant 3 : index
    %c0_51 = arith.constant 0 : index
    %77 = vector.load %arg12[%c3_50, %c0_51] : memref<8x256xf32, #tpu.memory_space<vmem>>, vector<1x128xf32>
    %78 = vector.broadcast %77 : vector<1x128xf32> to vector<8x128xf32>
    %79 = arith.addf %76, %78 : vector<8x128xf32>
    %cst_52 = arith.constant 0.000000e+00 : f32
    %80 = vector.broadcast %cst_52 : f32 to vector<8x128xf32>
    %81 = arith.maximumf %79, %80 : vector<8x128xf32>
    %82 = arith.truncf %81 : vector<8x128xf32> to vector<8x128xbf16>
    %c0_53 = arith.constant 0 : index
    %c0_54 = arith.constant 0 : index
    %83 = vector.load %arg10[%c0_53, %c0_54] : memref<256x256xbf16, #tpu.memory_space<vmem>>, vector<128x256xbf16>
    %cst_55 = arith.constant dense<0.000000e+00> : vector<8x256xf32>
    %84 = tpu.matmul %73, %83, %cst_55 {dimension_numbers = #tpu.dot_dimension_numbers<[1], [0], [0], [1], [0, 0, 1, 1], [], []>} : vector<8x128xbf16>, vector<128x256xbf16>, vector<8x256xf32> -> vector<8x256xf32>
    %c128_56 = arith.constant 128 : index
    %c0_57 = arith.constant 0 : index
    %85 = vector.load %arg10[%c128_56, %c0_57] : memref<256x256xbf16, #tpu.memory_space<vmem>>, vector<128x256xbf16>
    %cst_58 = arith.constant dense<0.000000e+00> : vector<8x256xf32>
    %86 = tpu.matmul %82, %85, %cst_58 {dimension_numbers = #tpu.dot_dimension_numbers<[1], [0], [0], [1], [0, 0, 1, 1], [], []>} : vector<8x128xbf16>, vector<128x256xbf16>, vector<8x256xf32> -> vector<8x256xf32>
    %87 = arith.addf %84, %86 : vector<8x256xf32>
    %c4_59 = arith.constant 4 : index
    %c0_60 = arith.constant 0 : index
    %88 = vector.load %arg12[%c4_59, %c0_60] : memref<8x256xf32, #tpu.memory_space<vmem>>, vector<1x256xf32>
    %89 = vector.broadcast %88 : vector<1x256xf32> to vector<8x256xf32>
    %90 = arith.addf %87, %89 : vector<8x256xf32>
    %cst_61 = arith.constant 0.000000e+00 : f32
    %91 = vector.broadcast %cst_61 : f32 to vector<8x256xf32>
    %92 = arith.maximumf %90, %91 : vector<8x256xf32>
    %93 = arith.truncf %92 : vector<8x256xf32> to vector<8x256xbf16>
    %c0_62 = arith.constant 0 : index
    %c0_63 = arith.constant 0 : index
    %94 = vector.load %arg11[%c0_62, %c0_63] : memref<256x128xbf16, #tpu.memory_space<vmem>>, vector<256x128xbf16>
    %cst_64 = arith.constant dense<0.000000e+00> : vector<8x128xf32>
    %95 = tpu.matmul %93, %94, %cst_64 {dimension_numbers = #tpu.dot_dimension_numbers<[1], [0], [0], [1], [0, 0, 1, 1], [], []>} : vector<8x256xbf16>, vector<256x128xbf16>, vector<8x128xf32> -> vector<8x128xf32>
    %c5 = arith.constant 5 : index
    %c0_65 = arith.constant 0 : index
    %96 = vector.load %arg12[%c5, %c0_65] : memref<8x256xf32, #tpu.memory_space<vmem>>, vector<1x128xf32>
    %97 = vector.broadcast %96 : vector<1x128xf32> to vector<8x128xf32>
    %98 = arith.addf %95, %97 : vector<8x128xf32>
    %cst_66 = arith.constant 0.000000e+00 : f32
    %99 = vector.broadcast %cst_66 : f32 to vector<8x128xf32>
    %100 = arith.maximumf %98, %99 : vector<8x128xf32>
    %101 = arith.truncf %100 : vector<8x128xf32> to vector<8x128xbf16>
    %c256 = arith.constant 256 : index
    %c0_67 = arith.constant 0 : index
    %102 = vector.load %arg9[%c256, %c0_67] : memref<384x128xbf16, #tpu.memory_space<vmem>>, vector<128x128xbf16>
    %cst_68 = arith.constant dense<0.000000e+00> : vector<8x128xf32>
    %103 = tpu.matmul %101, %102, %cst_68 {dimension_numbers = #tpu.dot_dimension_numbers<[1], [0], [0], [1], [0, 0, 1, 1], [], []>} : vector<8x128xbf16>, vector<128x128xbf16>, vector<8x128xf32> -> vector<8x128xf32>
    %c6 = arith.constant 6 : index
    %c0_69 = arith.constant 0 : index
    %104 = vector.load %arg12[%c6, %c0_69] : memref<8x256xf32, #tpu.memory_space<vmem>>, vector<1x128xf32>
    %105 = vector.broadcast %104 : vector<1x128xf32> to vector<8x128xf32>
    %106 = arith.addf %103, %105 : vector<8x128xf32>
    %c0_70 = arith.constant 0 : index
    %c0_71 = arith.constant 0 : index
    %107 = vector.load %arg13[%c0_70, %c0_71] : memref<8x128xf32, #tpu.memory_space<vmem>>, vector<8x128xf32>
    tpu.vector_store %arg13[%c0_70, %c0_71], %106 {strides = array<i32>} : memref<8x128xf32, #tpu.memory_space<vmem>>, vector<8x128xf32>,
    return
  }
}

</mosaic_0001>

<llo_original>
// kernel: squeeze.0
$region0: #{squeeze.0}
  %s0 = inlined_call_operand.vmem [shape: bf16[2,25,25], index: 0, kind: input, shape index: {}]
  %s1 = inlined_call_operand.vmem [shape: bf16[2,625], index: 1, kind: output, shape index: {}]
  $region1: #{squeeze.0} parent=0
    #allocation0 [shape = 'u8[20480]{0}', space=vmem, size = 0x5000, scoped, tag = 'scoped mem for output reshape']
    #allocation1 [shape = 'u8[32768]{0}', space=vmem, size = 0x8000, scoped, tag = 'scoped mem for input reshape']
    %s3 = smul.u32 4, 2
    %s4 = sshllo.u32 0, %s3
    %s5 = smul.addr 4, 7
    %s6 = scalar_lea.vmem %s0, %s5
    %s7 = sshrl.u32 %s4, 1
    %s8 = sor.u32 %s4, %s7
    %s9 = sand.u32 %s8, 85
    %s10 = sshrl.u32 %s9, 1
    %s11 = sor.u32 %s9, %s10
    %s12 = sand.u32 51, %s11
    %s13 = sshrl.u32 %s12, 2
    %s14 = sor.u32 %s12, %s13
    %s15 = sand.u32 15, %s14
    %v16 = vld [vmem:[%s6] sm:%s15]
    %v17 = vunpack.c.l.bf16 %v16
    %v18 = vunpack.c.h.bf16 %v16
    %s19 = scalar_lea.vmem [#allocation1], 56
    %20 = vst [vmem:[%s19] sm:%s4] %v17
    %s21 = smul.addr 4, 6
    %s22 = scalar_lea.vmem %s0, %s21
    %s23 = sshrl.u32 %s4, 1
    %s24 = sor.u32 %s4, %s23
    %s25 = sand.u32 %s24, 85
    %s26 = sshrl.u32 %s25, 1
    %s27 = sor.u32 %s25, %s26
    %s28 = sand.u32 51, %s27
    %s29 = sshrl.u32 %s28, 2
    %s30 = sor.u32 %s28, %s29
    %s31 = sand.u32 15, %s30
    %v32 = vld [vmem:[%s22] sm:%s31]
    %v33 = vunpack.c.l.bf16 %v32
    %v34 = vunpack.c.h.bf16 %v32
    %s35 = scalar_lea.vmem [#allocation1], 48
    %36 = vst [vmem:[%s35] sm:%s4] %v33
    %s37 = smul.addr 4, 5
    %s38 = scalar_lea.vmem %s0, %s37
    %s39 = sshrl.u32 %s4, 1
    %s40 = sor.u32 %s4, %s39
    %s41 = sand.u32 %s40, 85
    %s42 = sshrl.u32 %s41, 1
    %s43 = sor.u32 %s41, %s42
    %s44 = sand.u32 51, %s43
    %s45 = sshrl.u32 %s44, 2
    %s46 = sor.u32 %s44, %s45
    %s47 = sand.u32 15, %s46
    %v48 = vld [vmem:[%s38] sm:%s47]
    %v49 = vunpack.c.l.bf16 %v48
    %v50 = vunpack.c.h.bf16 %v48
    %s51 = scalar_lea.vmem [#allocation1], 40
    %52 = vst [vmem:[%s51] sm:%s4] %v49
    %s53 = smul.addr 4, 4
    %s54 = scalar_lea.vmem %s0, %s53
    %s55 = sshrl.u32 %s4, 1
    %s56 = sor.u32 %s4, %s55
    %s57 = sand.u32 %s56, 85
    %s58 = sshrl.u32 %s57, 1
    %s59 = sor.u32 %s57, %s58
    %s60 = sand.u32 51, %s59
    %s61 = sshrl.u32 %s60, 2
    %s62 = sor.u32 %s60, %s61
    %s63 = sand.u32 15, %s62
    %v64 = vld [vmem:[%s54] sm:%s63]
    %v65 = vunpack.c.l.bf16 %v64
    %v66 = vunpack.c.h.bf16 %v64
    %s67 = scalar_lea.vmem [#allocation1], 32
    %68 = vst [vmem:[%s67] sm:%s4] %v65
    %s69 = smul.addr 4, 3
    %s70 = scalar_lea.vmem %s0, %s69
    %s71 = sshrl.u32 %s4, 1
    %s72 = sor.u32 %s4, %s71
    %s73 = sand.u32 %s72, 85
    %s74 = sshrl.u32 %s73, 1
    %s75 = sor.u32 %s73, %s74
    %s76 = sand.u32 51, %s75
    %s77 = sshrl.u32 %s76, 2
    %s78 = sor.u32 %s76, %s77
    %s79 = sand.u32 15, %s78
    %v80 = vld [vmem:[%s70] sm:%s79]
    %v81 = vunpack.c.l.bf16 %v80
    %v82 = vunpack.c.h.bf16 %v80
    %s83 = scalar_lea.vmem [#allocation1], 24
    %84 = vst [vmem:[%s83] sm:%s4] %v81
    %s85 = smul.addr 4, 2
    %s86 = scalar_lea.vmem %s0, %s85
    %s87 = sshrl.u32 %s4, 1
    %s88 = sor.u32 %s4, %s87
    %s89 = sand.u32 %s88, 85
    %s90 = sshrl.u32 %s89, 1
    %s91 = sor.u32 %s89, %s90
    %s92 = sand.u32 51, %s91
    %s93 = sshrl.u32 %s92, 2
    %s94 = sor.u32 %s92, %s93
    %s95 = sand.u32 15, %s94
    %v96 = vld [vmem:[%s86] sm:%s95]
    %v97 = vunpack.c.l.bf16 %v96
    %v98 = vunpack.c.h.bf16 %v96
    %s99 = scalar_lea.vmem [#allocation1], 16
    %100 = vst [vmem:[%s99] sm:%s4] %v97
    %s101 = scalar_lea.vmem %s0, 4
    %s102 = sshrl.u32 %s4, 1
    %s103 = sor.u32 %s4, %s102
    %s104 = sand.u32 %s103, 85
    %s105 = sshrl.u32 %s104, 1
    %s106 = sor.u32 %s104, %s105
    %s107 = sand.u32 51, %s106
    %s108 = sshrl.u32 %s107, 2
    %s109 = sor.u32 %s107, %s108
    %s110 = sand.u32 15, %s109
    %v111 = vld [vmem:[%s101] sm:%s110]
    %v112 = vunpack.c.l.bf16 %v111
    %v113 = vunpack.c.h.bf16 %v111
    %s114 = scalar_lea.vmem [#allocation1], 8
    %115 = vst [vmem:[%s114] sm:%s4] %v112
    %s116 = sshrl.u32 %s4, 1
    %s117 = sor.u32 %s4, %s116
    %s118 = sand.u32 %s117, 85
    %s119 = sshrl.u32 %s118, 1
    %s120 = sor.u32 %s118, %s119
    %s121 = sand.u32 51, %s120
    %s122 = sshrl.u32 %s121, 2
    %s123 = sor.u32 %s121, %s122
    %s124 = sand.u32 15, %s123
    %v125 = vld [vmem:[%s0] sm:%s124]
    %v126 = vunpack.c.l.bf16 %v125
    %v127 = vunpack.c.h.bf16 %v125
    %128 = vst [vmem:[#allocation1] sm:%s4] %v126
    %v129 = vld [vmem:[#allocation1] sm:$0x1]
    %s130 = scalar_lea.vmem [#allocation1], 31
    %v131 = vld [vmem:[%s130] sm:$0x2]
    %vm132 = vcmask 1041409
    %v133 = vsel %vm132, %v131, %v129
    %vm134 = vcmask 203776
    %135 = vst.msk [vmem:[#allocation0] sm:$0x3] %vm134, %v133
    %s136 = scalar_lea.vmem [#allocation1], 5
    %v137 = vld [vmem:[%s136] sm:$0x1]
    %s138 = scalar_lea.vmem [#allocation1], 36
    %v139 = vld [vmem:[%s138] sm:$0x2]
    %vm140 = vcmask 1041409
    %v141 = vsel %vm140, %v139, %v137
    %s142 = scalar_lea.vmem [#allocation1], 5
    %v143 = vld [vmem:[%s142] sm:$0x1]
    %s144 = scalar_lea.vmem [#allocation1], 36
    %v145 = vld [vmem:[%s144] sm:$0x2]
    %vm146 = vcmask 1041409
    %v147 = vsel %vm146, %v145, %v143
    %vm148 = vcmask 23552
    %v149 = vsel %vm148, %v147, %v141
    %150 = vrot.lane.b32.xlu0 %v149, 125
    %v151 = vpop.permute.xlu0 %150
    %vm152 = vcmask 179200
    %s153 = scalar_lea.vmem [#allocation0], 8
    %154 = vst.msk [vmem:[%s153] sm:$0x3] %vm152, %v151
    %vm155 = vcmask 1048552
    %156 = vst.msk [vmem:[#allocation0] sm:$0x3] %vm155, %v151
    %s157 = scalar_lea.vmem [#allocation1], 10
    %v158 = vld [vmem:[%s157] sm:$0x1]
    %s159 = scalar_lea.vmem [#allocation1], 41
    %v160 = vld [vmem:[%s159] sm:$0x2]
    %vm161 = vcmask 1041409
    %v162 = vsel %vm161, %v160, %v158
    %s163 = scalar_lea.vmem [#allocation1], 10
    %v164 = vld [vmem:[%s163] sm:$0x1]
    %s165 = scalar_lea.vmem [#allocation1], 41
    %v166 = vld [vmem:[%s165] sm:$0x2]
    %vm167 = vcmask 1041409
    %v168 = vsel %vm167, %v166, %v164
    %vm169 = vcmask 48128
    %v170 = vsel %vm169, %v168, %v162
    %171 = vrot.lane.b32.xlu0 %v170, 122
    %v172 = vpop.permute.xlu0 %171
    %vm173 = vcmask 154624
    %s174 = scalar_lea.vmem [#allocation0], 16
    %175 = vst.msk [vmem:[%s174] sm:$0x3] %vm173, %v172
    %vm176 = vcmask 1048528
    %s177 = scalar_lea.vmem [#allocation0], 8
    %178 = vst.msk [vmem:[%s177] sm:$0x3] %vm176, %v172
    %s179 = scalar_lea.vmem [#allocation1], 15
    %v180 = vld [vmem:[%s179] sm:$0x1]
    %s181 = scalar_lea.vmem [#allocation1], 46
    %v182 = vld [vmem:[%s181] sm:$0x2]
    %vm183 = vcmask 1041409
    %v184 = vsel %vm183, %v182, %v180
    %s185 = scalar_lea.vmem [#allocation1], 15
    %v186 = vld [vmem:[%s185] sm:$0x1]
    %s187 = scalar_lea.vmem [#allocation1], 46
    %v188 = vld [vmem:[%s187] sm:$0x2]
    %vm189 = vcmask 1041409
    %v190 = vsel %vm189, %v188, %v186
    %vm191 = vcmask 72704
    %v192 = vsel %vm191, %v190, %v184
    %193 = vrot.lane.b32.xlu0 %v192, 119
    %v194 = vpop.permute.xlu0 %193
    %vm195 = vcmask 130048
    %s196 = scalar_lea.vmem [#allocation0], 24
    %197 = vst.msk [vmem:[%s196] sm:$0x3] %vm195, %v194
    %vm198 = vcmask 1048504
    %s199 = scalar_lea.vmem [#allocation0], 16
    %200 = vst.msk [vmem:[%s199] sm:$0x3] %vm198, %v194
    %s201 = scalar_lea.vmem [#allocation1], 20
    %v202 = vld [vmem:[%s201] sm:$0x1]
    %s203 = scalar_lea.vmem [#allocation1], 51
    %v204 = vld [vmem:[%s203] sm:$0x2]
    %vm205 = vcmask 1041409
    %v206 = vsel %vm205, %v204, %v202
    %s207 = scalar_lea.vmem [#allocation1], 20
    %v208 = vld [vmem:[%s207] sm:$0x1]
    %s209 = scalar_lea.vmem [#allocation1], 51
    %v210 = vld [vmem:[%s209] sm:$0x2]
    %vm211 = vcmask 1041409
    %v212 = vsel %vm211, %v210, %v208
    %vm213 = vcmask 97280
    %v214 = vsel %vm213, %v212, %v206
    %215 = vrot.lane.b32.xlu0 %v214, 116
    %v216 = vpop.permute.xlu0 %215
    %vm217 = vcmask 105472
    %s218 = scalar_lea.vmem [#allocation0], 32
    %219 = vst.msk [vmem:[%s218] sm:$0x3] %vm217, %v216
    %vm220 = vcmask 1048480
    %s221 = scalar_lea.vmem [#allocation0], 24
    %222 = vst.msk [vmem:[%s221] sm:$0x3] %vm220, %v216
    %s223 = scalar_lea.vmem [#allocation1], 4
    %v224 = vld [vmem:[%s223] sm:$0x1]
    %s225 = scalar_lea.vmem [#allocation1], 35
    %v226 = vld [vmem:[%s225] sm:$0x2]
    %vm227 = vcmask 1041409
    %v228 = vsel %vm227, %v226, %v224
    %229 = vrot.lane.b32.xlu0 %v228, 100
    %v230 = vpop.permute.xlu0 %229
    %vm231 = vcmask 1023776
    %232 = vst.msk [vmem:[#allocation0] sm:$0x3] %vm231, %v230
    %s233 = scalar_lea.vmem [#allocation1], 9
    %v234 = vld [vmem:[%s233] sm:$0x1]
    %s235 = scalar_lea.vmem [#allocation1], 40
    %v236 = vld [vmem:[%s235] sm:$0x2]
    %vm237 = vcmask 1041409
    %v238 = vsel %vm237, %v236, %v234
    %239 = vrot.lane.b32.xlu0 %v238, 97
    %v240 = vpop.permute.xlu0 %239
    %vm241 = vcmask 999176
    %s242 = scalar_lea.vmem [#allocation0], 8
    %243 = vst.msk [vmem:[%s242] sm:$0x3] %vm241, %v240
    %s244 = scalar_lea.vmem [#allocation1], 14
    %v245 = vld [vmem:[%s244] sm:$0x1]
    %s246 = scalar_lea.vmem [#allocation1], 45
    %v247 = vld [vmem:[%s246] sm:$0x2]
    %vm248 = vcmask 1041409
    %v249 = vsel %vm248, %v247, %v245
    %250 = vrot.lane.b32.xlu0 %v249, 94
    %v251 = vpop.permute.xlu0 %250
    %vm252 = vcmask 974576
    %s253 = scalar_lea.vmem [#allocation0], 16
    %254 = vst.msk [vmem:[%s253] sm:$0x3] %vm252, %v251
    %s255 = scalar_lea.vmem [#allocation1], 19
    %v256 = vld [vmem:[%s255] sm:$0x1]
    %s257 = scalar_lea.vmem [#allocation1], 50
    %v258 = vld [vmem:[%s257] sm:$0x2]
    %vm259 = vcmask 1041409
    %v260 = vsel %vm259, %v258, %v256
    %261 = vrot.lane.b32.xlu0 %v260, 91
    %v262 = vpop.permute.xlu0 %261
    %vm263 = vcmask 949976
    %s264 = scalar_lea.vmem [#allocation0], 24
    %265 = vst.msk [vmem:[%s264] sm:$0x3] %vm263, %v262
    %s266 = scalar_lea.vmem [#allocation1], 24
    %v267 = vld [vmem:[%s266] sm:$0x1]
    %s268 = scalar_lea.vmem [#allocation1], 55
    %v269 = vld [vmem:[%s268] sm:$0x2]
    %vm270 = vcmask 1041409
    %v271 = vsel %vm270, %v269, %v267
    %272 = vrot.lane.b32.xlu0 %v271, 88
    %v273 = vpop.permute.xlu0 %272
    %vm274 = vcmask 925376
    %s275 = scalar_lea.vmem [#allocation0], 32
    %276 = vst.msk [vmem:[%s275] sm:$0x3] %vm274, %v273
    %s277 = scalar_lea.vmem [#allocation1], 3
    %v278 = vld [vmem:[%s277] sm:$0x1]
    %s279 = scalar_lea.vmem [#allocation1], 34
    %v280 = vld [vmem:[%s279] sm:$0x2]
    %vm281 = vcmask 1041409
    %v282 = vsel %vm281, %v280, %v278
    %283 = vrot.lane.b32.xlu0 %v282, 75
    %v284 = vpop.permute.xlu0 %283
    %vm285 = vcmask 818776
    %286 = vst.msk [vmem:[#allocation0] sm:$0x3] %vm285, %v284
    %s287 = scalar_lea.vmem [#allocation1], 8
    %v288 = vld [vmem:[%s287] sm:$0x1]
    %s289 = scalar_lea.vmem [#allocation1], 39
    %v290 = vld [vmem:[%s289] sm:$0x2]
    %vm291 = vcmask 1041409
    %v292 = vsel %vm291, %v290, %v288
    %293 = vrot.lane.b32.xlu0 %v292, 72
    %v294 = vpop.permute.xlu0 %293
    %vm295 = vcmask 794176
    %s296 = scalar_lea.vmem [#allocation0], 8
    %297 = vst.msk [vmem:[%s296] sm:$0x3] %vm295, %v294
    %s298 = scalar_lea.vmem [#allocation1], 13
    %v299 = vld [vmem:[%s298] sm:$0x1]
    %s300 = scalar_lea.vmem [#allocation1], 44
    %v301 = vld [vmem:[%s300] sm:$0x2]
    %vm302 = vcmask 1041409
    %v303 = vsel %vm302, %v301, %v299
    %304 = vrot.lane.b32.xlu0 %v303, 69
    %v305 = vpop.permute.xlu0 %304
    %vm306 = vcmask 769576
    %s307 = scalar_lea.vmem [#allocation0], 16
    %308 = vst.msk [vmem:[%s307] sm:$0x3] %vm306, %v305
    %s309 = scalar_lea.vmem [#allocation1], 18
    %v310 = vld [vmem:[%s309] sm:$0x1]
    %s311 = scalar_lea.vmem [#allocation1], 49
    %v312 = vld [vmem:[%s311] sm:$0x2]
    %vm313 = vcmask 1041409
    %v314 = vsel %vm313, %v312, %v310
    %315 = vrot.lane.b32.xlu0 %v314, 66
    %v316 = vpop.permute.xlu0 %315
    %vm317 = vcmask 744976
    %s318 = scalar_lea.vmem [#allocation0], 24
    %319 = vst.msk [vmem:[%s318] sm:$0x3] %vm317, %v316
    %s320 = scalar_lea.vmem [#allocation1], 23
    %v321 = vld [vmem:[%s320] sm:$0x1]
    %s322 = scalar_lea.vmem [#allocation1], 54
    %v323 = vld [vmem:[%s322] sm:$0x2]
    %vm324 = vcmask 1041409
    %v325 = vsel %vm324, %v323, %v321
    %326 = vrot.lane.b32.xlu0 %v325, 63
    %v327 = vpop.permute.xlu0 %326
    %vm328 = vcmask 720376
    %s329 = scalar_lea.vmem [#allocation0], 32
    %330 = vst.msk [vmem:[%s329] sm:$0x3] %vm328, %v327
    %s331 = scalar_lea.vmem [#allocation1], 2
    %v332 = vld [vmem:[%s331] sm:$0x1]
    %s333 = scalar_lea.vmem [#allocation1], 33
    %v334 = vld [vmem:[%s333] sm:$0x2]
    %vm335 = vcmask 1041409
    %v336 = vsel %vm335, %v334, %v332
    %337 = vrot.lane.b32.xlu0 %v336, 50
    %v338 = vpop.permute.xlu0 %337
    %vm339 = vcmask 613776
    %340 = vst.msk [vmem:[#allocation0] sm:$0x3] %vm339, %v338
    %s341 = scalar_lea.vmem [#allocation1], 7
    %v342 = vld [vmem:[%s341] sm:$0x1]
    %s343 = scalar_lea.vmem [#allocation1], 38
    %v344 = vld [vmem:[%s343] sm:$0x2]
    %vm345 = vcmask 1041409
    %v346 = vsel %vm345, %v344, %v342
    %347 = vrot.lane.b32.xlu0 %v346, 47
    %v348 = vpop.permute.xlu0 %347
    %vm349 = vcmask 589176
    %s350 = scalar_lea.vmem [#allocation0], 8
    %351 = vst.msk [vmem:[%s350] sm:$0x3] %vm349, %v348
    %s352 = scalar_lea.vmem [#allocation1], 12
    %v353 = vld [vmem:[%s352] sm:$0x1]
    %s354 = scalar_lea.vmem [#allocation1], 43
    %v355 = vld [vmem:[%s354] sm:$0x2]
    %vm356 = vcmask 1041409
    %v357 = vsel %vm356, %v355, %v353
    %358 = vrot.lane.b32.xlu0 %v357, 44
    %v359 = vpop.permute.xlu0 %358
    %vm360 = vcmask 564576
    %s361 = scalar_lea.vmem [#allocation0], 16
    %362 = vst.msk [vmem:[%s361] sm:$0x3] %vm360, %v359
    %s363 = scalar_lea.vmem [#allocation1], 17
    %v364 = vld [vmem:[%s363] sm:$0x1]
    %s365 = scalar_lea.vmem [#allocation1], 48
    %v366 = vld [vmem:[%s365] sm:$0x2]
    %vm367 = vcmask 1041409
    %v368 = vsel %vm367, %v366, %v364
    %369 = vrot.lane.b32.xlu0 %v368, 41
    %v370 = vpop.permute.xlu0 %369
    %vm371 = vcmask 539976
    %s372 = scalar_lea.vmem [#allocation0], 24
    %373 = vst.msk [vmem:[%s372] sm:$0x3] %vm371, %v370
    %s374 = scalar_lea.vmem [#allocation1], 22
    %v375 = vld [vmem:[%s374] sm:$0x1]
    %s376 = scalar_lea.vmem [#allocation1], 53
    %v377 = vld [vmem:[%s376] sm:$0x2]
    %vm378 = vcmask 1041409
    %v379 = vsel %vm378, %v377, %v375
    %380 = vrot.lane.b32.xlu0 %v379, 38
    %v381 = vpop.permute.xlu0 %380
    %vm382 = vcmask 515376
    %s383 = scalar_lea.vmem [#allocation0], 32
    %384 = vst.msk [vmem:[%s383] sm:$0x3] %vm382, %v381
    %s385 = scalar_lea.vmem [#allocation1], 1
    %v386 = vld [vmem:[%s385] sm:$0x1]
    %s387 = scalar_lea.vmem [#allocation1], 32
    %v388 = vld [vmem:[%s387] sm:$0x2]
    %vm389 = vcmask 1041409
    %v390 = vsel %vm389, %v388, %v386
    %391 = vrot.lane.b32.xlu0 %v390, 25
    %v392 = vpop.permute.xlu0 %391
    %vm393 = vcmask 408776
    %394 = vst.msk [vmem:[#allocation0] sm:$0x3] %vm393, %v392
    %s395 = scalar_lea.vmem [#allocation1], 6
    %v396 = vld [vmem:[%s395] sm:$0x1]
    %s397 = scalar_lea.vmem [#allocation1], 37
    %v398 = vld [vmem:[%s397] sm:$0x2]
    %vm399 = vcmask 1041409
    %v400 = vsel %vm399, %v398, %v396
    %401 = vrot.lane.b32.xlu0 %v400, 22
    %v402 = vpop.permute.xlu0 %401
    %vm403 = vcmask 384176
    %s404 = scalar_lea.vmem [#allocation0], 8
    %405 = vst.msk [vmem:[%s404] sm:$0x3] %vm403, %v402
    %s406 = scalar_lea.vmem [#allocation1], 11
    %v407 = vld [vmem:[%s406] sm:$0x1]
    %s408 = scalar_lea.vmem [#allocation1], 42
    %v409 = vld [vmem:[%s408] sm:$0x2]
    %vm410 = vcmask 1041409
    %v411 = vsel %vm410, %v409, %v407
    %412 = vrot.lane.b32.xlu0 %v411, 19
    %v413 = vpop.permute.xlu0 %412
    %vm414 = vcmask 359576
    %s415 = scalar_lea.vmem [#allocation0], 16
    %416 = vst.msk [vmem:[%s415] sm:$0x3] %vm414, %v413
    %s417 = scalar_lea.vmem [#allocation1], 16
    %v418 = vld [vmem:[%s417] sm:$0x1]
    %s419 = scalar_lea.vmem [#allocation1], 47
    %v420 = vld [vmem:[%s419] sm:$0x2]
    %vm421 = vcmask 1041409
    %v422 = vsel %vm421, %v420, %v418
    %423 = vrot.lane.b32.xlu0 %v422, 16
    %v424 = vpop.permute.xlu0 %423
    %vm425 = vcmask 334976
    %s426 = scalar_lea.vmem [#allocation0], 24
    %427 = vst.msk [vmem:[%s426] sm:$0x3] %vm425, %v424
    %s428 = scalar_lea.vmem [#allocation1], 21
    %v429 = vld [vmem:[%s428] sm:$0x1]
    %s430 = scalar_lea.vmem [#allocation1], 52
    %v431 = vld [vmem:[%s430] sm:$0x2]
    %vm432 = vcmask 1041409
    %v433 = vsel %vm432, %v431, %v429
    %434 = vrot.lane.b32.xlu0 %v433, 13
    %v435 = vpop.permute.xlu0 %434
    %vm436 = vcmask 310376
    %s437 = scalar_lea.vmem [#allocation0], 32
    %438 = vst.msk [vmem:[%s437] sm:$0x3] %vm436, %v435
    %s440 = smul.u32 1, 2
    %s441 = sshllo.u32 0, %s440
    %s442 = sshrl.u32 %s440, 1
    %v443 = vld [vmem:[#allocation0] sm:%s441]
    %v444 = vpack.c.bf16 0.0, %v443
    %s445 = sshllo.u32 0, %s442
    %446 = vst [vmem:[%s1] sm:%s445] %v444
    %s447 = scalar_lea.vmem [#allocation0], 8
    %v448 = vld [vmem:[%s447] sm:%s441]
    %v449 = vpack.c.bf16 0.0, %v448
    %s450 = sshllo.u32 0, %s442
    %s451 = scalar_lea.vmem %s1, 1
    %452 = vst [vmem:[%s451] sm:%s450] %v449
    %s453 = scalar_lea.vmem [#allocation0], 16
    %v454 = vld [vmem:[%s453] sm:%s441]
    %v455 = vpack.c.bf16 0.0, %v454
    %s456 = sshllo.u32 0, %s442
    %s457 = smul.addr 1, 2
    %s458 = scalar_lea.vmem %s1, %s457
    %459 = vst [vmem:[%s458] sm:%s456] %v455
    %s460 = scalar_lea.vmem [#allocation0], 24
    %v461 = vld [vmem:[%s460] sm:%s441]
    %v462 = vpack.c.bf16 0.0, %v461
    %s463 = sshllo.u32 0, %s442
    %s464 = smul.addr 1, 3
    %s465 = scalar_lea.vmem %s1, %s464
    %466 = vst [vmem:[%s465] sm:%s463] %v462
    %s467 = scalar_lea.vmem [#allocation0], 32
    %v468 = vld [vmem:[%s467] sm:%s441]
    %v469 = vpack.c.bf16 0.0, %v468
    %s470 = sshllo.u32 0, %s442
    %s471 = smul.addr 1, 4
    %s472 = scalar_lea.vmem %s1, %s471
    %473 = vst [vmem:[%s472] sm:%s470] %v469

// kernel: cnn_critic_forward.1
$region0: #{cnn_critic_forward.1}
  #allocation0 [shape = 'u32[]', space=smem, size = 0x4, offset = 0x4, fixed_abs, tag = 'smem constant byte address 0x4 - core index']
  #allocation1 [shape = 'u32[144,128]{1,0:T(1,128)}', space=vmem, size = 0x12000, scoped, tag = 'internal scratch']
  %s0 = inlined_call_operand.vmem [shape: bf16[32,640], index: 0, kind: input, shape index: {}]
  %s1 = inlined_call_operand.vmem [shape: bf16[8,128], index: 1, kind: input, shape index: {}]
  %s2 = inlined_call_operand.vmem [shape: bf16[640,256], index: 2, kind: input, shape index: {}]
  %s3 = inlined_call_operand.vmem [shape: bf16[256,384], index: 3, kind: input, shape index: {}]
  %s4 = inlined_call_operand.vmem [shape: bf16[48,32], index: 4, kind: input, shape index: {}]
  %s5 = inlined_call_operand.vmem [shape: bf16[5,8,16], index: 5, kind: input, shape index: {}]
  %s6 = inlined_call_operand.vmem [shape: bf16[640,256], index: 6, kind: input, shape index: {}]
  %s7 = inlined_call_operand.vmem [shape: bf16[256,384], index: 7, kind: input, shape index: {}]
  %s8 = inlined_call_operand.vmem [shape: bf16[24,8], index: 8, kind: input, shape index: {}]
  %s9 = inlined_call_operand.vmem [shape: bf16[384,128], index: 9, kind: input, shape index: {}]
  %s10 = inlined_call_operand.vmem [shape: bf16[256,256], index: 10, kind: input, shape index: {}]
  %s11 = inlined_call_operand.vmem [shape: bf16[256,128], index: 11, kind: input, shape index: {}]
  %s12 = inlined_call_operand.vmem [shape: f32[8,256], index: 12, kind: input, shape index: {}]
  %s13 = inlined_call_operand.vmem [shape: f32[8,128], index: 13, kind: output, shape index: {}]
  %s14 = sld [smem:[#allocation0]]
  $region62: #{cnn_critic_forward.1} parent=0
    _
  %s16 = ssub.s32 1, %s14
  %s17 = scalar_select 0, %s16, %s14
  // Predicated region
  $region2: #{cnn_critic_forward.1} parent=0 // pred_check
    _
  $region3: #{cnn_critic_forward.1} parent=0 // pred_check_branch
    %19 = sbr.rel (0) target = $region5
  $region4: #{cnn_critic_forward.1} parent=0 // pred_region
    _
  $region5: #{cnn_critic_forward.1} parent=0 // pred_fallthru
    _
  // Predicated region
  $region6: #{cnn_critic_forward.1} parent=0 // pred_check
    _
  $region7: #{cnn_critic_forward.1} parent=0 // pred_check_branch
    %21 = sbr.rel (0) target = $region9
  $region8: #{cnn_critic_forward.1} parent=0 // pred_region
    _
  $region9: #{cnn_critic_forward.1} parent=0 // pred_fallthru
    _
  // Predicated region
  $region10: #{cnn_critic_forward.1} parent=0 // pred_check
    _
  $region11: #{cnn_critic_forward.1} parent=0 // pred_check_branch
    %23 = sbr.rel (0) target = $region13
  $region12: #{cnn_critic_forward.1} parent=0 // pred_region
    _
  $region13: #{cnn_critic_forward.1} parent=0 // pred_fallthru
    _
  // Predicated region
  $region14: #{cnn_critic_forward.1} parent=0 // pred_check
    _
  $region15: #{cnn_critic_forward.1} parent=0 // pred_check_branch
    %25 = sbr.rel (0) target = $region17
  $region16: #{cnn_critic_forward.1} parent=0 // pred_region
    _
  $region17: #{cnn_critic_forward.1} parent=0 // pred_fallthru
    _
  // Predicated region
  $region18: #{cnn_critic_forward.1} parent=0 // pred_check
    _
  $region19: #{cnn_critic_forward.1} parent=0 // pred_check_branch
    %27 = sbr.rel (0) target = $region21
  $region20: #{cnn_critic_forward.1} parent=0 // pred_region
    _
  $region21: #{cnn_critic_forward.1} parent=0 // pred_fallthru
    _
  // Predicated region
  $region22: #{cnn_critic_forward.1} parent=0 // pred_check
    _
  $region23: #{cnn_critic_forward.1} parent=0 // pred_check_branch
    %29 = sbr.rel (0) target = $region25
  $region24: #{cnn_critic_forward.1} parent=0 // pred_region
    _
  $region25: #{cnn_critic_forward.1} parent=0 // pred_fallthru
    _
  // Predicated region
  $region26: #{cnn_critic_forward.1} parent=0 // pred_check
    _
  $region27: #{cnn_critic_forward.1} parent=0 // pred_check_branch
    %31 = sbr.rel (0) target = $region29
  $region28: #{cnn_critic_forward.1} parent=0 // pred_region
    _
  $region29: #{cnn_critic_forward.1} parent=0 // pred_fallthru
    _
  // Predicated region
  $region30: #{cnn_critic_forward.1} parent=0 // pred_check
    _
  $region31: #{cnn_critic_forward.1} parent=0 // pred_check_branch
    %33 = sbr.rel (0) target = $region33
  $region32: #{cnn_critic_forward.1} parent=0 // pred_region
    _
  $region33: #{cnn_critic_forward.1} parent=0 // pred_fallthru
    _
  // Predicated region
  $region34: #{cnn_critic_forward.1} parent=0 // pred_check
    _
  $region35: #{cnn_critic_forward.1} parent=0 // pred_check_branch
    %35 = sbr.rel (0) target = $region37
  $region36: #{cnn_critic_forward.1} parent=0 // pred_region
    _
  $region37: #{cnn_critic_forward.1} parent=0 // pred_fallthru
    _
  // Predicated region
  $region38: #{cnn_critic_forward.1} parent=0 // pred_check
    _
  $region39: #{cnn_critic_forward.1} parent=0 // pred_check_branch
    %37 = sbr.rel (0) target = $region41
  $region40: #{cnn_critic_forward.1} parent=0 // pred_region
    _
  $region41: #{cnn_critic_forward.1} parent=0 // pred_fallthru
    _
  // Predicated region
  $region42: #{cnn_critic_forward.1} parent=0 // pred_check
    _
  $region43: #{cnn_critic_forward.1} parent=0 // pred_check_branch
    %39 = sbr.rel (0) target = $region45
  $region44: #{cnn_critic_forward.1} parent=0 // pred_region
    _
  $region45: #{cnn_critic_forward.1} parent=0 // pred_fallthru
    _
  // Predicated region
  $region46: #{cnn_critic_forward.1} parent=0 // pred_check
    _
  $region47: #{cnn_critic_forward.1} parent=0 // pred_check_branch
    %41 = sbr.rel (0) target = $region49
  $region48: #{cnn_critic_forward.1} parent=0 // pred_region
    _
  $region49: #{cnn_critic_forward.1} parent=0 // pred_fallthru
    _
  // Predicated region
  $region50: #{cnn_critic_forward.1} parent=0 // pred_check
    _
  $region51: #{cnn_critic_forward.1} parent=0 // pred_check_branch
    %43 = sbr.rel (0) target = $region53
  $region52: #{cnn_critic_forward.1} parent=0 // pred_region
    _
  $region53: #{cnn_critic_forward.1} parent=0 // pred_fallthru
    _
  %v45 = vld [vmem:[%s0] sm:$0xff]
  %v46 = vld [vmem:[%s0 + $0x8] sm:$0xff]
  %v47 = vld [vmem:[%s0 + $0x10] sm:$0xf]
  %v48 = vld [vmem:[%s0 + $0x14] sm:$0xff]
  %v49 = vld [vmem:[%s0 + $0x1c] sm:$0xff]
  %v50 = vld [vmem:[%s0 + $0x24] sm:$0xf]
  %v51 = vld [vmem:[%s0 + $0x28] sm:$0xff]
  %v52 = vld [vmem:[%s0 + $0x30] sm:$0xff]
  %v53 = vld [vmem:[%s0 + $0x38] sm:$0xf]
  %v54 = vld [vmem:[%s0 + $0x3c] sm:$0xff]
  %v55 = vld [vmem:[%s0 + $0x44] sm:$0xff]
  %v56 = vld [vmem:[%s0 + $0x4c] sm:$0xf]
  %v57 = vld [vmem:[%s2] sm:$0xff]
  %v58 = vld [vmem:[%s2 + $0x8] sm:$0xff]
  %v59 = vld [vmem:[%s2 + $0x10] sm:$0xff]
  %v60 = vld [vmem:[%s2 + $0x18] sm:$0xff]
  %v61 = vld [vmem:[%s2 + $0x20] sm:$0xff]
  %v62 = vld [vmem:[%s2 + $0x28] sm:$0xff]
  %v63 = vld [vmem:[%s2 + $0x30] sm:$0xff]
  %v64 = vld [vmem:[%s2 + $0x38] sm:$0xff]
  %v65 = vld [vmem:[%s2 + $0x40] sm:$0xff]
  %v66 = vld [vmem:[%s2 + $0x48] sm:$0xff]
  %v67 = vld [vmem:[%s2 + $0x50] sm:$0xff]
  %v68 = vld [vmem:[%s2 + $0x58] sm:$0xff]
  %v69 = vld [vmem:[%s2 + $0x60] sm:$0xff]
  %v70 = vld [vmem:[%s2 + $0x68] sm:$0xff]
  %v71 = vld [vmem:[%s2 + $0x70] sm:$0xff]
  %v72 = vld [vmem:[%s2 + $0x78] sm:$0xff]
  %v73 = vld [vmem:[%s2 + $0x80] sm:$0xff]
  %v74 = vld [vmem:[%s2 + $0x88] sm:$0xff]
  %v75 = vld [vmem:[%s2 + $0x90] sm:$0xff]
  %v76 = vld [vmem:[%s2 + $0x98] sm:$0xff]
  %v77 = vld [vmem:[%s2 + $0xa0] sm:$0xff]
  %v78 = vld [vmem:[%s2 + $0xa8] sm:$0xff]
  %v79 = vld [vmem:[%s2 + $0xb0] sm:$0xff]
  %v80 = vld [vmem:[%s2 + $0xb8] sm:$0xff]
  %v81 = vld [vmem:[%s2 + $0xc0] sm:$0xff]
  %v82 = vld [vmem:[%s2 + $0xc8] sm:$0xff]
  %v83 = vld [vmem:[%s2 + $0xd0] sm:$0xff]
  %v84 = vld [vmem:[%s2 + $0xd8] sm:$0xff]
  %v85 = vld [vmem:[%s2 + $0xe0] sm:$0xff]
  %v86 = vld [vmem:[%s2 + $0xe8] sm:$0xff]
  %v87 = vld [vmem:[%s2 + $0xf0] sm:$0xff]
  %v88 = vld [vmem:[%s2 + $0xf8] sm:$0xff]
  %v89 = vld [vmem:[%s2 + $0x100] sm:$0xff]
  %v90 = vld [vmem:[%s2 + $0x108] sm:$0xff]
  %v91 = vld [vmem:[%s2 + $0x110] sm:$0xff]
  %v92 = vld [vmem:[%s2 + $0x118] sm:$0xff]
  %v93 = vld [vmem:[%s2 + $0x120] sm:$0xff]
  %v94 = vld [vmem:[%s2 + $0x128] sm:$0xff]
  %v95 = vld [vmem:[%s2 + $0x130] sm:$0xff]
  %v96 = vld [vmem:[%s2 + $0x138] sm:$0xff]
  %v97 = vld [vmem:[%s2 + $0x140] sm:$0xff]
  %v98 = vld [vmem:[%s2 + $0x148] sm:$0xff]
  %v99 = vld [vmem:[%s2 + $0x150] sm:$0xff]
  %v100 = vld [vmem:[%s2 + $0x158] sm:$0xff]
  %v101 = vld [vmem:[%s2 + $0x160] sm:$0xff]
  %v102 = vld [vmem:[%s2 + $0x168] sm:$0xff]
  %v103 = vld [vmem:[%s2 + $0x170] sm:$0xff]
  %v104 = vld [vmem:[%s2 + $0x178] sm:$0xff]
  %v105 = vld [vmem:[%s2 + $0x180] sm:$0xff]
  %v106 = vld [vmem:[%s2 + $0x188] sm:$0xff]
  %v107 = vld [vmem:[%s2 + $0x190] sm:$0xff]
  %v108 = vld [vmem:[%s2 + $0x198] sm:$0xff]
  %v109 = vld [vmem:[%s2 + $0x1a0] sm:$0xff]
  %v110 = vld [vmem:[%s2 + $0x1a8] sm:$0xff]
  %v111 = vld [vmem:[%s2 + $0x1b0] sm:$0xff]
  %v112 = vld [vmem:[%s2 + $0x1b8] sm:$0xff]
  %v113 = vld [vmem:[%s2 + $0x1c0] sm:$0xff]
  %v114 = vld [vmem:[%s2 + $0x1c8] sm:$0xff]
  %v115 = vld [vmem:[%s2 + $0x1d0] sm:$0xff]
  %v116 = vld [vmem:[%s2 + $0x1d8] sm:$0xff]
  %v117 = vld [vmem:[%s2 + $0x1e0] sm:$0xff]
  %v118 = vld [vmem:[%s2 + $0x1e8] sm:$0xff]
  %v119 = vld [vmem:[%s2 + $0x1f0] sm:$0xff]
  %v120 = vld [vmem:[%s2 + $0x1f8] sm:$0xff]
  %v121 = vld [vmem:[%s2 + $0x200] sm:$0xff]
  %v122 = vld [vmem:[%s2 + $0x208] sm:$0xff]
  %v123 = vld [vmem:[%s2 + $0x210] sm:$0xff]
  %v124 = vld [vmem:[%s2 + $0x218] sm:$0xff]
  %v125 = vld [vmem:[%s2 + $0x220] sm:$0xff]
  %v126 = vld [vmem:[%s2 + $0x228] sm:$0xff]
  %v127 = vld [vmem:[%s2 + $0x230] sm:$0xff]
  %v128 = vld [vmem:[%s2 + $0x238] sm:$0xff]
  %v129 = vld [vmem:[%s2 + $0x240] sm:$0xff]
  %v130 = vld [vmem:[%s2 + $0x248] sm:$0xff]
  %v131 = vld [vmem:[%s2 + $0x250] sm:$0xff]
  %v132 = vld [vmem:[%s2 + $0x258] sm:$0xff]
  %v133 = vld [vmem:[%s2 + $0x260] sm:$0xff]
  %v134 = vld [vmem:[%s2 + $0x268] sm:$0xff]
  %v135 = vld [vmem:[%s2 + $0x270] sm:$0xff]
  %v136 = vld [vmem:[%s2 + $0x278] sm:$0xff]
  %v137 = vld [vmem:[%s12] ss:$8 sm:$0x3]
  %v139 = vlaneseq
  %v140 = vshrl.u32 %v139, 7
  %v141 = vsub.s32 0, %v140
  %v142 = vrot.slane %v137, %v141
  %v143 = vlaneseq
  %v144 = vshrl.u32 %v143, 7
  %v145 = vsub.s32 1, %v144
  %v146 = vrot.slane %v137, %v145
  %v161 = vunpack.c.l.b16 %v45
  %v162 = vunpack.c.h.b16 %v45
  %v163 = vunpack.c.l.b16 %v46
  %v164 = vunpack.c.h.b16 %v46
  %v165 = vunpack.c.l.b16 %v47
  %v166 = vunpack.c.l.b16 %v48
  %v167 = vunpack.c.h.b16 %v48
  %v168 = vunpack.c.l.b16 %v49
  %v169 = vunpack.c.h.b16 %v49
  %v170 = vunpack.c.l.b16 %v50
  %v171 = vunpack.c.l.b16 %v51
  %v172 = vunpack.c.h.b16 %v51
  %v173 = vunpack.c.l.b16 %v52
  %v174 = vunpack.c.h.b16 %v52
  %v175 = vunpack.c.l.b16 %v53
  %v176 = vunpack.c.l.b16 %v54
  %v177 = vunpack.c.h.b16 %v54
  %v178 = vunpack.c.l.b16 %v55
  %v179 = vunpack.c.h.b16 %v55
  %v180 = vunpack.c.l.b16 %v56
  %v181 = vpack.c.b16 %v166, %v161
  %v182 = vpack.c.b16 %v167, %v162
  %v183 = vpack.c.b16 %v168, %v163
  %v184 = vpack.c.b16 %v169, %v164
  %v185 = vpack.c.b16 %v170, %v165
  %v186 = vpack.c.b16 %v176, %v171
  %v187 = vpack.c.b16 %v177, %v172
  %v188 = vpack.c.b16 %v178, %v173
  %v189 = vpack.c.b16 %v179, %v174
  %v190 = vpack.c.b16 %v180, %v175
  %v281 = vunpack.c.l.b16 %v57
  %v282 = vunpack.c.h.b16 %v57
  %v283 = vunpack.c.l.b16 %v58
  %v284 = vunpack.c.h.b16 %v58
  %v285 = vunpack.c.l.b16 %v59
  %v286 = vunpack.c.h.b16 %v59
  %v287 = vunpack.c.l.b16 %v60
  %v288 = vunpack.c.h.b16 %v60
  %v289 = vunpack.c.l.b16 %v61
  %v290 = vunpack.c.h.b16 %v61
  %v291 = vunpack.c.l.b16 %v62
  %v292 = vunpack.c.h.b16 %v62
  %v293 = vunpack.c.l.b16 %v63
  %v294 = vunpack.c.h.b16 %v63
  %v295 = vunpack.c.l.b16 %v64
  %v296 = vunpack.c.h.b16 %v64
  %v297 = vunpack.c.l.b16 %v65
  %v298 = vunpack.c.h.b16 %v65
  %v299 = vunpack.c.l.b16 %v66
  %v300 = vunpack.c.h.b16 %v66
  %v301 = vunpack.c.l.b16 %v67
  %v302 = vunpack.c.h.b16 %v67
  %v303 = vunpack.c.l.b16 %v68
  %v304 = vunpack.c.h.b16 %v68
  %v305 = vunpack.c.l.b16 %v69
  %v306 = vunpack.c.h.b16 %v69
  %v307 = vunpack.c.l.b16 %v70
  %v308 = vunpack.c.h.b16 %v70
  %v309 = vunpack.c.l.b16 %v71
  %v310 = vunpack.c.h.b16 %v71
  %v311 = vunpack.c.l.b16 %v72
  %v312 = vunpack.c.h.b16 %v72
  %v313 = vunpack.c.l.b16 %v73
  %v314 = vunpack.c.h.b16 %v73
  %v315 = vunpack.c.l.b16 %v74
  %v316 = vunpack.c.h.b16 %v74
  %v317 = vunpack.c.l.b16 %v75
  %v318 = vunpack.c.h.b16 %v75
  %v319 = vunpack.c.l.b16 %v76
  %v320 = vunpack.c.h.b16 %v76
  %v321 = vunpack.c.l.b16 %v77
  %v322 = vunpack.c.h.b16 %v77
  %v323 = vunpack.c.l.b16 %v78
  %v324 = vunpack.c.h.b16 %v78
  %v325 = vunpack.c.l.b16 %v79
  %v326 = vunpack.c.h.b16 %v79
  %v327 = vunpack.c.l.b16 %v80
  %v328 = vunpack.c.h.b16 %v80
  %v329 = vunpack.c.l.b16 %v81
  %v330 = vunpack.c.h.b16 %v81
  %v331 = vunpack.c.l.b16 %v82
  %v332 = vunpack.c.h.b16 %v82
  %v333 = vunpack.c.l.b16 %v83
  %v334 = vunpack.c.h.b16 %v83
  %v335 = vunpack.c.l.b16 %v84
  %v336 = vunpack.c.h.b16 %v84
  %v337 = vunpack.c.l.b16 %v85
  %v338 = vunpack.c.h.b16 %v85
  %v339 = vunpack.c.l.b16 %v86
  %v340 = vunpack.c.h.b16 %v86
  %v341 = vunpack.c.l.b16 %v87
  %v342 = vunpack.c.h.b16 %v87
  %v343 = vunpack.c.l.b16 %v88
  %v344 = vunpack.c.h.b16 %v88
  %v345 = vunpack.c.l.b16 %v89
  %v346 = vunpack.c.h.b16 %v89
  %v347 = vunpack.c.l.b16 %v90
  %v348 = vunpack.c.h.b16 %v90
  %v349 = vunpack.c.l.b16 %v91
  %v350 = vunpack.c.h.b16 %v91
  %v351 = vunpack.c.l.b16 %v92
  %v352 = vunpack.c.h.b16 %v92
  %v353 = vunpack.c.l.b16 %v93
  %v354 = vunpack.c.h.b16 %v93
  %v355 = vunpack.c.l.b16 %v94
  %v356 = vunpack.c.h.b16 %v94
  %v357 = vunpack.c.l.b16 %v95
  %v358 = vunpack.c.h.b16 %v95
  %v359 = vunpack.c.l.b16 %v96
  %v360 = vunpack.c.h.b16 %v96
  %v361 = vunpack.c.l.b16 %v97
  %v362 = vunpack.c.h.b16 %v97
  %v363 = vunpack.c.l.b16 %v98
  %v364 = vunpack.c.h.b16 %v98
  %v365 = vunpack.c.l.b16 %v99
  %v366 = vunpack.c.h.b16 %v99
  %v367 = vunpack.c.l.b16 %v100
  %v368 = vunpack.c.h.b16 %v100
  %v369 = vunpack.c.l.b16 %v101
  %v370 = vunpack.c.h.b16 %v101
  %v371 = vunpack.c.l.b16 %v102
  %v372 = vunpack.c.h.b16 %v102
  %v373 = vunpack.c.l.b16 %v103
  %v374 = vunpack.c.h.b16 %v103
  %v375 = vunpack.c.l.b16 %v104
  %v376 = vunpack.c.h.b16 %v104
  %v377 = vunpack.c.l.b16 %v105
  %v378 = vunpack.c.h.b16 %v105
  %v379 = vunpack.c.l.b16 %v106
  %v380 = vunpack.c.h.b16 %v106
  %v381 = vunpack.c.l.b16 %v107
  %v382 = vunpack.c.h.b16 %v107
  %v383 = vunpack.c.l.b16 %v108
  %v384 = vunpack.c.h.b16 %v108
  %v385 = vunpack.c.l.b16 %v109
  %v386 = vunpack.c.h.b16 %v109
  %v387 = vunpack.c.l.b16 %v110
  %v388 = vunpack.c.h.b16 %v110
  %v389 = vunpack.c.l.b16 %v111
  %v390 = vunpack.c.h.b16 %v111
  %v391 = vunpack.c.l.b16 %v112
  %v392 = vunpack.c.h.b16 %v112
  %v393 = vunpack.c.l.b16 %v113
  %v394 = vunpack.c.h.b16 %v113
  %v395 = vunpack.c.l.b16 %v114
  %v396 = vunpack.c.h.b16 %v114
  %v397 = vunpack.c.l.b16 %v115
  %v398 = vunpack.c.h.b16 %v115
  %v399 = vunpack.c.l.b16 %v116
  %v400 = vunpack.c.h.b16 %v116
  %v401 = vunpack.c.l.b16 %v117
  %v402 = vunpack.c.h.b16 %v117
  %v403 = vunpack.c.l.b16 %v118
  %v404 = vunpack.c.h.b16 %v118
  %v405 = vunpack.c.l.b16 %v119
  %v406 = vunpack.c.h.b16 %v119
  %v407 = vunpack.c.l.b16 %v120
  %v408 = vunpack.c.h.b16 %v120
  %v409 = vunpack.c.l.b16 %v121
  %v410 = vunpack.c.h.b16 %v121
  %v411 = vunpack.c.l.b16 %v122
  %v412 = vunpack.c.h.b16 %v122
  %v413 = vunpack.c.l.b16 %v123
  %v414 = vunpack.c.h.b16 %v123
  %v415 = vunpack.c.l.b16 %v124
  %v416 = vunpack.c.h.b16 %v124
  %v417 = vunpack.c.l.b16 %v125
  %v418 = vunpack.c.h.b16 %v125
  %v419 = vunpack.c.l.b16 %v126
  %v420 = vunpack.c.h.b16 %v126
  %v421 = vunpack.c.l.b16 %v127
  %v422 = vunpack.c.h.b16 %v127
  %v423 = vunpack.c.l.b16 %v128
  %v424 = vunpack.c.h.b16 %v128
  %v425 = vunpack.c.l.b16 %v129
  %v426 = vunpack.c.h.b16 %v129
  %v427 = vunpack.c.l.b16 %v130
  %v428 = vunpack.c.h.b16 %v130
  %v429 = vunpack.c.l.b16 %v131
  %v430 = vunpack.c.h.b16 %v131
  %v431 = vunpack.c.l.b16 %v132
  %v432 = vunpack.c.h.b16 %v132
  %v433 = vunpack.c.l.b16 %v133
  %v434 = vunpack.c.h.b16 %v133
  %v435 = vunpack.c.l.b16 %v134
  %v436 = vunpack.c.h.b16 %v134
  %v437 = vunpack.c.l.b16 %v135
  %v438 = vunpack.c.h.b16 %v135
  %v439 = vunpack.c.l.b16 %v136
  %v440 = vunpack.c.h.b16 %v136
  %v441 = vpack.c.b16 %v283, %v281
  %v442 = vpack.c.b16 %v284, %v282
  %v443 = vpack.c.b16 %v287, %v285
  %v444 = vpack.c.b16 %v288, %v286
  %v445 = vpack.c.b16 %v291, %v289
  %v446 = vpack.c.b16 %v292, %v290
  %v447 = vpack.c.b16 %v295, %v293
  %v448 = vpack.c.b16 %v296, %v294
  %v449 = vpack.c.b16 %v299, %v297
  %v450 = vpack.c.b16 %v300, %v298
  %v451 = vpack.c.b16 %v303, %v301
  %v452 = vpack.c.b16 %v304, %v302
  %v453 = vpack.c.b16 %v307, %v305
  %v454 = vpack.c.b16 %v308, %v306
  %v455 = vpack.c.b16 %v311, %v309
  %v456 = vpack.c.b16 %v312, %v310
  %v457 = vpack.c.b16 %v315, %v313
  %v458 = vpack.c.b16 %v316, %v314
  %v459 = vpack.c.b16 %v319, %v317
  %v460 = vpack.c.b16 %v320, %v318
  %v461 = vpack.c.b16 %v323, %v321
  %v462 = vpack.c.b16 %v324, %v322
  %v463 = vpack.c.b16 %v327, %v325
  %v464 = vpack.c.b16 %v328, %v326
  %v465 = vpack.c.b16 %v331, %v329
  %v466 = vpack.c.b16 %v332, %v330
  %v467 = vpack.c.b16 %v335, %v333
  %v468 = vpack.c.b16 %v336, %v334
  %v469 = vpack.c.b16 %v339, %v337
  %v470 = vpack.c.b16 %v340, %v338
  %v471 = vpack.c.b16 %v343, %v341
  %v472 = vpack.c.b16 %v344, %v342
  %v473 = vpack.c.b16 %v347, %v345
  %v474 = vpack.c.b16 %v348, %v346
  %v475 = vpack.c.b16 %v351, %v349
  %v476 = vpack.c.b16 %v352, %v350
  %v477 = vpack.c.b16 %v355, %v353
  %v478 = vpack.c.b16 %v356, %v354
  %v479 = vpack.c.b16 %v359, %v357
  %v480 = vpack.c.b16 %v360, %v358
  %v481 = vpack.c.b16 %v363, %v361
  %v482 = vpack.c.b16 %v364, %v362
  %v483 = vpack.c.b16 %v367, %v365
  %v484 = vpack.c.b16 %v368, %v366
  %v485 = vpack.c.b16 %v371, %v369
  %v486 = vpack.c.b16 %v372, %v370
  %v487 = vpack.c.b16 %v375, %v373
  %v488 = vpack.c.b16 %v376, %v374
  %v489 = vpack.c.b16 %v379, %v377
  %v490 = vpack.c.b16 %v380, %v378
  %v491 = vpack.c.b16 %v383, %v381
  %v492 = vpack.c.b16 %v384, %v382
  %v493 = vpack.c.b16 %v387, %v385
  %v494 = vpack.c.b16 %v388, %v386
  %v495 = vpack.c.b16 %v391, %v389
  %v496 = vpack.c.b16 %v392, %v390
  %v497 = vpack.c.b16 %v395, %v393
  %v498 = vpack.c.b16 %v396, %v394
  %v499 = vpack.c.b16 %v399, %v397
  %v500 = vpack.c.b16 %v400, %v398
  %v501 = vpack.c.b16 %v403, %v401
  %v502 = vpack.c.b16 %v404, %v402
  %v503 = vpack.c.b16 %v407, %v405
  %v504 = vpack.c.b16 %v408, %v406
  %v505 = vpack.c.b16 %v411, %v409
  %v506 = vpack.c.b16 %v412, %v410
  %v507 = vpack.c.b16 %v415, %v413
  %v508 = vpack.c.b16 %v416, %v414
  %v509 = vpack.c.b16 %v419, %v417
  %v510 = vpack.c.b16 %v420, %v418
  %v511 = vpack.c.b16 %v423, %v421
  %v512 = vpack.c.b16 %v424, %v422
  %v513 = vpack.c.b16 %v427, %v425
  %v514 = vpack.c.b16 %v428, %v426
  %v515 = vpack.c.b16 %v431, %v429
  %v516 = vpack.c.b16 %v432, %v430
  %v517 = vpack.c.b16 %v435, %v433
  %v518 = vpack.c.b16 %v436, %v434
  %v519 = vpack.c.b16 %v439, %v437
  %v520 = vpack.c.b16 %v440, %v438
  %601 = vmatprep.subr.bf16.mxu0 %v442
  %602 = vmatpush1.bf16.msra.mxu0 %v441
  %603 = vmatprep.subr.bf16.mxu0 %v444
  %604 = vmatpush1.bf16.msra.mxu0 %v443
  %605 = vmatprep.subr.bf16.mxu0 %v446
  %606 = vmatpush1.bf16.msra.mxu0 %v445
  %607 = vmatprep.subr.bf16.mxu0 %v448
  %608 = vmatpush1.bf16.msra.mxu0 %v447
  %609 = vmatprep.subr.bf16.mxu0 %v450
  %610 = vmatpush1.bf16.msra.mxu0 %v449
  %611 = vmatprep.subr.bf16.mxu0 %v452
  %612 = vmatpush1.bf16.msra.mxu0 %v451
  %613 = vmatprep.subr.bf16.mxu0 %v454
  %614 = vmatpush1.bf16.msra.mxu0 %v453
  %615 = vmatprep.subr.bf16.mxu0 %v456
  %616 = vmatpush1.bf16.msra.mxu0 %v455
  %617 = vmatprep.subr.bf16.mxu0 %v458
  %618 = vmatpush1.bf16.msra.mxu0 %v457
  %619 = vmatprep.subr.bf16.mxu0 %v460
  %620 = vmatpush1.bf16.msra.mxu0 %v459
  %621 = vmatprep.subr.bf16.mxu0 %v462
  %622 = vmatpush1.bf16.msra.mxu0 %v461
  %623 = vmatprep.subr.bf16.mxu0 %v464
  %624 = vmatpush1.bf16.msra.mxu0 %v463
  %625 = vmatprep.subr.bf16.mxu0 %v466
  %626 = vmatpush1.bf16.msra.mxu0 %v465
  %627 = vmatprep.subr.bf16.mxu0 %v468
  %628 = vmatpush1.bf16.msra.mxu0 %v467
  %629 = vmatprep.subr.bf16.mxu0 %v470
  %630 = vmatpush1.bf16.msra.mxu0 %v469
  %631 = vmatprep.subr.bf16.mxu0 %v472
  %632 = vmatpush1.bf16.msra.mxu0 %v471
  %633 = vmatprep.mubr.bf16.mxu0 %v182
  %634 = vmatmul.mubr.bf16.gmra.mrb[0].mxu0 %v181
  %v635 = vpop.f32.mrb[0].mxu0
  %v636 = vadd.f32 %v142, %v635
  %v637 = vpop.f32.mrb[0].mxu0
  %v638 = vadd.f32 %v146, %v637
  %v639 = vpop.f32.mrb[0].mxu0
  %v640 = vadd.f32 %v142, %v639
  %v641 = vpop.f32.mrb[0].mxu0
  %v642 = vadd.f32 %v146, %v641
  %643 = vmatprep.mubr.bf16.mxu0 %v187
  %644 = vmatmul.mubr.bf16.gmra.mrb[0].mxu0 %v186
  %v645 = vpop.f32.mrb[0].mxu0
  %v646 = vadd.f32 %v142, %v645
  %v647 = vpop.f32.mrb[0].mxu0
  %v648 = vadd.f32 %v146, %v647
  %v649 = vpop.f32.mrb[0].mxu0
  %v650 = vadd.f32 %v142, %v649
  %v651 = vpop.f32.mrb[0].mxu0
  %v652 = vadd.f32 %v146, %v651
  %653 = vdwg.mxu0
  %654 = vmatprep.subr.bf16.mxu0 %v474
  %655 = vmatpush1.bf16.msra.mxu0 %v473
  %656 = vmatprep.subr.bf16.mxu0 %v476
  %657 = vmatpush1.bf16.msra.mxu0 %v475
  %658 = vmatprep.subr.bf16.mxu0 %v478
  %659 = vmatpush1.bf16.msra.mxu0 %v477
  %660 = vmatprep.subr.bf16.mxu0 %v480
  %661 = vmatpush1.bf16.msra.mxu0 %v479
  %662 = vmatprep.subr.bf16.mxu0 %v482
  %663 = vmatpush1.bf16.msra.mxu0 %v481
  %664 = vmatprep.subr.bf16.mxu0 %v484
  %665 = vmatpush1.bf16.msra.mxu0 %v483
  %666 = vmatprep.subr.bf16.mxu0 %v486
  %667 = vmatpush1.bf16.msra.mxu0 %v485
  %668 = vmatprep.subr.bf16.mxu0 %v488
  %669 = vmatpush1.bf16.msra.mxu0 %v487
  %670 = vmatprep.subr.bf16.mxu0 %v490
  %671 = vmatpush1.bf16.msra.mxu0 %v489
  %672 = vmatprep.subr.bf16.mxu0 %v492
  %673 = vmatpush1.bf16.msra.mxu0 %v491
  %674 = vmatprep.subr.bf16.mxu0 %v494
  %675 = vmatpush1.bf16.msra.mxu0 %v493
  %676 = vmatprep.subr.bf16.mxu0 %v496
  %677 = vmatpush1.bf16.msra.mxu0 %v495
  %678 = vmatprep.subr.bf16.mxu0 %v498
  %679 = vmatpush1.bf16.msra.mxu0 %v497
  %680 = vmatprep.subr.bf16.mxu0 %v500
  %681 = vmatpush1.bf16.msra.mxu0 %v499
  %682 = vmatprep.subr.bf16.mxu0 %v502
  %683 = vmatpush1.bf16.msra.mxu0 %v501
  %684 = vmatprep.subr.bf16.mxu0 %v504
  %685 = vmatpush1.bf16.msra.mxu0 %v503
  %686 = vmatprep.mubr.bf16.mxu0 %v184
  %687 = vmatmul.mubr.bf16.gmra.mrb[0].mxu0 %v183
  %v688 = vpop.f32.mrb[0].mxu0
  %v689 = vadd.f32 %v636, %v688
  %v690 = vpop.f32.mrb[0].mxu0
  %v691 = vadd.f32 %v638, %v690
  %v692 = vpop.f32.mrb[0].mxu0
  %v693 = vadd.f32 %v640, %v692
  %v694 = vpop.f32.mrb[0].mxu0
  %v695 = vadd.f32 %v642, %v694
  %696 = vmatprep.mubr.bf16.mxu0 %v189
  %697 = vmatmul.mubr.bf16.gmra.mrb[0].mxu0 %v188
  %v698 = vpop.f32.mrb[0].mxu0
  %v699 = vadd.f32 %v646, %v698
  %v700 = vpop.f32.mrb[0].mxu0
  %v701 = vadd.f32 %v648, %v700
  %v702 = vpop.f32.mrb[0].mxu0
  %v703 = vadd.f32 %v650, %v702
  %v704 = vpop.f32.mrb[0].mxu0
  %v705 = vadd.f32 %v652, %v704
  %706 = vdwg.mxu0
  %707 = vmatprep.subr.bf16.mxu0 %v506
  %708 = vmatpush1.bf16.msra.mxu0 %v505
  %709 = vmatprep.subr.bf16.mxu0 %v508
  %710 = vmatpush1.bf16.msra.mxu0 %v507
  %711 = vmatprep.subr.bf16.mxu0 %v510
  %712 = vmatpush1.bf16.msra.mxu0 %v509
  %713 = vmatprep.subr.bf16.mxu0 %v512
  %714 = vmatpush1.bf16.msra.mxu0 %v511
  %715 = vmatprep.subr.bf16.mxu0 %v514
  %716 = vmatpush1.bf16.msra.mxu0 %v513
  %717 = vmatprep.subr.bf16.mxu0 %v516
  %718 = vmatpush1.bf16.msra.mxu0 %v515
  %719 = vmatprep.subr.bf16.mxu0 %v518
  %720 = vmatpush1.bf16.msra.mxu0 %v517
  %721 = vmatprep.subr.bf16.mxu0 %v520
  %722 = vmatpush1.bf16.msra.mxu0 %v519
  %723 = vmatprep.subr.bf16.mxu0 0
  %724 = vmatpush1.bf16.msra.mxu0 0
  %725 = vmatprep.subr.bf16.mxu0 0
  %726 = vmatpush1.bf16.msra.mxu0 0
  %727 = vmatprep.subr.bf16.mxu0 0
  %728 = vmatpush1.bf16.msra.mxu0 0
  %729 = vmatprep.subr.bf16.mxu0 0
  %730 = vmatpush1.bf16.msra.mxu0 0
  %731 = vmatprep.subr.bf16.mxu0 0
  %732 = vmatpush1.bf16.msra.mxu0 0
  %733 = vmatprep.subr.bf16.mxu0 0
  %734 = vmatpush1.bf16.msra.mxu0 0
  %735 = vmatprep.subr.bf16.mxu0 0
  %736 = vmatpush1.bf16.msra.mxu0 0
  %737 = vmatprep.subr.bf16.mxu0 0
  %738 = vmatpush1.bf16.msra.mxu0 0
  %739 = vmatprep.mubr.bf16.mxu0 0
  %740 = vmatmul.mubr.bf16.gmra.mrb[0].mxu0 %v185
  %v741 = vpop.f32.mrb[0].mxu0
  %v742 = vadd.f32 %v689, %v741
  %v743 = vpop.f32.mrb[0].mxu0
  %v744 = vadd.f32 %v691, %v743
  %v745 = vpop.f32.mrb[0].mxu0
  %v746 = vadd.f32 %v693, %v745
  %v747 = vpop.f32.mrb[0].mxu0
  %v748 = vadd.f32 %v695, %v747
  %749 = vmatprep.mubr.bf16.mxu0 0
  %750 = vmatmul.mubr.bf16.gmra.mrb[0].mxu0 %v190
  %v751 = vpop.f32.mrb[0].mxu0
  %v752 = vadd.f32 %v699, %v751
  %v753 = vpop.f32.mrb[0].mxu0
  %v754 = vadd.f32 %v701, %v753
  %v755 = vpop.f32.mrb[0].mxu0
  %v756 = vadd.f32 %v703, %v755
  %v757 = vpop.f32.mrb[0].mxu0
  %v758 = vadd.f32 %v705, %v757
  %759 = vdwg.mxu0
  %v760 = vmax.f32 %v742, 0.0
  %v761 = vmax.f32 %v744, 0.0
  %v762 = vmax.f32 %v746, 0.0
  %v763 = vmax.f32 %v748, 0.0
  %v764 = vmax.f32 %v752, 0.0
  %v765 = vmax.f32 %v754, 0.0
  %v766 = vmax.f32 %v756, 0.0
  %v767 = vmax.f32 %v758, 0.0
  %v768 = vpack.c.bf16 %v762, %v760
  %v769 = vpack.c.bf16 %v763, %v761
  %v770 = vpack.c.bf16 %v766, %v764
  %v771 = vpack.c.bf16 %v767, %v765
  %v772 = vld [vmem:[%s3] sm:$0xff]
  %v773 = vld [vmem:[%s3 + $0x8] sm:$0xf]
  %v774 = vld [vmem:[%s3 + $0xc] sm:$0xff]
  %v775 = vld [vmem:[%s3 + $0x14] sm:$0xf]
  %v776 = vld [vmem:[%s3 + $0x18] sm:$0xff]
  %v777 = vld [vmem:[%s3 + $0x20] sm:$0xf]
  %v778 = vld [vmem:[%s3 + $0x24] sm:$0xff]
  %v779 = vld [vmem:[%s3 + $0x2c] sm:$0xf]
  %v780 = vld [vmem:[%s3 + $0x30] sm:$0xff]
  %v781 = vld [vmem:[%s3 + $0x38] sm:$0xf]
  %v782 = vld [vmem:[%s3 + $0x3c] sm:$0xff]
  %v783 = vld [vmem:[%s3 + $0x44] sm:$0xf]
  %v784 = vld [vmem:[%s3 + $0x48] sm:$0xff]
  %v785 = vld [vmem:[%s3 + $0x50] sm:$0xf]
  %v786 = vld [vmem:[%s3 + $0x54] sm:$0xff]
  %v787 = vld [vmem:[%s3 + $0x5c] sm:$0xf]
  %v788 = vld [vmem:[%s3 + $0x60] sm:$0xff]
  %v789 = vld [vmem:[%s3 + $0x68] sm:$0xf]
  %v790 = vld [vmem:[%s3 + $0x6c] sm:$0xff]
  %v791 = vld [vmem:[%s3 + $0x74] sm:$0xf]
  %v792 = vld [vmem:[%s3 + $0x78] sm:$0xff]
  %v793 = vld [vmem:[%s3 + $0x80] sm:$0xf]
  %v794 = vld [vmem:[%s3 + $0x84] sm:$0xff]
  %v795 = vld [vmem:[%s3 + $0x8c] sm:$0xf]
  %v796 = vld [vmem:[%s3 + $0x90] sm:$0xff]
  %v797 = vld [vmem:[%s3 + $0x98] sm:$0xf]
  %v798 = vld [vmem:[%s3 + $0x9c] sm:$0xff]
  %v799 = vld [vmem:[%s3 + $0xa4] sm:$0xf]
  %v800 = vld [vmem:[%s3 + $0xa8] sm:$0xff]
  %v801 = vld [vmem:[%s3 + $0xb0] sm:$0xf]
  %v802 = vld [vmem:[%s3 + $0xb4] sm:$0xff]
  %v803 = vld [vmem:[%s3 + $0xbc] sm:$0xf]
  %v804 = vld [vmem:[%s3 + $0xc0] sm:$0xff]
  %v805 = vld [vmem:[%s3 + $0xc8] sm:$0xf]
  %v806 = vld [vmem:[%s3 + $0xcc] sm:$0xff]
  %v807 = vld [vmem:[%s3 + $0xd4] sm:$0xf]
  %v808 = vld [vmem:[%s3 + $0xd8] sm:$0xff]
  %v809 = vld [vmem:[%s3 + $0xe0] sm:$0xf]
  %v810 = vld [vmem:[%s3 + $0xe4] sm:$0xff]
  %v811 = vld [vmem:[%s3 + $0xec] sm:$0xf]
  %v812 = vld [vmem:[%s3 + $0xf0] sm:$0xff]
  %v813 = vld [vmem:[%s3 + $0xf8] sm:$0xf]
  %v814 = vld [vmem:[%s3 + $0xfc] sm:$0xff]
  %v815 = vld [vmem:[%s3 + $0x104] sm:$0xf]
  %v816 = vld [vmem:[%s3 + $0x108] sm:$0xff]
  %v817 = vld [vmem:[%s3 + $0x110] sm:$0xf]
  %v818 = vld [vmem:[%s3 + $0x114] sm:$0xff]
  %v819 = vld [vmem:[%s3 + $0x11c] sm:$0xf]
  %v820 = vld [vmem:[%s3 + $0x120] sm:$0xff]
  %v821 = vld [vmem:[%s3 + $0x128] sm:$0xf]
  %v822 = vld [vmem:[%s3 + $0x12c] sm:$0xff]
  %v823 = vld [vmem:[%s3 + $0x134] sm:$0xf]
  %v824 = vld [vmem:[%s3 + $0x138] sm:$0xff]
  %v825 = vld [vmem:[%s3 + $0x140] sm:$0xf]
  %v826 = vld [vmem:[%s3 + $0x144] sm:$0xff]
  %v827 = vld [vmem:[%s3 + $0x14c] sm:$0xf]
  %v828 = vld [vmem:[%s3 + $0x150] sm:$0xff]
  %v829 = vld [vmem:[%s3 + $0x158] sm:$0xf]
  %v830 = vld [vmem:[%s3 + $0x15c] sm:$0xff]
  %v831 = vld [vmem:[%s3 + $0x164] sm:$0xf]
  %v832 = vld [vmem:[%s3 + $0x168] sm:$0xff]
  %v833 = vld [vmem:[%s3 + $0x170] sm:$0xf]
  %v834 = vld [vmem:[%s3 + $0x174] sm:$0xff]
  %v835 = vld [vmem:[%s3 + $0x17c] sm:$0xf]
  %v900 = vunpack.c.l.b16 %v772
  %v901 = vunpack.c.h.b16 %v772
  %v902 = vunpack.c.l.b16 %v773
  %v903 = vunpack.c.l.b16 %v774
  %v904 = vunpack.c.h.b16 %v774
  %v905 = vunpack.c.l.b16 %v775
  %v906 = vunpack.c.l.b16 %v776
  %v907 = vunpack.c.h.b16 %v776
  %v908 = vunpack.c.l.b16 %v777
  %v909 = vunpack.c.l.b16 %v778
  %v910 = vunpack.c.h.b16 %v778
  %v911 = vunpack.c.l.b16 %v779
  %v912 = vunpack.c.l.b16 %v780
  %v913 = vunpack.c.h.b16 %v780
  %v914 = vunpack.c.l.b16 %v781
  %v915 = vunpack.c.l.b16 %v782
  %v916 = vunpack.c.h.b16 %v782
  %v917 = vunpack.c.l.b16 %v783
  %v918 = vunpack.c.l.b16 %v784
  %v919 = vunpack.c.h.b16 %v784
  %v920 = vunpack.c.l.b16 %v785
  %v921 = vunpack.c.l.b16 %v786
  %v922 = vunpack.c.h.b16 %v786
  %v923 = vunpack.c.l.b16 %v787
  %v924 = vunpack.c.l.b16 %v788
  %v925 = vunpack.c.h.b16 %v788
  %v926 = vunpack.c.l.b16 %v789
  %v927 = vunpack.c.l.b16 %v790
  %v928 = vunpack.c.h.b16 %v790
  %v929 = vunpack.c.l.b16 %v791
  %v930 = vunpack.c.l.b16 %v792
  %v931 = vunpack.c.h.b16 %v792
  %v932 = vunpack.c.l.b16 %v793
  %v933 = vunpack.c.l.b16 %v794
  %v934 = vunpack.c.h.b16 %v794
  %v935 = vunpack.c.l.b16 %v795
  %v936 = vunpack.c.l.b16 %v796
  %v937 = vunpack.c.h.b16 %v796
  %v938 = vunpack.c.l.b16 %v797
  %v939 = vunpack.c.l.b16 %v798
  %v940 = vunpack.c.h.b16 %v798
  %v941 = vunpack.c.l.b16 %v799
  %v942 = vunpack.c.l.b16 %v800
  %v943 = vunpack.c.h.b16 %v800
  %v944 = vunpack.c.l.b16 %v801
  %v945 = vunpack.c.l.b16 %v802
  %v946 = vunpack.c.h.b16 %v802
  %v947 = vunpack.c.l.b16 %v803
  %v948 = vunpack.c.l.b16 %v804
  %v949 = vunpack.c.h.b16 %v804
  %v950 = vunpack.c.l.b16 %v805
  %v951 = vunpack.c.l.b16 %v806
  %v952 = vunpack.c.h.b16 %v806
  %v953 = vunpack.c.l.b16 %v807
  %v954 = vunpack.c.l.b16 %v808
  %v955 = vunpack.c.h.b16 %v808
  %v956 = vunpack.c.l.b16 %v809
  %v957 = vunpack.c.l.b16 %v810
  %v958 = vunpack.c.h.b16 %v810
  %v959 = vunpack.c.l.b16 %v811
  %v960 = vunpack.c.l.b16 %v812
  %v961 = vunpack.c.h.b16 %v812
  %v962 = vunpack.c.l.b16 %v813
  %v963 = vunpack.c.l.b16 %v814
  %v964 = vunpack.c.h.b16 %v814
  %v965 = vunpack.c.l.b16 %v815
  %v966 = vunpack.c.l.b16 %v816
  %v967 = vunpack.c.h.b16 %v816
  %v968 = vunpack.c.l.b16 %v817
  %v969 = vunpack.c.l.b16 %v818
  %v970 = vunpack.c.h.b16 %v818
  %v971 = vunpack.c.l.b16 %v819
  %v972 = vunpack.c.l.b16 %v820
  %v973 = vunpack.c.h.b16 %v820
  %v974 = vunpack.c.l.b16 %v821
  %v975 = vunpack.c.l.b16 %v822
  %v976 = vunpack.c.h.b16 %v822
  %v977 = vunpack.c.l.b16 %v823
  %v978 = vunpack.c.l.b16 %v824
  %v979 = vunpack.c.h.b16 %v824
  %v980 = vunpack.c.l.b16 %v825
  %v981 = vunpack.c.l.b16 %v826
  %v982 = vunpack.c.h.b16 %v826
  %v983 = vunpack.c.l.b16 %v827
  %v984 = vunpack.c.l.b16 %v828
  %v985 = vunpack.c.h.b16 %v828
  %v986 = vunpack.c.l.b16 %v829
  %v987 = vunpack.c.l.b16 %v830
  %v988 = vunpack.c.h.b16 %v830
  %v989 = vunpack.c.l.b16 %v831
  %v990 = vunpack.c.l.b16 %v832
  %v991 = vunpack.c.h.b16 %v832
  %v992 = vunpack.c.l.b16 %v833
  %v993 = vunpack.c.l.b16 %v834
  %v994 = vunpack.c.h.b16 %v834
  %v995 = vunpack.c.l.b16 %v835
  %v996 = vpack.c.b16 %v903, %v900
  %v997 = vpack.c.b16 %v904, %v901
  %v998 = vpack.c.b16 %v905, %v902
  %v999 = vpack.c.b16 %v909, %v906
  %v1000 = vpack.c.b16 %v910, %v907
  %v1001 = vpack.c.b16 %v911, %v908
  %v1002 = vpack.c.b16 %v915, %v912
  %v1003 = vpack.c.b16 %v916, %v913
  %v1004 = vpack.c.b16 %v917, %v914
  %v1005 = vpack.c.b16 %v921, %v918
  %v1006 = vpack.c.b16 %v922, %v919
  %v1007 = vpack.c.b16 %v923, %v920
  %v1008 = vpack.c.b16 %v927, %v924
  %v1009 = vpack.c.b16 %v928, %v925
  %v1010 = vpack.c.b16 %v929, %v926
  %v1011 = vpack.c.b16 %v933, %v930
  %v1012 = vpack.c.b16 %v934, %v931
  %v1013 = vpack.c.b16 %v935, %v932
  %v1014 = vpack.c.b16 %v939, %v936
  %v1015 = vpack.c.b16 %v940, %v937
  %v1016 = vpack.c.b16 %v941, %v938
  %v1017 = vpack.c.b16 %v945, %v942
  %v1018 = vpack.c.b16 %v946, %v943
  %v1019 = vpack.c.b16 %v947, %v944
  %v1020 = vpack.c.b16 %v951, %v948
  %v1021 = vpack.c.b16 %v952, %v949
  %v1022 = vpack.c.b16 %v953, %v950
  %v1023 = vpack.c.b16 %v957, %v954
  %v1024 = vpack.c.b16 %v958, %v955
  %v1025 = vpack.c.b16 %v959, %v956
  %v1026 = vpack.c.b16 %v963, %v960
  %v1027 = vpack.c.b16 %v964, %v961
  %v1028 = vpack.c.b16 %v965, %v962
  %v1029 = vpack.c.b16 %v969, %v966
  %v1030 = vpack.c.b16 %v970, %v967
  %v1031 = vpack.c.b16 %v971, %v968
  %v1032 = vpack.c.b16 %v975, %v972
  %v1033 = vpack.c.b16 %v976, %v973
  %v1034 = vpack.c.b16 %v977, %v974
  %v1035 = vpack.c.b16 %v981, %v978
  %v1036 = vpack.c.b16 %v982, %v979
  %v1037 = vpack.c.b16 %v983, %v980
  %v1038 = vpack.c.b16 %v987, %v984
  %v1039 = vpack.c.b16 %v988, %v985
  %v1040 = vpack.c.b16 %v989, %v986
  %v1041 = vpack.c.b16 %v993, %v990
  %v1042 = vpack.c.b16 %v994, %v991
  %v1043 = vpack.c.b16 %v995, %v992
  %1092 = vmatprep.subr.bf16.mxu0 %v997
  %1093 = vmatpush1.bf16.msra.mxu0 %v996
  %1094 = vmatprep.subr.bf16.mxu0 %v1000
  %1095 = vmatpush1.bf16.msra.mxu0 %v999
  %1096 = vmatprep.subr.bf16.mxu0 %v1003
  %1097 = vmatpush1.bf16.msra.mxu0 %v1002
  %1098 = vmatprep.subr.bf16.mxu0 %v1006
  %1099 = vmatpush1.bf16.msra.mxu0 %v1005
  %1100 = vmatprep.subr.bf16.mxu0 %v1009
  %1101 = vmatpush1.bf16.msra.mxu0 %v1008
  %1102 = vmatprep.subr.bf16.mxu0 %v1012
  %1103 = vmatpush1.bf16.msra.mxu0 %v1011
  %1104 = vmatprep.subr.bf16.mxu0 %v1015
  %1105 = vmatpush1.bf16.msra.mxu0 %v1014
  %1106 = vmatprep.subr.bf16.mxu0 %v1018
  %1107 = vmatpush1.bf16.msra.mxu0 %v1017
  %1108 = vmatprep.subr.bf16.mxu0 %v1021
  %1109 = vmatpush1.bf16.msra.mxu0 %v1020
  %1110 = vmatprep.subr.bf16.mxu0 %v1024
  %1111 = vmatpush1.bf16.msra.mxu0 %v1023
  %1112 = vmatprep.subr.bf16.mxu0 %v1027
  %1113 = vmatpush1.bf16.msra.mxu0 %v1026
  %1114 = vmatprep.subr.bf16.mxu0 %v1030
  %1115 = vmatpush1.bf16.msra.mxu0 %v1029
  %1116 = vmatprep.subr.bf16.mxu0 %v1033
  %1117 = vmatpush1.bf16.msra.mxu0 %v1032
  %1118 = vmatprep.subr.bf16.mxu0 %v1036
  %1119 = vmatpush1.bf16.msra.mxu0 %v1035
  %1120 = vmatprep.subr.bf16.mxu0 %v1039
  %1121 = vmatpush1.bf16.msra.mxu0 %v1038
  %1122 = vmatprep.subr.bf16.mxu0 %v1042
  %1123 = vmatpush1.bf16.msra.mxu0 %v1041
  %1124 = vmatprep.mubr.bf16.mxu0 %v769
  %1125 = vmatmul.mubr.bf16.gmra.mrb[0].mxu0 %v768
  %v1126 = vpop.f32.mrb[0].mxu0
  %v1127 = vadd.f32 0.0, %v1126
  %v1128 = vpop.f32.mrb[0].mxu0
  %v1129 = vadd.f32 0.0, %v1128
  %v1130 = vpop.f32.mrb[0].mxu0
  %v1131 = vadd.f32 0.0, %v1130
  %v1132 = vpop.f32.mrb[0].mxu0
  %v1133 = vadd.f32 0.0, %v1132
  %1134 = vmatprep.mubr.bf16.mxu0 %v771
  %1135 = vmatmul.mubr.bf16.gmra.mrb[0].mxu0 %v770
  %v1136 = vpop.f32.mrb[0].mxu0
  %v1137 = vadd.f32 0.0, %v1136
  %v1138 = vpop.f32.mrb[0].mxu0
  %v1139 = vadd.f32 0.0, %v1138
  %v1140 = vpop.f32.mrb[0].mxu0
  %v1141 = vadd.f32 0.0, %v1140
  %v1142 = vpop.f32.mrb[0].mxu0
  %v1143 = vadd.f32 0.0, %v1142
  %1144 = vdwg.mxu0
  %1145 = vmatprep.subr.bf16.mxu0 0
  %1146 = vmatpush1.bf16.msra.mxu0 %v998
  %1147 = vmatprep.subr.bf16.mxu0 0
  %1148 = vmatpush1.bf16.msra.mxu0 %v1001
  %1149 = vmatprep.subr.bf16.mxu0 0
  %1150 = vmatpush1.bf16.msra.mxu0 %v1004
  %1151 = vmatprep.subr.bf16.mxu0 0
  %1152 = vmatpush1.bf16.msra.mxu0 %v1007
  %1153 = vmatprep.subr.bf16.mxu0 0
  %1154 = vmatpush1.bf16.msra.mxu0 %v1010
  %1155 = vmatprep.subr.bf16.mxu0 0
  %1156 = vmatpush1.bf16.msra.mxu0 %v1013
  %1157 = vmatprep.subr.bf16.mxu0 0
  %1158 = vmatpush1.bf16.msra.mxu0 %v1016
  %1159 = vmatprep.subr.bf16.mxu0 0
  %1160 = vmatpush1.bf16.msra.mxu0 %v1019
  %1161 = vmatprep.subr.bf16.mxu0 0
  %1162 = vmatpush1.bf16.msra.mxu0 %v1022
  %1163 = vmatprep.subr.bf16.mxu0 0
  %1164 = vmatpush1.bf16.msra.mxu0 %v1025
  %1165 = vmatprep.subr.bf16.mxu0 0
  %1166 = vmatpush1.bf16.msra.mxu0 %v1028
  %1167 = vmatprep.subr.bf16.mxu0 0
  %1168 = vmatpush1.bf16.msra.mxu0 %v1031
  %1169 = vmatprep.subr.bf16.mxu0 0
  %1170 = vmatpush1.bf16.msra.mxu0 %v1034
  %1171 = vmatprep.subr.bf16.mxu0 0
  %1172 = vmatpush1.bf16.msra.mxu0 %v1037
  %1173 = vmatprep.subr.bf16.mxu0 0
  %1174 = vmatpush1.bf16.msra.mxu0 %v1040
  %1175 = vmatprep.subr.bf16.mxu0 0
  %1176 = vmatpush1.bf16.msra.mxu0 %v1043
  %1177 = vmatprep.mubr.bf16.mxu0 %v769
  %1178 = vmatmul.mubr.bf16.gmra.mrb[0].mxu0 %v768
  %v1179 = vpop.f32.mrb[0].mxu0
  %v1180 = vadd.f32 0.0, %v1179
  %v1181 = vpop.f32.mrb[0].mxu0
  %v1182 = vpop.f32.mrb[0].mxu0
  %v1183 = vadd.f32 0.0, %v1182
  %v1184 = vpop.f32.mrb[0].mxu0
  %1185 = vmatprep.mubr.bf16.mxu0 %v771
  %1186 = vmatmul.mubr.bf16.gmra.mrb[0].mxu0 %v770
  %v1187 = vpop.f32.mrb[0].mxu0
  %v1188 = vadd.f32 0.0, %v1187
  %v1189 = vpop.f32.mrb[0].mxu0
  %v1190 = vpop.f32.mrb[0].mxu0
  %v1191 = vadd.f32 0.0, %v1190
  %v1192 = vpop.f32.mrb[0].mxu0
  %1193 = vdwg.mxu0
  %v1194 = vmax.f32 %v1127, %v1129
  %v1195 = vmax.f32 %v1131, %v1133
  %v1196 = vmax.f32 %v1137, %v1139
  %v1197 = vmax.f32 %v1141, %v1143
  %v1198 = vmax.f32 %v1194, %v1180
  %v1199 = vmax.f32 %v1195, %v1183
  %v1200 = vmax.f32 %v1196, %v1188
  %v1201 = vmax.f32 %v1197, %v1191
  %v1202 = vpack.c.bf16 %v1199, %v1198
  %v1203 = vpack.c.bf16 %v1201, %v1200
  %v1204 = vld [vmem:[%s4] sm:$0xf]
  %v1205 = vld [vmem:[%s4 + $0x4] sm:$0xf]
  %v1206 = vld [vmem:[%s4 + $0x8] sm:$0xf]
  %v1207 = vld [vmem:[%s4 + $0xc] sm:$0xf]
  %v1208 = vld [vmem:[%s4 + $0x10] sm:$0xf]
  %v1209 = vld [vmem:[%s4 + $0x14] sm:$0xf]
  %v1216 = vunpack.c.l.b16 %v1204
  %v1217 = vunpack.c.l.b16 %v1205
  %v1218 = vunpack.c.l.b16 %v1206
  %v1219 = vunpack.c.l.b16 %v1207
  %v1220 = vunpack.c.l.b16 %v1208
  %v1221 = vunpack.c.l.b16 %v1209
  %v1222 = vpack.c.b16 %v1217, %v1216
  %v1223 = vpack.c.b16 %v1219, %v1218
  %v1224 = vpack.c.b16 %v1221, %v1220
  %vm1225 = vcmask 261120
  %v1227 = vsel %vm1225, %v1222, 0
  %v1230 = vsel %vm1225, %v1223, 0
  %v1233 = vsel %vm1225, %v1224, 0
  %1235 = vmatprep.subr.bf16.mxu0 0
  %1236 = vmatpush1.bf16.msra.mxu0 %v1202
  %1237 = vmatprep.subr.bf16.mxu0 0
  %1238 = vmatpush1.bf16.msra.mxu0 %v1203
  %1239 = vmatprep.subr.bf16.mxu0 0
  %1240 = vmatpush1.bf16.msra.mxu0 0
  %1241 = vmatprep.subr.bf16.mxu0 0
  %1242 = vmatpush1.bf16.msra.mxu0 0
  %1243 = vmatprep.subr.bf16.mxu0 0
  %1244 = vmatpush1.bf16.msra.mxu0 0
  %1245 = vmatprep.subr.bf16.mxu0 0
  %1246 = vmatpush1.bf16.msra.mxu0 0
  %1247 = vmatprep.subr.bf16.mxu0 0
  %1248 = vmatpush1.bf16.msra.mxu0 0
  %1249 = vmatprep.subr.bf16.mxu0 0
  %1250 = vmatpush1.bf16.msra.mxu0 0
  %1251 = vmatprep.subr.bf16.mxu0 0
  %1252 = vmatpush1.bf16.msra.mxu0 0
  %1253 = vmatprep.subr.bf16.mxu0 0
  %1254 = vmatpush1.bf16.msra.mxu0 0
  %1255 = vmatprep.subr.bf16.mxu0 0
  %1256 = vmatpush1.bf16.msra.mxu0 0
  %1257 = vmatprep.subr.bf16.mxu0 0
  %1258 = vmatpush1.bf16.msra.mxu0 0
  %1259 = vmatprep.subr.bf16.mxu0 0
  %1260 = vmatpush1.bf16.msra.mxu0 0
  %1261 = vmatprep.subr.bf16.mxu0 0
  %1262 = vmatpush1.bf16.msra.mxu0 0
  %1263 = vmatprep.subr.bf16.mxu0 0
  %1264 = vmatpush1.bf16.msra.mxu0 0
  %1265 = vmatprep.subr.bf16.mxu0 0
  %1266 = vmatpush1.bf16.msra.mxu0 0
  %1267 = vmatprep.mubr.bf16.mxu0 0
  %1268 = vmatmul.mubr.bf16.gmra.mrb[0].mxu0 %v1227
  %v1269 = vpop.f32.mrb[0].mxu0
  %v1270 = vadd.f32 0.0, %v1269
  %v1271 = vpop.f32.mrb[0].mxu0
  %v1272 = vpop.f32.mrb[0].mxu0
  %v1273 = vadd.f32 0.0, %v1272
  %v1274 = vpop.f32.mrb[0].mxu0
  %1275 = vmatprep.mubr.bf16.mxu0 0
  %1276 = vmatmul.mubr.bf16.gmra.mrb[0].mxu0 %v1230
  %v1277 = vpop.f32.mrb[0].mxu0
  %v1278 = vadd.f32 0.0, %v1277
  %v1279 = vpop.f32.mrb[0].mxu0
  %v1280 = vpop.f32.mrb[0].mxu0
  %v1281 = vadd.f32 0.0, %v1280
  %v1282 = vpop.f32.mrb[0].mxu0
  %1283 = vmatprep.mubr.bf16.mxu0 0
  %1284 = vmatmul.mubr.bf16.gmra.mrb[0].mxu0 %v1233
  %v1285 = vpop.f32.mrb[0].mxu0
  %v1286 = vadd.f32 0.0, %v1285
  %v1287 = vpop.f32.mrb[0].mxu0
  %v1288 = vpop.f32.mrb[0].mxu0
  %v1289 = vadd.f32 0.0, %v1288
  %v1290 = vpop.f32.mrb[0].mxu0
  %1291 = vdwg.mxu0
  %v1292 = vmax.f32 %v1270, %v1278
  %v1293 = vmax.f32 %v1273, %v1281
  %v1294 = vmax.f32 %v1292, %v1286
  %v1295 = vmax.f32 %v1293, %v1289
  %v1296 = vpack.c.bf16 %v1295, %v1294
  %v1297 = vld [vmem:[%s5] sm:$0xf]
  %vm1298 = vcmask 130048
  %v1300 = vsel %vm1298, %v1297, 0
  %1302 = vmatprep.subr.bf16.mxu0 0
  %1303 = vmatpush1.bf16.msra.mxu0 %v1296
  %1304 = vmatprep.subr.bf16.mxu0 0
  %1305 = vmatpush1.bf16.msra.mxu0 0
  %1306 = vmatprep.subr.bf16.mxu0 0
  %1307 = vmatpush1.bf16.msra.mxu0 0
  %1308 = vmatprep.subr.bf16.mxu0 0
  %1309 = vmatpush1.bf16.msra.mxu0 0
  %1310 = vmatprep.subr.bf16.mxu0 0
  %1311 = vmatpush1.bf16.msra.mxu0 0
  %1312 = vmatprep.subr.bf16.mxu0 0
  %1313 = vmatpush1.bf16.msra.mxu0 0
  %1314 = vmatprep.subr.bf16.mxu0 0
  %1315 = vmatpush1.bf16.msra.mxu0 0
  %1316 = vmatprep.subr.bf16.mxu0 0
  %1317 = vmatpush1.bf16.msra.mxu0 0
  %1318 = vmatprep.subr.bf16.mxu0 0
  %1319 = vmatpush1.bf16.msra.mxu0 0
  %1320 = vmatprep.subr.bf16.mxu0 0
  %1321 = vmatpush1.bf16.msra.mxu0 0
  %1322 = vmatprep.subr.bf16.mxu0 0
  %1323 = vmatpush1.bf16.msra.mxu0 0
  %1324 = vmatprep.subr.bf16.mxu0 0
  %1325 = vmatpush1.bf16.msra.mxu0 0
  %1326 = vmatprep.subr.bf16.mxu0 0
  %1327 = vmatpush1.bf16.msra.mxu0 0
  %1328 = vmatprep.subr.bf16.mxu0 0
  %1329 = vmatpush1.bf16.msra.mxu0 0
  %1330 = vmatprep.subr.bf16.mxu0 0
  %1331 = vmatpush1.bf16.msra.mxu0 0
  %1332 = vmatprep.subr.bf16.mxu0 0
  %1333 = vmatpush1.bf16.msra.mxu0 0
  %1334 = vmatprep.mubr.bf16.mxu0 0
  %1335 = vmatmul.mubr.bf16.gmra.mrb[0].mxu0 %v1300
  %v1336 = vpop.f32.mrb[0].mxu0
  %v1337 = vadd.f32 0.0, %v1336
  %v1338 = vpop.f32.mrb[0].mxu0
  %v1339 = vpop.f32.mrb[0].mxu0
  %v1340 = vpop.f32.mrb[0].mxu0
  %1341 = vdwg.mxu0
  %s1342 = scalar_lea.vmem %s5, 4
  %v1343 = vld [vmem:[%s1342] sm:$0xf]
  %v1345 = vsel %vm1298, %v1343, 0
  %1347 = vmatprep.subr.bf16.mxu0 0
  %1348 = vmatpush1.bf16.msra.mxu0 %v1296
  %1349 = vmatprep.subr.bf16.mxu0 0
  %1350 = vmatpush1.bf16.msra.mxu0 0
  %1351 = vmatprep.subr.bf16.mxu0 0
  %1352 = vmatpush1.bf16.msra.mxu0 0
  %1353 = vmatprep.subr.bf16.mxu0 0
  %1354 = vmatpush1.bf16.msra.mxu0 0
  %1355 = vmatprep.subr.bf16.mxu0 0
  %1356 = vmatpush1.bf16.msra.mxu0 0
  %1357 = vmatprep.subr.bf16.mxu0 0
  %1358 = vmatpush1.bf16.msra.mxu0 0
  %1359 = vmatprep.subr.bf16.mxu0 0
  %1360 = vmatpush1.bf16.msra.mxu0 0
  %1361 = vmatprep.subr.bf16.mxu0 0
  %1362 = vmatpush1.bf16.msra.mxu0 0
  %1363 = vmatprep.subr.bf16.mxu0 0
  %1364 = vmatpush1.bf16.msra.mxu0 0
  %1365 = vmatprep.subr.bf16.mxu0 0
  %1366 = vmatpush1.bf16.msra.mxu0 0
  %1367 = vmatprep.subr.bf16.mxu0 0
  %1368 = vmatpush1.bf16.msra.mxu0 0
  %1369 = vmatprep.subr.bf16.mxu0 0
  %1370 = vmatpush1.bf16.msra.mxu0 0
  %1371 = vmatprep.subr.bf16.mxu0 0
  %1372 = vmatpush1.bf16.msra.mxu0 0
  %1373 = vmatprep.subr.bf16.mxu0 0
  %1374 = vmatpush1.bf16.msra.mxu0 0
  %1375 = vmatprep.subr.bf16.mxu0 0
  %1376 = vmatpush1.bf16.msra.mxu0 0
  %1377 = vmatprep.subr.bf16.mxu0 0
  %1378 = vmatpush1.bf16.msra.mxu0 0
  %1379 = vmatprep.mubr.bf16.mxu0 0
  %1380 = vmatmul.mubr.bf16.gmra.mrb[0].mxu0 %v1345
  %v1381 = vpop.f32.mrb[0].mxu0
  %v1382 = vadd.f32 0.0, %v1381
  %v1383 = vpop.f32.mrb[0].mxu0
  %v1384 = vpop.f32.mrb[0].mxu0
  %v1385 = vpop.f32.mrb[0].mxu0
  %1386 = vdwg.mxu0
  %s1387 = scalar_lea.vmem %s5, 8
  %v1388 = vld [vmem:[%s1387] sm:$0xf]
  %v1390 = vsel %vm1298, %v1388, 0
  %1392 = vmatprep.subr.bf16.mxu0 0
  %1393 = vmatpush1.bf16.msra.mxu0 %v1296
  %1394 = vmatprep.subr.bf16.mxu0 0
  %1395 = vmatpush1.bf16.msra.mxu0 0
  %1396 = vmatprep.subr.bf16.mxu0 0
  %1397 = vmatpush1.bf16.msra.mxu0 0
  %1398 = vmatprep.subr.bf16.mxu0 0
  %1399 = vmatpush1.bf16.msra.mxu0 0
  %1400 = vmatprep.subr.bf16.mxu0 0
  %1401 = vmatpush1.bf16.msra.mxu0 0
  %1402 = vmatprep.subr.bf16.mxu0 0
  %1403 = vmatpush1.bf16.msra.mxu0 0
  %1404 = vmatprep.subr.bf16.mxu0 0
  %1405 = vmatpush1.bf16.msra.mxu0 0
  %1406 = vmatprep.subr.bf16.mxu0 0
  %1407 = vmatpush1.bf16.msra.mxu0 0
  %1408 = vmatprep.subr.bf16.mxu0 0
  %1409 = vmatpush1.bf16.msra.mxu0 0
  %1410 = vmatprep.subr.bf16.mxu0 0
  %1411 = vmatpush1.bf16.msra.mxu0 0
  %1412 = vmatprep.subr.bf16.mxu0 0
  %1413 = vmatpush1.bf16.msra.mxu0 0
  %1414 = vmatprep.subr.bf16.mxu0 0
  %1415 = vmatpush1.bf16.msra.mxu0 0
  %1416 = vmatprep.subr.bf16.mxu0 0
  %1417 = vmatpush1.bf16.msra.mxu0 0
  %1418 = vmatprep.subr.bf16.mxu0 0
  %1419 = vmatpush1.bf16.msra.mxu0 0
  %1420 = vmatprep.subr.bf16.mxu0 0
  %1421 = vmatpush1.bf16.msra.mxu0 0
  %1422 = vmatprep.subr.bf16.mxu0 0
  %1423 = vmatpush1.bf16.msra.mxu0 0
  %1424 = vmatprep.mubr.bf16.mxu0 0
  %1425 = vmatmul.mubr.bf16.gmra.mrb[0].mxu0 %v1390
  %v1426 = vpop.f32.mrb[0].mxu0
  %v1427 = vadd.f32 0.0, %v1426
  %v1428 = vpop.f32.mrb[0].mxu0
  %v1429 = vpop.f32.mrb[0].mxu0
  %v1430 = vpop.f32.mrb[0].mxu0
  %1431 = vdwg.mxu0
  %s1432 = scalar_lea.vmem %s5, 12
  %v1433 = vld [vmem:[%s1432] sm:$0xf]
  %v1435 = vsel %vm1298, %v1433, 0
  %1437 = vmatprep.subr.bf16.mxu0 0
  %1438 = vmatpush1.bf16.msra.mxu0 %v1296
  %1439 = vmatprep.subr.bf16.mxu0 0
  %1440 = vmatpush1.bf16.msra.mxu0 0
  %1441 = vmatprep.subr.bf16.mxu0 0
  %1442 = vmatpush1.bf16.msra.mxu0 0
  %1443 = vmatprep.subr.bf16.mxu0 0
  %1444 = vmatpush1.bf16.msra.mxu0 0
  %1445 = vmatprep.subr.bf16.mxu0 0
  %1446 = vmatpush1.bf16.msra.mxu0 0
  %1447 = vmatprep.subr.bf16.mxu0 0
  %1448 = vmatpush1.bf16.msra.mxu0 0
  %1449 = vmatprep.subr.bf16.mxu0 0
  %1450 = vmatpush1.bf16.msra.mxu0 0
  %1451 = vmatprep.subr.bf16.mxu0 0
  %1452 = vmatpush1.bf16.msra.mxu0 0
  %1453 = vmatprep.subr.bf16.mxu0 0
  %1454 = vmatpush1.bf16.msra.mxu0 0
  %1455 = vmatprep.subr.bf16.mxu0 0
  %1456 = vmatpush1.bf16.msra.mxu0 0
  %1457 = vmatprep.subr.bf16.mxu0 0
  %1458 = vmatpush1.bf16.msra.mxu0 0
  %1459 = vmatprep.subr.bf16.mxu0 0
  %1460 = vmatpush1.bf16.msra.mxu0 0
  %1461 = vmatprep.subr.bf16.mxu0 0
  %1462 = vmatpush1.bf16.msra.mxu0 0
  %1463 = vmatprep.subr.bf16.mxu0 0
  %1464 = vmatpush1.bf16.msra.mxu0 0
  %1465 = vmatprep.subr.bf16.mxu0 0
  %1466 = vmatpush1.bf16.msra.mxu0 0
  %1467 = vmatprep.subr.bf16.mxu0 0
  %1468 = vmatpush1.bf16.msra.mxu0 0
  %1469 = vmatprep.mubr.bf16.mxu0 0
  %1470 = vmatmul.mubr.bf16.gmra.mrb[0].mxu0 %v1435
  %v1471 = vpop.f32.mrb[0].mxu0
  %v1472 = vadd.f32 0.0, %v1471
  %v1473 = vpop.f32.mrb[0].mxu0
  %v1474 = vpop.f32.mrb[0].mxu0
  %v1475 = vpop.f32.mrb[0].mxu0
  %1476 = vdwg.mxu0
  %s1477 = scalar_lea.vmem %s5, 16
  %v1478 = vld [vmem:[%s1477] sm:$0xf]
  %v1480 = vsel %vm1298, %v1478, 0
  %1482 = vmatprep.subr.bf16.mxu0 0
  %1483 = vmatpush1.bf16.msra.mxu0 %v1296
  %1484 = vmatprep.subr.bf16.mxu0 0
  %1485 = vmatpush1.bf16.msra.mxu0 0
  %1486 = vmatprep.subr.bf16.mxu0 0
  %1487 = vmatpush1.bf16.msra.mxu0 0
  %1488 = vmatprep.subr.bf16.mxu0 0
  %1489 = vmatpush1.bf16.msra.mxu0 0
  %1490 = vmatprep.subr.bf16.mxu0 0
  %1491 = vmatpush1.bf16.msra.mxu0 0
  %1492 = vmatprep.subr.bf16.mxu0 0
  %1493 = vmatpush1.bf16.msra.mxu0 0
  %1494 = vmatprep.subr.bf16.mxu0 0
  %1495 = vmatpush1.bf16.msra.mxu0 0
  %1496 = vmatprep.subr.bf16.mxu0 0
  %1497 = vmatpush1.bf16.msra.mxu0 0
  %1498 = vmatprep.subr.bf16.mxu0 0
  %1499 = vmatpush1.bf16.msra.mxu0 0
  %1500 = vmatprep.subr.bf16.mxu0 0
  %1501 = vmatpush1.bf16.msra.mxu0 0
  %1502 = vmatprep.subr.bf16.mxu0 0
  %1503 = vmatpush1.bf16.msra.mxu0 0
  %1504 = vmatprep.subr.bf16.mxu0 0
  %1505 = vmatpush1.bf16.msra.mxu0 0
  %1506 = vmatprep.subr.bf16.mxu0 0
  %1507 = vmatpush1.bf16.msra.mxu0 0
  %1508 = vmatprep.subr.bf16.mxu0 0
  %1509 = vmatpush1.bf16.msra.mxu0 0
  %1510 = vmatprep.subr.bf16.mxu0 0
  %1511 = vmatpush1.bf16.msra.mxu0 0
  %1512 = vmatprep.subr.bf16.mxu0 0
  %1513 = vmatpush1.bf16.msra.mxu0 0
  %1514 = vmatprep.mubr.bf16.mxu0 0
  %1515 = vmatmul.mubr.bf16.gmra.mrb[0].mxu0 %v1480
  %v1516 = vpop.f32.mrb[0].mxu0
  %v1517 = vadd.f32 0.0, %v1516
  %v1518 = vpop.f32.mrb[0].mxu0
  %v1519 = vpop.f32.mrb[0].mxu0
  %v1520 = vpop.f32.mrb[0].mxu0
  %1521 = vdwg.mxu0
  %v1522 = vpack.c.bf16 %v1337, %v1337
  %v1523 = vpack.c.bf16 %v1382, %v1382
  %v1524 = vpack.c.bf16 %v1427, %v1427
  %v1525 = vpack.c.bf16 %v1472, %v1472
  %v1526 = vpack.c.bf16 %v1517, %v1517
  %v1527 = vld [vmem:[%s6] sm:$0xff]
  %v1528 = vld [vmem:[%s6 + $0x8] sm:$0xff]
  %v1529 = vld [vmem:[%s6 + $0x10] sm:$0xff]
  %v1530 = vld [vmem:[%s6 + $0x18] sm:$0xff]
  %v1531 = vld [vmem:[%s6 + $0x20] sm:$0xff]
  %v1532 = vld [vmem:[%s6 + $0x28] sm:$0xff]
  %v1533 = vld [vmem:[%s6 + $0x30] sm:$0xff]
  %v1534 = vld [vmem:[%s6 + $0x38] sm:$0xff]
  %v1535 = vld [vmem:[%s6 + $0x40] sm:$0xff]
  %v1536 = vld [vmem:[%s6 + $0x48] sm:$0xff]
  %v1537 = vld [vmem:[%s6 + $0x50] sm:$0xff]
  %v1538 = vld [vmem:[%s6 + $0x58] sm:$0xff]
  %v1539 = vld [vmem:[%s6 + $0x60] sm:$0xff]
  %v1540 = vld [vmem:[%s6 + $0x68] sm:$0xff]
  %v1541 = vld [vmem:[%s6 + $0x70] sm:$0xff]
  %v1542 = vld [vmem:[%s6 + $0x78] sm:$0xff]
  %v1543 = vld [vmem:[%s6 + $0x80] sm:$0xff]
  %v1544 = vld [vmem:[%s6 + $0x88] sm:$0xff]
  %v1545 = vld [vmem:[%s6 + $0x90] sm:$0xff]
  %v1546 = vld [vmem:[%s6 + $0x98] sm:$0xff]
  %v1547 = vld [vmem:[%s6 + $0xa0] sm:$0xff]
  %v1548 = vld [vmem:[%s6 + $0xa8] sm:$0xff]
  %v1549 = vld [vmem:[%s6 + $0xb0] sm:$0xff]
  %v1550 = vld [vmem:[%s6 + $0xb8] sm:$0xff]
  %v1551 = vld [vmem:[%s6 + $0xc0] sm:$0xff]
  %v1552 = vld [vmem:[%s6 + $0xc8] sm:$0xff]
  %v1553 = vld [vmem:[%s6 + $0xd0] sm:$0xff]
  %v1554 = vld [vmem:[%s6 + $0xd8] sm:$0xff]
  %v1555 = vld [vmem:[%s6 + $0xe0] sm:$0xff]
  %v1556 = vld [vmem:[%s6 + $0xe8] sm:$0xff]
  %v1557 = vld [vmem:[%s6 + $0xf0] sm:$0xff]
  %v1558 = vld [vmem:[%s6 + $0xf8] sm:$0xff]
  %v1559 = vld [vmem:[%s6 + $0x100] sm:$0xff]
  %v1560 = vld [vmem:[%s6 + $0x108] sm:$0xff]
  %v1561 = vld [vmem:[%s6 + $0x110] sm:$0xff]
  %v1562 = vld [vmem:[%s6 + $0x118] sm:$0xff]
  %v1563 = vld [vmem:[%s6 + $0x120] sm:$0xff]
  %v1564 = vld [vmem:[%s6 + $0x128] sm:$0xff]
  %v1565 = vld [vmem:[%s6 + $0x130] sm:$0xff]
  %v1566 = vld [vmem:[%s6 + $0x138] sm:$0xff]
  %v1567 = vld [vmem:[%s6 + $0x140] sm:$0xff]
  %v1568 = vld [vmem:[%s6 + $0x148] sm:$0xff]
  %v1569 = vld [vmem:[%s6 + $0x150] sm:$0xff]
  %v1570 = vld [vmem:[%s6 + $0x158] sm:$0xff]
  %v1571 = vld [vmem:[%s6 + $0x160] sm:$0xff]
  %v1572 = vld [vmem:[%s6 + $0x168] sm:$0xff]
  %v1573 = vld [vmem:[%s6 + $0x170] sm:$0xff]
  %v1574 = vld [vmem:[%s6 + $0x178] sm:$0xff]
  %v1575 = vld [vmem:[%s6 + $0x180] sm:$0xff]
  %v1576 = vld [vmem:[%s6 + $0x188] sm:$0xff]
  %v1577 = vld [vmem:[%s6 + $0x190] sm:$0xff]
  %v1578 = vld [vmem:[%s6 + $0x198] sm:$0xff]
  %v1579 = vld [vmem:[%s6 + $0x1a0] sm:$0xff]
  %v1580 = vld [vmem:[%s6 + $0x1a8] sm:$0xff]
  %v1581 = vld [vmem:[%s6 + $0x1b0] sm:$0xff]
  %v1582 = vld [vmem:[%s6 + $0x1b8] sm:$0xff]
  %v1583 = vld [vmem:[%s6 + $0x1c0] sm:$0xff]
  %v1584 = vld [vmem:[%s6 + $0x1c8] sm:$0xff]
  %v1585 = vld [vmem:[%s6 + $0x1d0] sm:$0xff]
  %v1586 = vld [vmem:[%s6 + $0x1d8] sm:$0xff]
  %v1587 = vld [vmem:[%s6 + $0x1e0] sm:$0xff]
  %v1588 = vld [vmem:[%s6 + $0x1e8] sm:$0xff]
  %v1589 = vld [vmem:[%s6 + $0x1f0] sm:$0xff]
  %v1590 = vld [vmem:[%s6 + $0x1f8] sm:$0xff]
  %v1591 = vld [vmem:[%s6 + $0x200] sm:$0xff]
  %v1592 = vld [vmem:[%s6 + $0x208] sm:$0xff]
  %v1593 = vld [vmem:[%s6 + $0x210] sm:$0xff]
  %v1594 = vld [vmem:[%s6 + $0x218] sm:$0xff]
  %v1595 = vld [vmem:[%s6 + $0x220] sm:$0xff]
  %v1596 = vld [vmem:[%s6 + $0x228] sm:$0xff]
  %v1597 = vld [vmem:[%s6 + $0x230] sm:$0xff]
  %v1598 = vld [vmem:[%s6 + $0x238] sm:$0xff]
  %v1599 = vld [vmem:[%s6 + $0x240] sm:$0xff]
  %v1600 = vld [vmem:[%s6 + $0x248] sm:$0xff]
  %v1601 = vld [vmem:[%s6 + $0x250] sm:$0xff]
  %v1602 = vld [vmem:[%s6 + $0x258] sm:$0xff]
  %v1603 = vld [vmem:[%s6 + $0x260] sm:$0xff]
  %v1604 = vld [vmem:[%s6 + $0x268] sm:$0xff]
  %v1605 = vld [vmem:[%s6 + $0x270] sm:$0xff]
  %v1606 = vld [vmem:[%s6 + $0x278] sm:$0xff]
  %s1607 = scalar_lea.vmem %s12, 1
  %v1608 = vld [vmem:[%s1607] ss:$8 sm:$0x3]
  %v1610 = vlaneseq
  %v1611 = vshrl.u32 %v1610, 7
  %v1612 = vsub.s32 0, %v1611
  %v1613 = vrot.slane %v1608, %v1612
  %v1614 = vlaneseq
  %v1615 = vshrl.u32 %v1614, 7
  %v1616 = vsub.s32 1, %v1615
  %v1617 = vrot.slane %v1608, %v1616
  %v1700 = vunpack.c.l.b16 %v1527
  %v1701 = vunpack.c.h.b16 %v1527
  %v1702 = vunpack.c.l.b16 %v1528
  %v1703 = vunpack.c.h.b16 %v1528
  %v1704 = vunpack.c.l.b16 %v1529
  %v1705 = vunpack.c.h.b16 %v1529
  %v1706 = vunpack.c.l.b16 %v1530
  %v1707 = vunpack.c.h.b16 %v1530
  %v1708 = vunpack.c.l.b16 %v1531
  %v1709 = vunpack.c.h.b16 %v1531
  %v1710 = vunpack.c.l.b16 %v1532
  %v1711 = vunpack.c.h.b16 %v1532
  %v1712 = vunpack.c.l.b16 %v1533
  %v1713 = vunpack.c.h.b16 %v1533
  %v1714 = vunpack.c.l.b16 %v1534
  %v1715 = vunpack.c.h.b16 %v1534
  %v1716 = vunpack.c.l.b16 %v1535
  %v1717 = vunpack.c.h.b16 %v1535
  %v1718 = vunpack.c.l.b16 %v1536
  %v1719 = vunpack.c.h.b16 %v1536
  %v1720 = vunpack.c.l.b16 %v1537
  %v1721 = vunpack.c.h.b16 %v1537
  %v1722 = vunpack.c.l.b16 %v1538
  %v1723 = vunpack.c.h.b16 %v1538
  %v1724 = vunpack.c.l.b16 %v1539
  %v1725 = vunpack.c.h.b16 %v1539
  %v1726 = vunpack.c.l.b16 %v1540
  %v1727 = vunpack.c.h.b16 %v1540
  %v1728 = vunpack.c.l.b16 %v1541
  %v1729 = vunpack.c.h.b16 %v1541
  %v1730 = vunpack.c.l.b16 %v1542
  %v1731 = vunpack.c.h.b16 %v1542
  %v1732 = vunpack.c.l.b16 %v1543
  %v1733 = vunpack.c.h.b16 %v1543
  %v1734 = vunpack.c.l.b16 %v1544
  %v1735 = vunpack.c.h.b16 %v1544
  %v1736 = vunpack.c.l.b16 %v1545
  %v1737 = vunpack.c.h.b16 %v1545
  %v1738 = vunpack.c.l.b16 %v1546
  %v1739 = vunpack.c.h.b16 %v1546
  %v1740 = vunpack.c.l.b16 %v1547
  %v1741 = vunpack.c.h.b16 %v1547
  %v1742 = vunpack.c.l.b16 %v1548
  %v1743 = vunpack.c.h.b16 %v1548
  %v1744 = vunpack.c.l.b16 %v1549
  %v1745 = vunpack.c.h.b16 %v1549
  %v1746 = vunpack.c.l.b16 %v1550
  %v1747 = vunpack.c.h.b16 %v1550
  %v1748 = vunpack.c.l.b16 %v1551
  %v1749 = vunpack.c.h.b16 %v1551
  %v1750 = vunpack.c.l.b16 %v1552
  %v1751 = vunpack.c.h.b16 %v1552
  %v1752 = vunpack.c.l.b16 %v1553
  %v1753 = vunpack.c.h.b16 %v1553
  %v1754 = vunpack.c.l.b16 %v1554
  %v1755 = vunpack.c.h.b16 %v1554
  %v1756 = vunpack.c.l.b16 %v1555
  %v1757 = vunpack.c.h.b16 %v1555
  %v1758 = vunpack.c.l.b16 %v1556
  %v1759 = vunpack.c.h.b16 %v1556
  %v1760 = vunpack.c.l.b16 %v1557
  %v1761 = vunpack.c.h.b16 %v1557
  %v1762 = vunpack.c.l.b16 %v1558
  %v1763 = vunpack.c.h.b16 %v1558
  %v1764 = vunpack.c.l.b16 %v1559
  %v1765 = vunpack.c.h.b16 %v1559
  %v1766 = vunpack.c.l.b16 %v1560
  %v1767 = vunpack.c.h.b16 %v1560
  %v1768 = vunpack.c.l.b16 %v1561
  %v1769 = vunpack.c.h.b16 %v1561
  %v1770 = vunpack.c.l.b16 %v1562
  %v1771 = vunpack.c.h.b16 %v1562
  %v1772 = vunpack.c.l.b16 %v1563
  %v1773 = vunpack.c.h.b16 %v1563
  %v1774 = vunpack.c.l.b16 %v1564
  %v1775 = vunpack.c.h.b16 %v1564
  %v1776 = vunpack.c.l.b16 %v1565
  %v1777 = vunpack.c.h.b16 %v1565
  %v1778 = vunpack.c.l.b16 %v1566
  %v1779 = vunpack.c.h.b16 %v1566
  %v1780 = vunpack.c.l.b16 %v1567
  %v1781 = vunpack.c.h.b16 %v1567
  %v1782 = vunpack.c.l.b16 %v1568
  %v1783 = vunpack.c.h.b16 %v1568
  %v1784 = vunpack.c.l.b16 %v1569
  %v1785 = vunpack.c.h.b16 %v1569
  %v1786 = vunpack.c.l.b16 %v1570
  %v1787 = vunpack.c.h.b16 %v1570
  %v1788 = vunpack.c.l.b16 %v1571
  %v1789 = vunpack.c.h.b16 %v1571
  %v1790 = vunpack.c.l.b16 %v1572
  %v1791 = vunpack.c.h.b16 %v1572
  %v1792 = vunpack.c.l.b16 %v1573
  %v1793 = vunpack.c.h.b16 %v1573
  %v1794 = vunpack.c.l.b16 %v1574
  %v1795 = vunpack.c.h.b16 %v1574
  %v1796 = vunpack.c.l.b16 %v1575
  %v1797 = vunpack.c.h.b16 %v1575
  %v1798 = vunpack.c.l.b16 %v1576
  %v1799 = vunpack.c.h.b16 %v1576
  %v1800 = vunpack.c.l.b16 %v1577
  %v1801 = vunpack.c.h.b16 %v1577
  %v1802 = vunpack.c.l.b16 %v1578
  %v1803 = vunpack.c.h.b16 %v1578
  %v1804 = vunpack.c.l.b16 %v1579
  %v1805 = vunpack.c.h.b16 %v1579
  %v1806 = vunpack.c.l.b16 %v1580
  %v1807 = vunpack.c.h.b16 %v1580
  %v1808 = vunpack.c.l.b16 %v1581
  %v1809 = vunpack.c.h.b16 %v1581
  %v1810 = vunpack.c.l.b16 %v1582
  %v1811 = vunpack.c.h.b16 %v1582
  %v1812 = vunpack.c.l.b16 %v1583
  %v1813 = vunpack.c.h.b16 %v1583
  %v1814 = vunpack.c.l.b16 %v1584
  %v1815 = vunpack.c.h.b16 %v1584
  %v1816 = vunpack.c.l.b16 %v1585
  %v1817 = vunpack.c.h.b16 %v1585
  %v1818 = vunpack.c.l.b16 %v1586
  %v1819 = vunpack.c.h.b16 %v1586
  %v1820 = vunpack.c.l.b16 %v1587
  %v1821 = vunpack.c.h.b16 %v1587
  %v1822 = vunpack.c.l.b16 %v1588
  %v1823 = vunpack.c.h.b16 %v1588
  %v1824 = vunpack.c.l.b16 %v1589
  %v1825 = vunpack.c.h.b16 %v1589
  %v1826 = vunpack.c.l.b16 %v1590
  %v1827 = vunpack.c.h.b16 %v1590
  %v1828 = vunpack.c.l.b16 %v1591
  %v1829 = vunpack.c.h.b16 %v1591
  %v1830 = vunpack.c.l.b16 %v1592
  %v1831 = vunpack.c.h.b16 %v1592
  %v1832 = vunpack.c.l.b16 %v1593
  %v1833 = vunpack.c.h.b16 %v1593
  %v1834 = vunpack.c.l.b16 %v1594
  %v1835 = vunpack.c.h.b16 %v1594
  %v1836 = vunpack.c.l.b16 %v1595
  %v1837 = vunpack.c.h.b16 %v1595
  %v1838 = vunpack.c.l.b16 %v1596
  %v1839 = vunpack.c.h.b16 %v1596
  %v1840 = vunpack.c.l.b16 %v1597
  %v1841 = vunpack.c.h.b16 %v1597
  %v1842 = vunpack.c.l.b16 %v1598
  %v1843 = vunpack.c.h.b16 %v1598
  %v1844 = vunpack.c.l.b16 %v1599
  %v1845 = vunpack.c.h.b16 %v1599
  %v1846 = vunpack.c.l.b16 %v1600
  %v1847 = vunpack.c.h.b16 %v1600
  %v1848 = vunpack.c.l.b16 %v1601
  %v1849 = vunpack.c.h.b16 %v1601
  %v1850 = vunpack.c.l.b16 %v1602
  %v1851 = vunpack.c.h.b16 %v1602
  %v1852 = vunpack.c.l.b16 %v1603
  %v1853 = vunpack.c.h.b16 %v1603
  %v1854 = vunpack.c.l.b16 %v1604
  %v1855 = vunpack.c.h.b16 %v1604
  %v1856 = vunpack.c.l.b16 %v1605
  %v1857 = vunpack.c.h.b16 %v1605
  %v1858 = vunpack.c.l.b16 %v1606
  %v1859 = vunpack.c.h.b16 %v1606
  %v1860 = vpack.c.b16 %v1702, %v1700
  %v1861 = vpack.c.b16 %v1703, %v1701
  %v1862 = vpack.c.b16 %v1706, %v1704
  %v1863 = vpack.c.b16 %v1707, %v1705
  %v1864 = vpack.c.b16 %v1710, %v1708
  %v1865 = vpack.c.b16 %v1711, %v1709
  %v1866 = vpack.c.b16 %v1714, %v1712
  %v1867 = vpack.c.b16 %v1715, %v1713
  %v1868 = vpack.c.b16 %v1718, %v1716
  %v1869 = vpack.c.b16 %v1719, %v1717
  %v1870 = vpack.c.b16 %v1722, %v1720
  %v1871 = vpack.c.b16 %v1723, %v1721
  %v1872 = vpack.c.b16 %v1726, %v1724
  %v1873 = vpack.c.b16 %v1727, %v1725
  %v1874 = vpack.c.b16 %v1730, %v1728
  %v1875 = vpack.c.b16 %v1731, %v1729
  %v1876 = vpack.c.b16 %v1734, %v1732
  %v1877 = vpack.c.b16 %v1735, %v1733
  %v1878 = vpack.c.b16 %v1738, %v1736
  %v1879 = vpack.c.b16 %v1739, %v1737
  %v1880 = vpack.c.b16 %v1742, %v1740
  %v1881 = vpack.c.b16 %v1743, %v1741
  %v1882 = vpack.c.b16 %v1746, %v1744
  %v1883 = vpack.c.b16 %v1747, %v1745
  %v1884 = vpack.c.b16 %v1750, %v1748
  %v1885 = vpack.c.b16 %v1751, %v1749
  %v1886 = vpack.c.b16 %v1754, %v1752
  %v1887 = vpack.c.b16 %v1755, %v1753
  %v1888 = vpack.c.b16 %v1758, %v1756
  %v1889 = vpack.c.b16 %v1759, %v1757
  %v1890 = vpack.c.b16 %v1762, %v1760
  %v1891 = vpack.c.b16 %v1763, %v1761
  %v1892 = vpack.c.b16 %v1766, %v1764
  %v1893 = vpack.c.b16 %v1767, %v1765
  %v1894 = vpack.c.b16 %v1770, %v1768
  %v1895 = vpack.c.b16 %v1771, %v1769
  %v1896 = vpack.c.b16 %v1774, %v1772
  %v1897 = vpack.c.b16 %v1775, %v1773
  %v1898 = vpack.c.b16 %v1778, %v1776
  %v1899 = vpack.c.b16 %v1779, %v1777
  %v1900 = vpack.c.b16 %v1782, %v1780
  %v1901 = vpack.c.b16 %v1783, %v1781
  %v1902 = vpack.c.b16 %v1786, %v1784
  %v1903 = vpack.c.b16 %v1787, %v1785
  %v1904 = vpack.c.b16 %v1790, %v1788
  %v1905 = vpack.c.b16 %v1791, %v1789
  %v1906 = vpack.c.b16 %v1794, %v1792
  %v1907 = vpack.c.b16 %v1795, %v1793
  %v1908 = vpack.c.b16 %v1798, %v1796
  %v1909 = vpack.c.b16 %v1799, %v1797
  %v1910 = vpack.c.b16 %v1802, %v1800
  %v1911 = vpack.c.b16 %v1803, %v1801
  %v1912 = vpack.c.b16 %v1806, %v1804
  %v1913 = vpack.c.b16 %v1807, %v1805
  %v1914 = vpack.c.b16 %v1810, %v1808
  %v1915 = vpack.c.b16 %v1811, %v1809
  %v1916 = vpack.c.b16 %v1814, %v1812
  %v1917 = vpack.c.b16 %v1815, %v1813
  %v1918 = vpack.c.b16 %v1818, %v1816
  %v1919 = vpack.c.b16 %v1819, %v1817
  %v1920 = vpack.c.b16 %v1822, %v1820
  %v1921 = vpack.c.b16 %v1823, %v1821
  %v1922 = vpack.c.b16 %v1826, %v1824
  %v1923 = vpack.c.b16 %v1827, %v1825
  %v1924 = vpack.c.b16 %v1830, %v1828
  %v1925 = vpack.c.b16 %v1831, %v1829
  %v1926 = vpack.c.b16 %v1834, %v1832
  %v1927 = vpack.c.b16 %v1835, %v1833
  %v1928 = vpack.c.b16 %v1838, %v1836
  %v1929 = vpack.c.b16 %v1839, %v1837
  %v1930 = vpack.c.b16 %v1842, %v1840
  %v1931 = vpack.c.b16 %v1843, %v1841
  %v1932 = vpack.c.b16 %v1846, %v1844
  %v1933 = vpack.c.b16 %v1847, %v1845
  %v1934 = vpack.c.b16 %v1850, %v1848
  %v1935 = vpack.c.b16 %v1851, %v1849
  %v1936 = vpack.c.b16 %v1854, %v1852
  %v1937 = vpack.c.b16 %v1855, %v1853
  %v1938 = vpack.c.b16 %v1858, %v1856
  %v1939 = vpack.c.b16 %v1859, %v1857
  %2020 = vmatprep.subr.bf16.mxu0 %v1861
  %2021 = vmatpush1.bf16.msra.mxu0 %v1860
  %2022 = vmatprep.subr.bf16.mxu0 %v1863
  %2023 = vmatpush1.bf16.msra.mxu0 %v1862
  %2024 = vmatprep.subr.bf16.mxu0 %v1865
  %2025 = vmatpush1.bf16.msra.mxu0 %v1864
  %2026 = vmatprep.subr.bf16.mxu0 %v1867
  %2027 = vmatpush1.bf16.msra.mxu0 %v1866
  %2028 = vmatprep.subr.bf16.mxu0 %v1869
  %2029 = vmatpush1.bf16.msra.mxu0 %v1868
  %2030 = vmatprep.subr.bf16.mxu0 %v1871
  %2031 = vmatpush1.bf16.msra.mxu0 %v1870
  %2032 = vmatprep.subr.bf16.mxu0 %v1873
  %2033 = vmatpush1.bf16.msra.mxu0 %v1872
  %2034 = vmatprep.subr.bf16.mxu0 %v1875
  %2035 = vmatpush1.bf16.msra.mxu0 %v1874
  %2036 = vmatprep.subr.bf16.mxu0 %v1877
  %2037 = vmatpush1.bf16.msra.mxu0 %v1876
  %2038 = vmatprep.subr.bf16.mxu0 %v1879
  %2039 = vmatpush1.bf16.msra.mxu0 %v1878
  %2040 = vmatprep.subr.bf16.mxu0 %v1881
  %2041 = vmatpush1.bf16.msra.mxu0 %v1880
  %2042 = vmatprep.subr.bf16.mxu0 %v1883
  %2043 = vmatpush1.bf16.msra.mxu0 %v1882
  %2044 = vmatprep.subr.bf16.mxu0 %v1885
  %2045 = vmatpush1.bf16.msra.mxu0 %v1884
  %2046 = vmatprep.subr.bf16.mxu0 %v1887
  %2047 = vmatpush1.bf16.msra.mxu0 %v1886
  %2048 = vmatprep.subr.bf16.mxu0 %v1889
  %2049 = vmatpush1.bf16.msra.mxu0 %v1888
  %2050 = vmatprep.subr.bf16.mxu0 %v1891
  %2051 = vmatpush1.bf16.msra.mxu0 %v1890
  %2052 = vmatprep.mubr.bf16.mxu0 %v1523
  %2053 = vmatmul.mubr.bf16.gmra.mrb[0].mxu0 %v1522
  %v2054 = vpop.f32.mrb[0].mxu0
  %v2055 = vadd.f32 %v1613, %v2054
  %v2056 = vpop.f32.mrb[0].mxu0
  %v2057 = vadd.f32 %v1617, %v2056
  %v2058 = vpop.f32.mrb[0].mxu0
  %v2059 = vpop.f32.mrb[0].mxu0
  %2060 = vdwg.mxu0
  %2061 = vmatprep.subr.bf16.mxu0 %v1893
  %2062 = vmatpush1.bf16.msra.mxu0 %v1892
  %2063 = vmatprep.subr.bf16.mxu0 %v1895
  %2064 = vmatpush1.bf16.msra.mxu0 %v1894
  %2065 = vmatprep.subr.bf16.mxu0 %v1897
  %2066 = vmatpush1.bf16.msra.mxu0 %v1896
  %2067 = vmatprep.subr.bf16.mxu0 %v1899
  %2068 = vmatpush1.bf16.msra.mxu0 %v1898
  %2069 = vmatprep.subr.bf16.mxu0 %v1901
  %2070 = vmatpush1.bf16.msra.mxu0 %v1900
  %2071 = vmatprep.subr.bf16.mxu0 %v1903
  %2072 = vmatpush1.bf16.msra.mxu0 %v1902
  %2073 = vmatprep.subr.bf16.mxu0 %v1905
  %2074 = vmatpush1.bf16.msra.mxu0 %v1904
  %2075 = vmatprep.subr.bf16.mxu0 %v1907
  %2076 = vmatpush1.bf16.msra.mxu0 %v1906
  %2077 = vmatprep.subr.bf16.mxu0 %v1909
  %2078 = vmatpush1.bf16.msra.mxu0 %v1908
  %2079 = vmatprep.subr.bf16.mxu0 %v1911
  %2080 = vmatpush1.bf16.msra.mxu0 %v1910
  %2081 = vmatprep.subr.bf16.mxu0 %v1913
  %2082 = vmatpush1.bf16.msra.mxu0 %v1912
  %2083 = vmatprep.subr.bf16.mxu0 %v1915
  %2084 = vmatpush1.bf16.msra.mxu0 %v1914
  %2085 = vmatprep.subr.bf16.mxu0 %v1917
  %2086 = vmatpush1.bf16.msra.mxu0 %v1916
  %2087 = vmatprep.subr.bf16.mxu0 %v1919
  %2088 = vmatpush1.bf16.msra.mxu0 %v1918
  %2089 = vmatprep.subr.bf16.mxu0 %v1921
  %2090 = vmatpush1.bf16.msra.mxu0 %v1920
  %2091 = vmatprep.subr.bf16.mxu0 %v1923
  %2092 = vmatpush1.bf16.msra.mxu0 %v1922
  %2093 = vmatprep.mubr.bf16.mxu0 %v1525
  %2094 = vmatmul.mubr.bf16.gmra.mrb[0].mxu0 %v1524
  %v2095 = vpop.f32.mrb[0].mxu0
  %v2096 = vadd.f32 %v2055, %v2095
  %v2097 = vpop.f32.mrb[0].mxu0
  %v2098 = vadd.f32 %v2057, %v2097
  %v2099 = vpop.f32.mrb[0].mxu0
  %v2100 = vpop.f32.mrb[0].mxu0
  %2101 = vdwg.mxu0
  %2102 = vmatprep.subr.bf16.mxu0 %v1925
  %2103 = vmatpush1.bf16.msra.mxu0 %v1924
  %2104 = vmatprep.subr.bf16.mxu0 %v1927
  %2105 = vmatpush1.bf16.msra.mxu0 %v1926
  %2106 = vmatprep.subr.bf16.mxu0 %v1929
  %2107 = vmatpush1.bf16.msra.mxu0 %v1928
  %2108 = vmatprep.subr.bf16.mxu0 %v1931
  %2109 = vmatpush1.bf16.msra.mxu0 %v1930
  %2110 = vmatprep.subr.bf16.mxu0 %v1933
  %2111 = vmatpush1.bf16.msra.mxu0 %v1932
  %2112 = vmatprep.subr.bf16.mxu0 %v1935
  %2113 = vmatpush1.bf16.msra.mxu0 %v1934
  %2114 = vmatprep.subr.bf16.mxu0 %v1937
  %2115 = vmatpush1.bf16.msra.mxu0 %v1936
  %2116 = vmatprep.subr.bf16.mxu0 %v1939
  %2117 = vmatpush1.bf16.msra.mxu0 %v1938
  %2118 = vmatprep.subr.bf16.mxu0 0
  %2119 = vmatpush1.bf16.msra.mxu0 0
  %2120 = vmatprep.subr.bf16.mxu0 0
  %2121 = vmatpush1.bf16.msra.mxu0 0
  %2122 = vmatprep.subr.bf16.mxu0 0
  %2123 = vmatpush1.bf16.msra.mxu0 0
  %2124 = vmatprep.subr.bf16.mxu0 0
  %2125 = vmatpush1.bf16.msra.mxu0 0
  %2126 = vmatprep.subr.bf16.mxu0 0
  %2127 = vmatpush1.bf16.msra.mxu0 0
  %2128 = vmatprep.subr.bf16.mxu0 0
  %2129 = vmatpush1.bf16.msra.mxu0 0
  %2130 = vmatprep.subr.bf16.mxu0 0
  %2131 = vmatpush1.bf16.msra.mxu0 0
  %2132 = vmatprep.subr.bf16.mxu0 0
  %2133 = vmatpush1.bf16.msra.mxu0 0
  %2134 = vmatprep.mubr.bf16.mxu0 0
  %2135 = vmatmul.mubr.bf16.gmra.mrb[0].mxu0 %v1526
  %v2136 = vpop.f32.mrb[0].mxu0
  %v2137 = vadd.f32 %v2096, %v2136
  %v2138 = vpop.f32.mrb[0].mxu0
  %v2139 = vadd.f32 %v2098, %v2138
  %v2140 = vpop.f32.mrb[0].mxu0
  %v2141 = vpop.f32.mrb[0].mxu0
  %2142 = vdwg.mxu0
  %v2143 = vmax.f32 %v2137, 0.0
  %v2144 = vmax.f32 %v2139, 0.0
  %v2145 = vpack.c.bf16 %v2143, %v2143
  %v2146 = vpack.c.bf16 %v2144, %v2144
  %v2147 = vld [vmem:[%s7] sm:$0xff]
  %v2148 = vld [vmem:[%s7 + $0x8] sm:$0xf]
  %v2149 = vld [vmem:[%s7 + $0xc] sm:$0xff]
  %v2150 = vld [vmem:[%s7 + $0x14] sm:$0xf]
  %v2151 = vld [vmem:[%s7 + $0x18] sm:$0xff]
  %v2152 = vld [vmem:[%s7 + $0x20] sm:$0xf]
  %v2153 = vld [vmem:[%s7 + $0x24] sm:$0xff]
  %v2154 = vld [vmem:[%s7 + $0x2c] sm:$0xf]
  %v2155 = vld [vmem:[%s7 + $0x30] sm:$0xff]
  %v2156 = vld [vmem:[%s7 + $0x38] sm:$0xf]
  %v2157 = vld [vmem:[%s7 + $0x3c] sm:$0xff]
  %v2158 = vld [vmem:[%s7 + $0x44] sm:$0xf]
  %v2159 = vld [vmem:[%s7 + $0x48] sm:$0xff]
  %v2160 = vld [vmem:[%s7 + $0x50] sm:$0xf]
  %v2161 = vld [vmem:[%s7 + $0x54] sm:$0xff]
  %v2162 = vld [vmem:[%s7 + $0x5c] sm:$0xf]
  %v2163 = vld [vmem:[%s7 + $0x60] sm:$0xff]
  %v2164 = vld [vmem:[%s7 + $0x68] sm:$0xf]
  %v2165 = vld [vmem:[%s7 + $0x6c] sm:$0xff]
  %v2166 = vld [vmem:[%s7 + $0x74] sm:$0xf]
  %v2167 = vld [vmem:[%s7 + $0x78] sm:$0xff]
  %v2168 = vld [vmem:[%s7 + $0x80] sm:$0xf]
  %v2169 = vld [vmem:[%s7 + $0x84] sm:$0xff]
  %v2170 = vld [vmem:[%s7 + $0x8c] sm:$0xf]
  %v2171 = vld [vmem:[%s7 + $0x90] sm:$0xff]
  %v2172 = vld [vmem:[%s7 + $0x98] sm:$0xf]
  %v2173 = vld [vmem:[%s7 + $0x9c] sm:$0xff]
  %v2174 = vld [vmem:[%s7 + $0xa4] sm:$0xf]
  %v2175 = vld [vmem:[%s7 + $0xa8] sm:$0xff]
  %v2176 = vld [vmem:[%s7 + $0xb0] sm:$0xf]
  %v2177 = vld [vmem:[%s7 + $0xb4] sm:$0xff]
  %v2178 = vld [vmem:[%s7 + $0xbc] sm:$0xf]
  %v2179 = vld [vmem:[%s7 + $0xc0] sm:$0xff]
  %v2180 = vld [vmem:[%s7 + $0xc8] sm:$0xf]
  %v2181 = vld [vmem:[%s7 + $0xcc] sm:$0xff]
  %v2182 = vld [vmem:[%s7 + $0xd4] sm:$0xf]
  %v2183 = vld [vmem:[%s7 + $0xd8] sm:$0xff]
  %v2184 = vld [vmem:[%s7 + $0xe0] sm:$0xf]
  %v2185 = vld [vmem:[%s7 + $0xe4] sm:$0xff]
  %v2186 = vld [vmem:[%s7 + $0xec] sm:$0xf]
  %v2187 = vld [vmem:[%s7 + $0xf0] sm:$0xff]
  %v2188 = vld [vmem:[%s7 + $0xf8] sm:$0xf]
  %v2189 = vld [vmem:[%s7 + $0xfc] sm:$0xff]
  %v2190 = vld [vmem:[%s7 + $0x104] sm:$0xf]
  %v2191 = vld [vmem:[%s7 + $0x108] sm:$0xff]
  %v2192 = vld [vmem:[%s7 + $0x110] sm:$0xf]
  %v2193 = vld [vmem:[%s7 + $0x114] sm:$0xff]
  %v2194 = vld [vmem:[%s7 + $0x11c] sm:$0xf]
  %v2195 = vld [vmem:[%s7 + $0x120] sm:$0xff]
  %v2196 = vld [vmem:[%s7 + $0x128] sm:$0xf]
  %v2197 = vld [vmem:[%s7 + $0x12c] sm:$0xff]
  %v2198 = vld [vmem:[%s7 + $0x134] sm:$0xf]
  %v2199 = vld [vmem:[%s7 + $0x138] sm:$0xff]
  %v2200 = vld [vmem:[%s7 + $0x140] sm:$0xf]
  %v2201 = vld [vmem:[%s7 + $0x144] sm:$0xff]
  %v2202 = vld [vmem:[%s7 + $0x14c] sm:$0xf]
  %v2203 = vld [vmem:[%s7 + $0x150] sm:$0xff]
  %v2204 = vld [vmem:[%s7 + $0x158] sm:$0xf]
  %v2205 = vld [vmem:[%s7 + $0x15c] sm:$0xff]
  %v2206 = vld [vmem:[%s7 + $0x164] sm:$0xf]
  %v2207 = vld [vmem:[%s7 + $0x168] sm:$0xff]
  %v2208 = vld [vmem:[%s7 + $0x170] sm:$0xf]
  %v2209 = vld [vmem:[%s7 + $0x174] sm:$0xff]
  %v2210 = vld [vmem:[%s7 + $0x17c] sm:$0xf]
  %v2275 = vunpack.c.l.b16 %v2147
  %v2276 = vunpack.c.h.b16 %v2147
  %v2277 = vunpack.c.l.b16 %v2148
  %v2278 = vunpack.c.l.b16 %v2149
  %v2279 = vunpack.c.h.b16 %v2149
  %v2280 = vunpack.c.l.b16 %v2150
  %v2281 = vunpack.c.l.b16 %v2151
  %v2282 = vunpack.c.h.b16 %v2151
  %v2283 = vunpack.c.l.b16 %v2152
  %v2284 = vunpack.c.l.b16 %v2153
  %v2285 = vunpack.c.h.b16 %v2153
  %v2286 = vunpack.c.l.b16 %v2154
  %v2287 = vunpack.c.l.b16 %v2155
  %v2288 = vunpack.c.h.b16 %v2155
  %v2289 = vunpack.c.l.b16 %v2156
  %v2290 = vunpack.c.l.b16 %v2157
  %v2291 = vunpack.c.h.b16 %v2157
  %v2292 = vunpack.c.l.b16 %v2158
  %v2293 = vunpack.c.l.b16 %v2159
  %v2294 = vunpack.c.h.b16 %v2159
  %v2295 = vunpack.c.l.b16 %v2160
  %v2296 = vunpack.c.l.b16 %v2161
  %v2297 = vunpack.c.h.b16 %v2161
  %v2298 = vunpack.c.l.b16 %v2162
  %v2299 = vunpack.c.l.b16 %v2163
  %v2300 = vunpack.c.h.b16 %v2163
  %v2301 = vunpack.c.l.b16 %v2164
  %v2302 = vunpack.c.l.b16 %v2165
  %v2303 = vunpack.c.h.b16 %v2165
  %v2304 = vunpack.c.l.b16 %v2166
  %v2305 = vunpack.c.l.b16 %v2167
  %v2306 = vunpack.c.h.b16 %v2167
  %v2307 = vunpack.c.l.b16 %v2168
  %v2308 = vunpack.c.l.b16 %v2169
  %v2309 = vunpack.c.h.b16 %v2169
  %v2310 = vunpack.c.l.b16 %v2170
  %v2311 = vunpack.c.l.b16 %v2171
  %v2312 = vunpack.c.h.b16 %v2171
  %v2313 = vunpack.c.l.b16 %v2172
  %v2314 = vunpack.c.l.b16 %v2173
  %v2315 = vunpack.c.h.b16 %v2173
  %v2316 = vunpack.c.l.b16 %v2174
  %v2317 = vunpack.c.l.b16 %v2175
  %v2318 = vunpack.c.h.b16 %v2175
  %v2319 = vunpack.c.l.b16 %v2176
  %v2320 = vunpack.c.l.b16 %v2177
  %v2321 = vunpack.c.h.b16 %v2177
  %v2322 = vunpack.c.l.b16 %v2178
  %v2323 = vunpack.c.l.b16 %v2179
  %v2324 = vunpack.c.h.b16 %v2179
  %v2325 = vunpack.c.l.b16 %v2180
  %v2326 = vunpack.c.l.b16 %v2181
  %v2327 = vunpack.c.h.b16 %v2181
  %v2328 = vunpack.c.l.b16 %v2182
  %v2329 = vunpack.c.l.b16 %v2183
  %v2330 = vunpack.c.h.b16 %v2183
  %v2331 = vunpack.c.l.b16 %v2184
  %v2332 = vunpack.c.l.b16 %v2185
  %v2333 = vunpack.c.h.b16 %v2185
  %v2334 = vunpack.c.l.b16 %v2186
  %v2335 = vunpack.c.l.b16 %v2187
  %v2336 = vunpack.c.h.b16 %v2187
  %v2337 = vunpack.c.l.b16 %v2188
  %v2338 = vunpack.c.l.b16 %v2189
  %v2339 = vunpack.c.h.b16 %v2189
  %v2340 = vunpack.c.l.b16 %v2190
  %v2341 = vunpack.c.l.b16 %v2191
  %v2342 = vunpack.c.h.b16 %v2191
  %v2343 = vunpack.c.l.b16 %v2192
  %v2344 = vunpack.c.l.b16 %v2193
  %v2345 = vunpack.c.h.b16 %v2193
  %v2346 = vunpack.c.l.b16 %v2194
  %v2347 = vunpack.c.l.b16 %v2195
  %v2348 = vunpack.c.h.b16 %v2195
  %v2349 = vunpack.c.l.b16 %v2196
  %v2350 = vunpack.c.l.b16 %v2197
  %v2351 = vunpack.c.h.b16 %v2197
  %v2352 = vunpack.c.l.b16 %v2198
  %v2353 = vunpack.c.l.b16 %v2199
  %v2354 = vunpack.c.h.b16 %v2199
  %v2355 = vunpack.c.l.b16 %v2200
  %v2356 = vunpack.c.l.b16 %v2201
  %v2357 = vunpack.c.h.b16 %v2201
  %v2358 = vunpack.c.l.b16 %v2202
  %v2359 = vunpack.c.l.b16 %v2203
  %v2360 = vunpack.c.h.b16 %v2203
  %v2361 = vunpack.c.l.b16 %v2204
  %v2362 = vunpack.c.l.b16 %v2205
  %v2363 = vunpack.c.h.b16 %v2205
  %v2364 = vunpack.c.l.b16 %v2206
  %v2365 = vunpack.c.l.b16 %v2207
  %v2366 = vunpack.c.h.b16 %v2207
  %v2367 = vunpack.c.l.b16 %v2208
  %v2368 = vunpack.c.l.b16 %v2209
  %v2369 = vunpack.c.h.b16 %v2209
  %v2370 = vunpack.c.l.b16 %v2210
  %v2371 = vpack.c.b16 %v2278, %v2275
  %v2372 = vpack.c.b16 %v2279, %v2276
  %v2373 = vpack.c.b16 %v2280, %v2277
  %v2374 = vpack.c.b16 %v2284, %v2281
  %v2375 = vpack.c.b16 %v2285, %v2282
  %v2376 = vpack.c.b16 %v2286, %v2283
  %v2377 = vpack.c.b16 %v2290, %v2287
  %v2378 = vpack.c.b16 %v2291, %v2288
  %v2379 = vpack.c.b16 %v2292, %v2289
  %v2380 = vpack.c.b16 %v2296, %v2293
  %v2381 = vpack.c.b16 %v2297, %v2294
  %v2382 = vpack.c.b16 %v2298, %v2295
  %v2383 = vpack.c.b16 %v2302, %v2299
  %v2384 = vpack.c.b16 %v2303, %v2300
  %v2385 = vpack.c.b16 %v2304, %v2301
  %v2386 = vpack.c.b16 %v2308, %v2305
  %v2387 = vpack.c.b16 %v2309, %v2306
  %v2388 = vpack.c.b16 %v2310, %v2307
  %v2389 = vpack.c.b16 %v2314, %v2311
  %v2390 = vpack.c.b16 %v2315, %v2312
  %v2391 = vpack.c.b16 %v2316, %v2313
  %v2392 = vpack.c.b16 %v2320, %v2317
  %v2393 = vpack.c.b16 %v2321, %v2318
  %v2394 = vpack.c.b16 %v2322, %v2319
  %v2395 = vpack.c.b16 %v2326, %v2323
  %v2396 = vpack.c.b16 %v2327, %v2324
  %v2397 = vpack.c.b16 %v2328, %v2325
  %v2398 = vpack.c.b16 %v2332, %v2329
  %v2399 = vpack.c.b16 %v2333, %v2330
  %v2400 = vpack.c.b16 %v2334, %v2331
  %v2401 = vpack.c.b16 %v2338, %v2335
  %v2402 = vpack.c.b16 %v2339, %v2336
  %v2403 = vpack.c.b16 %v2340, %v2337
  %v2404 = vpack.c.b16 %v2344, %v2341
  %v2405 = vpack.c.b16 %v2345, %v2342
  %v2406 = vpack.c.b16 %v2346, %v2343
  %v2407 = vpack.c.b16 %v2350, %v2347
  %v2408 = vpack.c.b16 %v2351, %v2348
  %v2409 = vpack.c.b16 %v2352, %v2349
  %v2410 = vpack.c.b16 %v2356, %v2353
  %v2411 = vpack.c.b16 %v2357, %v2354
  %v2412 = vpack.c.b16 %v2358, %v2355
  %v2413 = vpack.c.b16 %v2362, %v2359
  %v2414 = vpack.c.b16 %v2363, %v2360
  %v2415 = vpack.c.b16 %v2364, %v2361
  %v2416 = vpack.c.b16 %v2368, %v2365
  %v2417 = vpack.c.b16 %v2369, %v2366
  %v2418 = vpack.c.b16 %v2370, %v2367
  %2467 = vmatprep.subr.bf16.mxu0 %v2372
  %2468 = vmatpush1.bf16.msra.mxu0 %v2371
  %2469 = vmatprep.subr.bf16.mxu0 %v2375
  %2470 = vmatpush1.bf16.msra.mxu0 %v2374
  %2471 = vmatprep.subr.bf16.mxu0 %v2378
  %2472 = vmatpush1.bf16.msra.mxu0 %v2377
  %2473 = vmatprep.subr.bf16.mxu0 %v2381
  %2474 = vmatpush1.bf16.msra.mxu0 %v2380
  %2475 = vmatprep.subr.bf16.mxu0 %v2384
  %2476 = vmatpush1.bf16.msra.mxu0 %v2383
  %2477 = vmatprep.subr.bf16.mxu0 %v2387
  %2478 = vmatpush1.bf16.msra.mxu0 %v2386
  %2479 = vmatprep.subr.bf16.mxu0 %v2390
  %2480 = vmatpush1.bf16.msra.mxu0 %v2389
  %2481 = vmatprep.subr.bf16.mxu0 %v2393
  %2482 = vmatpush1.bf16.msra.mxu0 %v2392
  %2483 = vmatprep.subr.bf16.mxu0 %v2396
  %2484 = vmatpush1.bf16.msra.mxu0 %v2395
  %2485 = vmatprep.subr.bf16.mxu0 %v2399
  %2486 = vmatpush1.bf16.msra.mxu0 %v2398
  %2487 = vmatprep.subr.bf16.mxu0 %v2402
  %2488 = vmatpush1.bf16.msra.mxu0 %v2401
  %2489 = vmatprep.subr.bf16.mxu0 %v2405
  %2490 = vmatpush1.bf16.msra.mxu0 %v2404
  %2491 = vmatprep.subr.bf16.mxu0 %v2408
  %2492 = vmatpush1.bf16.msra.mxu0 %v2407
  %2493 = vmatprep.subr.bf16.mxu0 %v2411
  %2494 = vmatpush1.bf16.msra.mxu0 %v2410
  %2495 = vmatprep.subr.bf16.mxu0 %v2414
  %2496 = vmatpush1.bf16.msra.mxu0 %v2413
  %2497 = vmatprep.subr.bf16.mxu0 %v2417
  %2498 = vmatpush1.bf16.msra.mxu0 %v2416
  %2499 = vmatprep.mubr.bf16.mxu0 %v2146
  %2500 = vmatmul.mubr.bf16.gmra.mrb[0].mxu0 %v2145
  %v2501 = vpop.f32.mrb[0].mxu0
  %v2502 = vadd.f32 0.0, %v2501
  %v2503 = vpop.f32.mrb[0].mxu0
  %v2504 = vadd.f32 0.0, %v2503
  %v2505 = vpop.f32.mrb[0].mxu0
  %v2506 = vpop.f32.mrb[0].mxu0
  %2507 = vdwg.mxu0
  %2508 = vmatprep.subr.bf16.mxu0 0
  %2509 = vmatpush1.bf16.msra.mxu0 %v2373
  %2510 = vmatprep.subr.bf16.mxu0 0
  %2511 = vmatpush1.bf16.msra.mxu0 %v2376
  %2512 = vmatprep.subr.bf16.mxu0 0
  %2513 = vmatpush1.bf16.msra.mxu0 %v2379
  %2514 = vmatprep.subr.bf16.mxu0 0
  %2515 = vmatpush1.bf16.msra.mxu0 %v2382
  %2516 = vmatprep.subr.bf16.mxu0 0
  %2517 = vmatpush1.bf16.msra.mxu0 %v2385
  %2518 = vmatprep.subr.bf16.mxu0 0
  %2519 = vmatpush1.bf16.msra.mxu0 %v2388
  %2520 = vmatprep.subr.bf16.mxu0 0
  %2521 = vmatpush1.bf16.msra.mxu0 %v2391
  %2522 = vmatprep.subr.bf16.mxu0 0
  %2523 = vmatpush1.bf16.msra.mxu0 %v2394
  %2524 = vmatprep.subr.bf16.mxu0 0
  %2525 = vmatpush1.bf16.msra.mxu0 %v2397
  %2526 = vmatprep.subr.bf16.mxu0 0
  %2527 = vmatpush1.bf16.msra.mxu0 %v2400
  %2528 = vmatprep.subr.bf16.mxu0 0
  %2529 = vmatpush1.bf16.msra.mxu0 %v2403
  %2530 = vmatprep.subr.bf16.mxu0 0
  %2531 = vmatpush1.bf16.msra.mxu0 %v2406
  %2532 = vmatprep.subr.bf16.mxu0 0
  %2533 = vmatpush1.bf16.msra.mxu0 %v2409
  %2534 = vmatprep.subr.bf16.mxu0 0
  %2535 = vmatpush1.bf16.msra.mxu0 %v2412
  %2536 = vmatprep.subr.bf16.mxu0 0
  %2537 = vmatpush1.bf16.msra.mxu0 %v2415
  %2538 = vmatprep.subr.bf16.mxu0 0
  %2539 = vmatpush1.bf16.msra.mxu0 %v2418
  %2540 = vmatprep.mubr.bf16.mxu0 %v2146
  %2541 = vmatmul.mubr.bf16.gmra.mrb[0].mxu0 %v2145
  %v2542 = vpop.f32.mrb[0].mxu0
  %v2543 = vadd.f32 0.0, %v2542
  %v2544 = vpop.f32.mrb[0].mxu0
  %v2545 = vpop.f32.mrb[0].mxu0
  %v2546 = vpop.f32.mrb[0].mxu0
  %2547 = vdwg.mxu0
  %v2548 = vmax.f32 %v2502, %v2504
  %v2549 = vmax.f32 %v2548, %v2543
  %v2550 = vpack.c.bf16 %v2549, %v2549
  %v2551 = vld [vmem:[%s8] sm:$0xf]
  %v2552 = vld [vmem:[%s8 + $0x4] sm:$0xf]
  %v2553 = vld [vmem:[%s8 + $0x8] sm:$0xf]
  %v2557 = vunpack.c.l.b16 %v2551
  %v2558 = vunpack.c.l.b16 %v2552
  %v2559 = vunpack.c.l.b16 %v2553
  %v2560 = vpack.c.b16 %v2558, %v2557
  %v2561 = vpack.c.b16 %v2559, %v2559
  %vm2562 = vcmask 64512
  %v2564 = vsel %vm2562, %v2560, 0
  %v2567 = vsel %vm2562, %v2561, 0
  %vm2569 = vcmask 1043456
  %v2571 = vsel %vm2569, %v2550, 0
  %2573 = vmatprep.subr.bf16.mxu0 0
  %2574 = vmatpush1.bf16.msra.mxu0 %v2571
  %2575 = vmatprep.subr.bf16.mxu0 0
  %2576 = vmatpush1.bf16.msra.mxu0 0
  %2577 = vmatprep.subr.bf16.mxu0 0
  %2578 = vmatpush1.bf16.msra.mxu0 0
  %2579 = vmatprep.subr.bf16.mxu0 0
  %2580 = vmatpush1.bf16.msra.mxu0 0
  %2581 = vmatprep.subr.bf16.mxu0 0
  %2582 = vmatpush1.bf16.msra.mxu0 0
  %2583 = vmatprep.subr.bf16.mxu0 0
  %2584 = vmatpush1.bf16.msra.mxu0 0
  %2585 = vmatprep.subr.bf16.mxu0 0
  %2586 = vmatpush1.bf16.msra.mxu0 0
  %2587 = vmatprep.subr.bf16.mxu0 0
  %2588 = vmatpush1.bf16.msra.mxu0 0
  %2589 = vmatprep.subr.bf16.mxu0 0
  %2590 = vmatpush1.bf16.msra.mxu0 0
  %2591 = vmatprep.subr.bf16.mxu0 0
  %2592 = vmatpush1.bf16.msra.mxu0 0
  %2593 = vmatprep.subr.bf16.mxu0 0
  %2594 = vmatpush1.bf16.msra.mxu0 0
  %2595 = vmatprep.subr.bf16.mxu0 0
  %2596 = vmatpush1.bf16.msra.mxu0 0
  %2597 = vmatprep.subr.bf16.mxu0 0
  %2598 = vmatpush1.bf16.msra.mxu0 0
  %2599 = vmatprep.subr.bf16.mxu0 0
  %2600 = vmatpush1.bf16.msra.mxu0 0
  %2601 = vmatprep.subr.bf16.mxu0 0
  %2602 = vmatpush1.bf16.msra.mxu0 0
  %2603 = vmatprep.subr.bf16.mxu0 0
  %2604 = vmatpush1.bf16.msra.mxu0 0
  %2605 = vmatprep.mubr.bf16.mxu0 0
  %2606 = vmatmul.mubr.bf16.gmra.mrb[0].mxu0 %v2564
  %v2607 = vpop.f32.mrb[0].mxu0
  %v2608 = vadd.f32 0.0, %v2607
  %v2609 = vpop.f32.mrb[0].mxu0
  %v2610 = vpop.f32.mrb[0].mxu0
  %v2611 = vadd.f32 0.0, %v2610
  %v2612 = vpop.f32.mrb[0].mxu0
  %2613 = vmatprep.mubr.bf16.mxu0 0
  %2614 = vmatmul.mubr.bf16.gmra.mrb[0].mxu0 %v2567
  %v2615 = vpop.f32.mrb[0].mxu0
  %v2616 = vadd.f32 0.0, %v2615
  %v2617 = vpop.f32.mrb[0].mxu0
  %v2618 = vpop.f32.mrb[0].mxu0
  %v2619 = vpop.f32.mrb[0].mxu0
  %2620 = vdwg.mxu0
  %v2621 = vmax.f32 %v2608, %v2611
  %v2622 = vmax.f32 %v2621, %v2616
  %v2623 = vpack.c.bf16 %v2622, %v2622
  %v2624 = vld [vmem:[%s9] sm:$0xf]
  %v2625 = vld [vmem:[%s9 + $0x4] sm:$0xf]
  %v2626 = vld [vmem:[%s9 + $0x8] sm:$0xf]
  %v2627 = vld [vmem:[%s9 + $0xc] sm:$0xf]
  %v2628 = vld [vmem:[%s9 + $0x10] sm:$0xf]
  %v2629 = vld [vmem:[%s9 + $0x14] sm:$0xf]
  %v2630 = vld [vmem:[%s9 + $0x18] sm:$0xf]
  %v2631 = vld [vmem:[%s9 + $0x1c] sm:$0xf]
  %v2632 = vld [vmem:[%s9 + $0x20] sm:$0xf]
  %v2633 = vld [vmem:[%s9 + $0x24] sm:$0xf]
  %v2634 = vld [vmem:[%s9 + $0x28] sm:$0xf]
  %v2635 = vld [vmem:[%s9 + $0x2c] sm:$0xf]
  %v2636 = vld [vmem:[%s9 + $0x30] sm:$0xf]
  %v2637 = vld [vmem:[%s9 + $0x34] sm:$0xf]
  %v2638 = vld [vmem:[%s9 + $0x38] sm:$0xf]
  %v2639 = vld [vmem:[%s9 + $0x3c] sm:$0xf]
  %v2640 = vld [vmem:[%s12 + $0x2] ss:$0 sm:$0xff]
  %v2657 = vunpack.c.l.b16 %v2624
  %v2658 = vunpack.c.l.b16 %v2625
  %v2659 = vunpack.c.l.b16 %v2626
  %v2660 = vunpack.c.l.b16 %v2627
  %v2661 = vunpack.c.l.b16 %v2628
  %v2662 = vunpack.c.l.b16 %v2629
  %v2663 = vunpack.c.l.b16 %v2630
  %v2664 = vunpack.c.l.b16 %v2631
  %v2665 = vunpack.c.l.b16 %v2632
  %v2666 = vunpack.c.l.b16 %v2633
  %v2667 = vunpack.c.l.b16 %v2634
  %v2668 = vunpack.c.l.b16 %v2635
  %v2669 = vunpack.c.l.b16 %v2636
  %v2670 = vunpack.c.l.b16 %v2637
  %v2671 = vunpack.c.l.b16 %v2638
  %v2672 = vunpack.c.l.b16 %v2639
  %v2673 = vpack.c.b16 %v2658, %v2657
  %v2674 = vpack.c.b16 %v2660, %v2659
  %v2675 = vpack.c.b16 %v2662, %v2661
  %v2676 = vpack.c.b16 %v2664, %v2663
  %v2677 = vpack.c.b16 %v2666, %v2665
  %v2678 = vpack.c.b16 %v2668, %v2667
  %v2679 = vpack.c.b16 %v2670, %v2669
  %v2680 = vpack.c.b16 %v2672, %v2671
  %2689 = vmatprep.subr.bf16.mxu0 0
  %2690 = vmatpush1.bf16.msra.mxu0 %v2673
  %2691 = vmatprep.subr.bf16.mxu0 0
  %2692 = vmatpush1.bf16.msra.mxu0 %v2674
  %2693 = vmatprep.subr.bf16.mxu0 0
  %2694 = vmatpush1.bf16.msra.mxu0 %v2675
  %2695 = vmatprep.subr.bf16.mxu0 0
  %2696 = vmatpush1.bf16.msra.mxu0 %v2676
  %2697 = vmatprep.subr.bf16.mxu0 0
  %2698 = vmatpush1.bf16.msra.mxu0 %v2677
  %2699 = vmatprep.subr.bf16.mxu0 0
  %2700 = vmatpush1.bf16.msra.mxu0 %v2678
  %2701 = vmatprep.subr.bf16.mxu0 0
  %2702 = vmatpush1.bf16.msra.mxu0 %v2679
  %2703 = vmatprep.subr.bf16.mxu0 0
  %2704 = vmatpush1.bf16.msra.mxu0 %v2680
  %2705 = vmatprep.subr.bf16.mxu0 0
  %2706 = vmatpush1.bf16.msra.mxu0 0
  %2707 = vmatprep.subr.bf16.mxu0 0
  %2708 = vmatpush1.bf16.msra.mxu0 0
  %2709 = vmatprep.subr.bf16.mxu0 0
  %2710 = vmatpush1.bf16.msra.mxu0 0
  %2711 = vmatprep.subr.bf16.mxu0 0
  %2712 = vmatpush1.bf16.msra.mxu0 0
  %2713 = vmatprep.subr.bf16.mxu0 0
  %2714 = vmatpush1.bf16.msra.mxu0 0
  %2715 = vmatprep.subr.bf16.mxu0 0
  %2716 = vmatpush1.bf16.msra.mxu0 0
  %2717 = vmatprep.subr.bf16.mxu0 0
  %2718 = vmatpush1.bf16.msra.mxu0 0
  %2719 = vmatprep.subr.bf16.mxu0 0
  %2720 = vmatpush1.bf16.msra.mxu0 0
  %2721 = vmatprep.mubr.bf16.mxu0 0
  %2722 = vmatmul.mubr.bf16.gmra.mrb[0].mxu0 %v2623
  %v2723 = vpop.f32.mrb[0].mxu0
  %v2724 = vadd.f32 %v2640, %v2723
  %v2725 = vpop.f32.mrb[0].mxu0
  %v2726 = vpop.f32.mrb[0].mxu0
  %v2727 = vpop.f32.mrb[0].mxu0
  %2728 = vdwg.mxu0
  %v2729 = vmax.f32 %v2724, 0.0
  %v2730 = vpack.c.bf16 %v2729, %v2729
  %v2731 = vld [vmem:[%s1] sm:$0xf]
  %v2732 = vld [vmem:[%s9 + $0x40] sm:$0xf]
  %v2733 = vld [vmem:[%s9 + $0x44] sm:$0xf]
  %v2734 = vld [vmem:[%s9 + $0x48] sm:$0xf]
  %v2735 = vld [vmem:[%s9 + $0x4c] sm:$0xf]
  %v2736 = vld [vmem:[%s9 + $0x50] sm:$0xf]
  %v2737 = vld [vmem:[%s9 + $0x54] sm:$0xf]
  %v2738 = vld [vmem:[%s9 + $0x58] sm:$0xf]
  %v2739 = vld [vmem:[%s9 + $0x5c] sm:$0xf]
  %v2740 = vld [vmem:[%s9 + $0x60] sm:$0xf]
  %v2741 = vld [vmem:[%s9 + $0x64] sm:$0xf]
  %v2742 = vld [vmem:[%s9 + $0x68] sm:$0xf]
  %v2743 = vld [vmem:[%s9 + $0x6c] sm:$0xf]
  %v2744 = vld [vmem:[%s9 + $0x70] sm:$0xf]
  %v2745 = vld [vmem:[%s9 + $0x74] sm:$0xf]
  %v2746 = vld [vmem:[%s9 + $0x78] sm:$0xf]
  %v2747 = vld [vmem:[%s9 + $0x7c] sm:$0xf]
  %v2748 = vld [vmem:[%s12 + $0x3] ss:$0 sm:$0xff]
  %v2765 = vunpack.c.l.b16 %v2732
  %v2766 = vunpack.c.l.b16 %v2733
  %v2767 = vunpack.c.l.b16 %v2734
  %v2768 = vunpack.c.l.b16 %v2735
  %v2769 = vunpack.c.l.b16 %v2736
  %v2770 = vunpack.c.l.b16 %v2737
  %v2771 = vunpack.c.l.b16 %v2738
  %v2772 = vunpack.c.l.b16 %v2739
  %v2773 = vunpack.c.l.b16 %v2740
  %v2774 = vunpack.c.l.b16 %v2741
  %v2775 = vunpack.c.l.b16 %v2742
  %v2776 = vunpack.c.l.b16 %v2743
  %v2777 = vunpack.c.l.b16 %v2744
  %v2778 = vunpack.c.l.b16 %v2745
  %v2779 = vunpack.c.l.b16 %v2746
  %v2780 = vunpack.c.l.b16 %v2747
  %v2781 = vpack.c.b16 %v2766, %v2765
  %v2782 = vpack.c.b16 %v2768, %v2767
  %v2783 = vpack.c.b16 %v2770, %v2769
  %v2784 = vpack.c.b16 %v2772, %v2771
  %v2785 = vpack.c.b16 %v2774, %v2773
  %v2786 = vpack.c.b16 %v2776, %v2775
  %v2787 = vpack.c.b16 %v2778, %v2777
  %v2788 = vpack.c.b16 %v2780, %v2779
  %2797 = vmatprep.subr.bf16.mxu0 0
  %2798 = vmatpush1.bf16.msra.mxu0 %v2781
  %2799 = vmatprep.subr.bf16.mxu0 0
  %2800 = vmatpush1.bf16.msra.mxu0 %v2782
  %2801 = vmatprep.subr.bf16.mxu0 0
  %2802 = vmatpush1.bf16.msra.mxu0 %v2783
  %2803 = vmatprep.subr.bf16.mxu0 0
  %2804 = vmatpush1.bf16.msra.mxu0 %v2784
  %2805 = vmatprep.subr.bf16.mxu0 0
  %2806 = vmatpush1.bf16.msra.mxu0 %v2785
  %2807 = vmatprep.subr.bf16.mxu0 0
  %2808 = vmatpush1.bf16.msra.mxu0 %v2786
  %2809 = vmatprep.subr.bf16.mxu0 0
  %2810 = vmatpush1.bf16.msra.mxu0 %v2787
  %2811 = vmatprep.subr.bf16.mxu0 0
  %2812 = vmatpush1.bf16.msra.mxu0 %v2788
  %2813 = vmatprep.subr.bf16.mxu0 0
  %2814 = vmatpush1.bf16.msra.mxu0 0
  %2815 = vmatprep.subr.bf16.mxu0 0
  %2816 = vmatpush1.bf16.msra.mxu0 0
  %2817 = vmatprep.subr.bf16.mxu0 0
  %2818 = vmatpush1.bf16.msra.mxu0 0
  %2819 = vmatprep.subr.bf16.mxu0 0
  %2820 = vmatpush1.bf16.msra.mxu0 0
  %2821 = vmatprep.subr.bf16.mxu0 0
  %2822 = vmatpush1.bf16.msra.mxu0 0
  %2823 = vmatprep.subr.bf16.mxu0 0
  %2824 = vmatpush1.bf16.msra.mxu0 0
  %2825 = vmatprep.subr.bf16.mxu0 0
  %2826 = vmatpush1.bf16.msra.mxu0 0
  %2827 = vmatprep.subr.bf16.mxu0 0
  %2828 = vmatpush1.bf16.msra.mxu0 0
  %2829 = vmatprep.mubr.bf16.mxu0 0
  %2830 = vmatmul.mubr.bf16.gmra.mrb[0].mxu0 %v2731
  %v2831 = vpop.f32.mrb[0].mxu0
  %v2832 = vadd.f32 %v2748, %v2831
  %v2833 = vpop.f32.mrb[0].mxu0
  %v2834 = vpop.f32.mrb[0].mxu0
  %v2835 = vpop.f32.mrb[0].mxu0
  %2836 = vdwg.mxu0
  %v2837 = vmax.f32 %v2832, 0.0
  %v2838 = vpack.c.bf16 %v2837, %v2837
  %v2839 = vld [vmem:[%s10] sm:$0xff]
  %v2840 = vld [vmem:[%s10 + $0x8] sm:$0xff]
  %v2841 = vld [vmem:[%s10 + $0x10] sm:$0xff]
  %v2842 = vld [vmem:[%s10 + $0x18] sm:$0xff]
  %v2843 = vld [vmem:[%s10 + $0x20] sm:$0xff]
  %v2844 = vld [vmem:[%s10 + $0x28] sm:$0xff]
  %v2845 = vld [vmem:[%s10 + $0x30] sm:$0xff]
  %v2846 = vld [vmem:[%s10 + $0x38] sm:$0xff]
  %v2847 = vld [vmem:[%s10 + $0x40] sm:$0xff]
  %v2848 = vld [vmem:[%s10 + $0x48] sm:$0xff]
  %v2849 = vld [vmem:[%s10 + $0x50] sm:$0xff]
  %v2850 = vld [vmem:[%s10 + $0x58] sm:$0xff]
  %v2851 = vld [vmem:[%s10 + $0x60] sm:$0xff]
  %v2852 = vld [vmem:[%s10 + $0x68] sm:$0xff]
  %v2853 = vld [vmem:[%s10 + $0x70] sm:$0xff]
  %v2854 = vld [vmem:[%s10 + $0x78] sm:$0xff]
  %v2855 = vld [vmem:[%s10 + $0x80] sm:$0xff]
  %v2856 = vld [vmem:[%s10 + $0x88] sm:$0xff]
  %v2857 = vld [vmem:[%s10 + $0x90] sm:$0xff]
  %v2858 = vld [vmem:[%s10 + $0x98] sm:$0xff]
  %v2859 = vld [vmem:[%s10 + $0xa0] sm:$0xff]
  %v2860 = vld [vmem:[%s10 + $0xa8] sm:$0xff]
  %v2861 = vld [vmem:[%s10 + $0xb0] sm:$0xff]
  %v2862 = vld [vmem:[%s10 + $0xb8] sm:$0xff]
  %v2863 = vld [vmem:[%s10 + $0xc0] sm:$0xff]
  %v2864 = vld [vmem:[%s10 + $0xc8] sm:$0xff]
  %v2865 = vld [vmem:[%s10 + $0xd0] sm:$0xff]
  %v2866 = vld [vmem:[%s10 + $0xd8] sm:$0xff]
  %v2867 = vld [vmem:[%s10 + $0xe0] sm:$0xff]
  %v2868 = vld [vmem:[%s10 + $0xe8] sm:$0xff]
  %v2869 = vld [vmem:[%s10 + $0xf0] sm:$0xff]
  %v2870 = vld [vmem:[%s10 + $0xf8] sm:$0xff]
  %v2887 = vunpack.c.l.b16 %v2855
  %v2888 = vunpack.c.h.b16 %v2855
  %v2889 = vunpack.c.l.b16 %v2856
  %v2890 = vunpack.c.h.b16 %v2856
  %v2891 = vunpack.c.l.b16 %v2857
  %v2892 = vunpack.c.h.b16 %v2857
  %v2893 = vunpack.c.l.b16 %v2858
  %v2894 = vunpack.c.h.b16 %v2858
  %v2895 = vunpack.c.l.b16 %v2859
  %v2896 = vunpack.c.h.b16 %v2859
  %v2897 = vunpack.c.l.b16 %v2860
  %v2898 = vunpack.c.h.b16 %v2860
  %v2899 = vunpack.c.l.b16 %v2861
  %v2900 = vunpack.c.h.b16 %v2861
  %v2901 = vunpack.c.l.b16 %v2862
  %v2902 = vunpack.c.h.b16 %v2862
  %v2903 = vunpack.c.l.b16 %v2863
  %v2904 = vunpack.c.h.b16 %v2863
  %v2905 = vunpack.c.l.b16 %v2864
  %v2906 = vunpack.c.h.b16 %v2864
  %v2907 = vunpack.c.l.b16 %v2865
  %v2908 = vunpack.c.h.b16 %v2865
  %v2909 = vunpack.c.l.b16 %v2866
  %v2910 = vunpack.c.h.b16 %v2866
  %v2911 = vunpack.c.l.b16 %v2867
  %v2912 = vunpack.c.h.b16 %v2867
  %v2913 = vunpack.c.l.b16 %v2868
  %v2914 = vunpack.c.h.b16 %v2868
  %v2915 = vunpack.c.l.b16 %v2869
  %v2916 = vunpack.c.h.b16 %v2869
  %v2917 = vunpack.c.l.b16 %v2870
  %v2918 = vunpack.c.h.b16 %v2870
  %v2919 = vpack.c.b16 %v2889, %v2887
  %v2920 = vpack.c.b16 %v2890, %v2888
  %v2921 = vpack.c.b16 %v2893, %v2891
  %v2922 = vpack.c.b16 %v2894, %v2892
  %v2923 = vpack.c.b16 %v2897, %v2895
  %v2924 = vpack.c.b16 %v2898, %v2896
  %v2925 = vpack.c.b16 %v2901, %v2899
  %v2926 = vpack.c.b16 %v2902, %v2900
  %v2927 = vpack.c.b16 %v2905, %v2903
  %v2928 = vpack.c.b16 %v2906, %v2904
  %v2929 = vpack.c.b16 %v2909, %v2907
  %v2930 = vpack.c.b16 %v2910, %v2908
  %v2931 = vpack.c.b16 %v2913, %v2911
  %v2932 = vpack.c.b16 %v2914, %v2912
  %v2933 = vpack.c.b16 %v2917, %v2915
  %v2934 = vpack.c.b16 %v2918, %v2916
  %2951 = vmatprep.subr.bf16.mxu0 %v2920
  %2952 = vmatpush1.bf16.msra.mxu0 %v2919
  %2953 = vmatprep.subr.bf16.mxu0 %v2922
  %2954 = vmatpush1.bf16.msra.mxu0 %v2921
  %2955 = vmatprep.subr.bf16.mxu0 %v2924
  %2956 = vmatpush1.bf16.msra.mxu0 %v2923
  %2957 = vmatprep.subr.bf16.mxu0 %v2926
  %2958 = vmatpush1.bf16.msra.mxu0 %v2925
  %2959 = vmatprep.subr.bf16.mxu0 %v2928
  %2960 = vmatpush1.bf16.msra.mxu0 %v2927
  %2961 = vmatprep.subr.bf16.mxu0 %v2930
  %2962 = vmatpush1.bf16.msra.mxu0 %v2929
  %2963 = vmatprep.subr.bf16.mxu0 %v2932
  %2964 = vmatpush1.bf16.msra.mxu0 %v2931
  %2965 = vmatprep.subr.bf16.mxu0 %v2934
  %2966 = vmatpush1.bf16.msra.mxu0 %v2933
  %2967 = vmatprep.subr.bf16.mxu0 0
  %2968 = vmatpush1.bf16.msra.mxu0 0
  %2969 = vmatprep.subr.bf16.mxu0 0
  %2970 = vmatpush1.bf16.msra.mxu0 0
  %2971 = vmatprep.subr.bf16.mxu0 0
  %2972 = vmatpush1.bf16.msra.mxu0 0
  %2973 = vmatprep.subr.bf16.mxu0 0
  %2974 = vmatpush1.bf16.msra.mxu0 0
  %2975 = vmatprep.subr.bf16.mxu0 0
  %2976 = vmatpush1.bf16.msra.mxu0 0
  %2977 = vmatprep.subr.bf16.mxu0 0
  %2978 = vmatpush1.bf16.msra.mxu0 0
  %2979 = vmatprep.subr.bf16.mxu0 0
  %2980 = vmatpush1.bf16.msra.mxu0 0
  %2981 = vmatprep.subr.bf16.mxu0 0
  %2982 = vmatpush1.bf16.msra.mxu0 0
  %2983 = vmatprep.mubr.bf16.mxu0 0
  %2984 = vmatmul.mubr.bf16.gmra.mrb[0].mxu0 %v2838
  %v2985 = vpop.f32.mrb[0].mxu0
  %v2986 = vadd.f32 0.0, %v2985
  %v2987 = vpop.f32.mrb[0].mxu0
  %v2988 = vadd.f32 0.0, %v2987
  %v2989 = vpop.f32.mrb[0].mxu0
  %v2990 = vpop.f32.mrb[0].mxu0
  %2991 = vdwg.mxu0
  %v3008 = vunpack.c.l.b16 %v2839
  %v3009 = vunpack.c.h.b16 %v2839
  %v3010 = vunpack.c.l.b16 %v2840
  %v3011 = vunpack.c.h.b16 %v2840
  %v3012 = vunpack.c.l.b16 %v2841
  %v3013 = vunpack.c.h.b16 %v2841
  %v3014 = vunpack.c.l.b16 %v2842
  %v3015 = vunpack.c.h.b16 %v2842
  %v3016 = vunpack.c.l.b16 %v2843
  %v3017 = vunpack.c.h.b16 %v2843
  %v3018 = vunpack.c.l.b16 %v2844
  %v3019 = vunpack.c.h.b16 %v2844
  %v3020 = vunpack.c.l.b16 %v2845
  %v3021 = vunpack.c.h.b16 %v2845
  %v3022 = vunpack.c.l.b16 %v2846
  %v3023 = vunpack.c.h.b16 %v2846
  %v3024 = vunpack.c.l.b16 %v2847
  %v3025 = vunpack.c.h.b16 %v2847
  %v3026 = vunpack.c.l.b16 %v2848
  %v3027 = vunpack.c.h.b16 %v2848
  %v3028 = vunpack.c.l.b16 %v2849
  %v3029 = vunpack.c.h.b16 %v2849
  %v3030 = vunpack.c.l.b16 %v2850
  %v3031 = vunpack.c.h.b16 %v2850
  %v3032 = vunpack.c.l.b16 %v2851
  %v3033 = vunpack.c.h.b16 %v2851
  %v3034 = vunpack.c.l.b16 %v2852
  %v3035 = vunpack.c.h.b16 %v2852
  %v3036 = vunpack.c.l.b16 %v2853
  %v3037 = vunpack.c.h.b16 %v2853
  %v3038 = vunpack.c.l.b16 %v2854
  %v3039 = vunpack.c.h.b16 %v2854
  %v3040 = vpack.c.b16 %v3010, %v3008
  %v3041 = vpack.c.b16 %v3011, %v3009
  %v3042 = vpack.c.b16 %v3014, %v3012
  %v3043 = vpack.c.b16 %v3015, %v3013
  %v3044 = vpack.c.b16 %v3018, %v3016
  %v3045 = vpack.c.b16 %v3019, %v3017
  %v3046 = vpack.c.b16 %v3022, %v3020
  %v3047 = vpack.c.b16 %v3023, %v3021
  %v3048 = vpack.c.b16 %v3026, %v3024
  %v3049 = vpack.c.b16 %v3027, %v3025
  %v3050 = vpack.c.b16 %v3030, %v3028
  %v3051 = vpack.c.b16 %v3031, %v3029
  %v3052 = vpack.c.b16 %v3034, %v3032
  %v3053 = vpack.c.b16 %v3035, %v3033
  %v3054 = vpack.c.b16 %v3038, %v3036
  %v3055 = vpack.c.b16 %v3039, %v3037
  %3072 = vmatprep.subr.bf16.mxu0 %v3041
  %3073 = vmatpush1.bf16.msra.mxu0 %v3040
  %3074 = vmatprep.subr.bf16.mxu0 %v3043
  %3075 = vmatpush1.bf16.msra.mxu0 %v3042
  %3076 = vmatprep.subr.bf16.mxu0 %v3045
  %3077 = vmatpush1.bf16.msra.mxu0 %v3044
  %3078 = vmatprep.subr.bf16.mxu0 %v3047
  %3079 = vmatpush1.bf16.msra.mxu0 %v3046
  %3080 = vmatprep.subr.bf16.mxu0 %v3049
  %3081 = vmatpush1.bf16.msra.mxu0 %v3048
  %3082 = vmatprep.subr.bf16.mxu0 %v3051
  %3083 = vmatpush1.bf16.msra.mxu0 %v3050
  %3084 = vmatprep.subr.bf16.mxu0 %v3053
  %3085 = vmatpush1.bf16.msra.mxu0 %v3052
  %3086 = vmatprep.subr.bf16.mxu0 %v3055
  %3087 = vmatpush1.bf16.msra.mxu0 %v3054
  %3088 = vmatprep.subr.bf16.mxu0 0
  %3089 = vmatpush1.bf16.msra.mxu0 0
  %3090 = vmatprep.subr.bf16.mxu0 0
  %3091 = vmatpush1.bf16.msra.mxu0 0
  %3092 = vmatprep.subr.bf16.mxu0 0
  %3093 = vmatpush1.bf16.msra.mxu0 0
  %3094 = vmatprep.subr.bf16.mxu0 0
  %3095 = vmatpush1.bf16.msra.mxu0 0
  %3096 = vmatprep.subr.bf16.mxu0 0
  %3097 = vmatpush1.bf16.msra.mxu0 0
  %3098 = vmatprep.subr.bf16.mxu0 0
  %3099 = vmatpush1.bf16.msra.mxu0 0
  %3100 = vmatprep.subr.bf16.mxu0 0
  %3101 = vmatpush1.bf16.msra.mxu0 0
  %3102 = vmatprep.subr.bf16.mxu0 0
  %3103 = vmatpush1.bf16.msra.mxu0 0
  %3104 = vmatprep.mubr.bf16.mxu0 0
  %3105 = vmatmul.mubr.bf16.gmra.mrb[0].mxu0 %v2730
  %v3106 = vpop.f32.mrb[0].mxu0
  %v3107 = vadd.f32 %v2986, %v3106
  %v3108 = vpop.f32.mrb[0].mxu0
  %v3109 = vadd.f32 %v2988, %v3108
  %v3110 = vpop.f32.mrb[0].mxu0
  %v3111 = vpop.f32.mrb[0].mxu0
  %3112 = vdwg.mxu0
  %s3113 = scalar_lea.vmem %s12, 4
  %v3114 = vld [vmem:[%s3113] ss:$8 sm:$0x3]
  %v3116 = vlaneseq
  %v3117 = vshrl.u32 %v3116, 7
  %v3118 = vsub.s32 0, %v3117
  %v3119 = vrot.slane %v3114, %v3118
  %v3120 = vlaneseq
  %v3121 = vshrl.u32 %v3120, 7
  %v3122 = vsub.s32 1, %v3121
  %v3123 = vrot.slane %v3114, %v3122
  %v3126 = vadd.f32 %v3107, %v3119
  %v3127 = vadd.f32 %v3109, %v3123
  %v3128 = vmax.f32 %v3126, 0.0
  %v3129 = vmax.f32 %v3127, 0.0
  %v3130 = vpack.c.bf16 %v3128, %v3128
  %v3131 = vpack.c.bf16 %v3129, %v3129
  %v3132 = vld [vmem:[%s11] sm:$0xf]
  %v3133 = vld [vmem:[%s11 + $0x4] sm:$0xf]
  %v3134 = vld [vmem:[%s11 + $0x8] sm:$0xf]
  %v3135 = vld [vmem:[%s11 + $0xc] sm:$0xf]
  %v3136 = vld [vmem:[%s11 + $0x10] sm:$0xf]
  %v3137 = vld [vmem:[%s11 + $0x14] sm:$0xf]
  %v3138 = vld [vmem:[%s11 + $0x18] sm:$0xf]
  %v3139 = vld [vmem:[%s11 + $0x1c] sm:$0xf]
  %v3140 = vld [vmem:[%s11 + $0x20] sm:$0xf]
  %v3141 = vld [vmem:[%s11 + $0x24] sm:$0xf]
  %v3142 = vld [vmem:[%s11 + $0x28] sm:$0xf]
  %v3143 = vld [vmem:[%s11 + $0x2c] sm:$0xf]
  %v3144 = vld [vmem:[%s11 + $0x30] sm:$0xf]
  %v3145 = vld [vmem:[%s11 + $0x34] sm:$0xf]
  %v3146 = vld [vmem:[%s11 + $0x38] sm:$0xf]
  %v3147 = vld [vmem:[%s11 + $0x3c] sm:$0xf]
  %v3148 = vld [vmem:[%s11 + $0x40] sm:$0xf]
  %v3149 = vld [vmem:[%s11 + $0x44] sm:$0xf]
  %v3150 = vld [vmem:[%s11 + $0x48] sm:$0xf]
  %v3151 = vld [vmem:[%s11 + $0x4c] sm:$0xf]
  %v3152 = vld [vmem:[%s11 + $0x50] sm:$0xf]
  %v3153 = vld [vmem:[%s11 + $0x54] sm:$0xf]
  %v3154 = vld [vmem:[%s11 + $0x58] sm:$0xf]
  %v3155 = vld [vmem:[%s11 + $0x5c] sm:$0xf]
  %v3156 = vld [vmem:[%s11 + $0x60] sm:$0xf]
  %v3157 = vld [vmem:[%s11 + $0x64] sm:$0xf]
  %v3158 = vld [vmem:[%s11 + $0x68] sm:$0xf]
  %v3159 = vld [vmem:[%s11 + $0x6c] sm:$0xf]
  %v3160 = vld [vmem:[%s11 + $0x70] sm:$0xf]
  %v3161 = vld [vmem:[%s11 + $0x74] sm:$0xf]
  %v3162 = vld [vmem:[%s11 + $0x78] sm:$0xf]
  %v3163 = vld [vmem:[%s11 + $0x7c] sm:$0xf]
  %v3164 = vld [vmem:[%s12 + $0x5] ss:$0 sm:$0xff]
  %v3197 = vunpack.c.l.b16 %v3132
  %v3198 = vunpack.c.l.b16 %v3133
  %v3199 = vunpack.c.l.b16 %v3134
  %v3200 = vunpack.c.l.b16 %v3135
  %v3201 = vunpack.c.l.b16 %v3136
  %v3202 = vunpack.c.l.b16 %v3137
  %v3203 = vunpack.c.l.b16 %v3138
  %v3204 = vunpack.c.l.b16 %v3139
  %v3205 = vunpack.c.l.b16 %v3140
  %v3206 = vunpack.c.l.b16 %v3141
  %v3207 = vunpack.c.l.b16 %v3142
  %v3208 = vunpack.c.l.b16 %v3143
  %v3209 = vunpack.c.l.b16 %v3144
  %v3210 = vunpack.c.l.b16 %v3145
  %v3211 = vunpack.c.l.b16 %v3146
  %v3212 = vunpack.c.l.b16 %v3147
  %v3213 = vunpack.c.l.b16 %v3148
  %v3214 = vunpack.c.l.b16 %v3149
  %v3215 = vunpack.c.l.b16 %v3150
  %v3216 = vunpack.c.l.b16 %v3151
  %v3217 = vunpack.c.l.b16 %v3152
  %v3218 = vunpack.c.l.b16 %v3153
  %v3219 = vunpack.c.l.b16 %v3154
  %v3220 = vunpack.c.l.b16 %v3155
  %v3221 = vunpack.c.l.b16 %v3156
  %v3222 = vunpack.c.l.b16 %v3157
  %v3223 = vunpack.c.l.b16 %v3158
  %v3224 = vunpack.c.l.b16 %v3159
  %v3225 = vunpack.c.l.b16 %v3160
  %v3226 = vunpack.c.l.b16 %v3161
  %v3227 = vunpack.c.l.b16 %v3162
  %v3228 = vunpack.c.l.b16 %v3163
  %v3229 = vpack.c.b16 %v3198, %v3197
  %v3230 = vpack.c.b16 %v3200, %v3199
  %v3231 = vpack.c.b16 %v3202, %v3201
  %v3232 = vpack.c.b16 %v3204, %v3203
  %v3233 = vpack.c.b16 %v3206, %v3205
  %v3234 = vpack.c.b16 %v3208, %v3207
  %v3235 = vpack.c.b16 %v3210, %v3209
  %v3236 = vpack.c.b16 %v3212, %v3211
  %v3237 = vpack.c.b16 %v3214, %v3213
  %v3238 = vpack.c.b16 %v3216, %v3215
  %v3239 = vpack.c.b16 %v3218, %v3217
  %v3240 = vpack.c.b16 %v3220, %v3219
  %v3241 = vpack.c.b16 %v3222, %v3221
  %v3242 = vpack.c.b16 %v3224, %v3223
  %v3243 = vpack.c.b16 %v3226, %v3225
  %v3244 = vpack.c.b16 %v3228, %v3227
  %3261 = vmatprep.subr.bf16.mxu0 0
  %3262 = vmatpush1.bf16.msra.mxu0 %v3229
  %3263 = vmatprep.subr.bf16.mxu0 0
  %3264 = vmatpush1.bf16.msra.mxu0 %v3230
  %3265 = vmatprep.subr.bf16.mxu0 0
  %3266 = vmatpush1.bf16.msra.mxu0 %v3231
  %3267 = vmatprep.subr.bf16.mxu0 0
  %3268 = vmatpush1.bf16.msra.mxu0 %v3232
  %3269 = vmatprep.subr.bf16.mxu0 0
  %3270 = vmatpush1.bf16.msra.mxu0 %v3233
  %3271 = vmatprep.subr.bf16.mxu0 0
  %3272 = vmatpush1.bf16.msra.mxu0 %v3234
  %3273 = vmatprep.subr.bf16.mxu0 0
  %3274 = vmatpush1.bf16.msra.mxu0 %v3235
  %3275 = vmatprep.subr.bf16.mxu0 0
  %3276 = vmatpush1.bf16.msra.mxu0 %v3236
  %3277 = vmatprep.subr.bf16.mxu0 0
  %3278 = vmatpush1.bf16.msra.mxu0 %v3237
  %3279 = vmatprep.subr.bf16.mxu0 0
  %3280 = vmatpush1.bf16.msra.mxu0 %v3238
  %3281 = vmatprep.subr.bf16.mxu0 0
  %3282 = vmatpush1.bf16.msra.mxu0 %v3239
  %3283 = vmatprep.subr.bf16.mxu0 0
  %3284 = vmatpush1.bf16.msra.mxu0 %v3240
  %3285 = vmatprep.subr.bf16.mxu0 0
  %3286 = vmatpush1.bf16.msra.mxu0 %v3241
  %3287 = vmatprep.subr.bf16.mxu0 0
  %3288 = vmatpush1.bf16.msra.mxu0 %v3242
  %3289 = vmatprep.subr.bf16.mxu0 0
  %3290 = vmatpush1.bf16.msra.mxu0 %v3243
  %3291 = vmatprep.subr.bf16.mxu0 0
  %3292 = vmatpush1.bf16.msra.mxu0 %v3244
  %3293 = vmatprep.mubr.bf16.mxu0 %v3131
  %3294 = vmatmul.mubr.bf16.gmra.mrb[0].mxu0 %v3130
  %v3295 = vpop.f32.mrb[0].mxu0
  %v3296 = vadd.f32 %v3164, %v3295
  %v3297 = vpop.f32.mrb[0].mxu0
  %v3298 = vpop.f32.mrb[0].mxu0
  %v3299 = vpop.f32.mrb[0].mxu0
  %3300 = vdwg.mxu0
  %v3301 = vmax.f32 %v3296, 0.0
  %v3302 = vpack.c.bf16 %v3301, %v3301
  %v3303 = vld [vmem:[%s9 + $0x80] sm:$0xf]
  %v3304 = vld [vmem:[%s9 + $0x84] sm:$0xf]
  %v3305 = vld [vmem:[%s9 + $0x88] sm:$0xf]
  %v3306 = vld [vmem:[%s9 + $0x8c] sm:$0xf]
  %v3307 = vld [vmem:[%s9 + $0x90] sm:$0xf]
  %v3308 = vld [vmem:[%s9 + $0x94] sm:$0xf]
  %v3309 = vld [vmem:[%s9 + $0x98] sm:$0xf]
  %v3310 = vld [vmem:[%s9 + $0x9c] sm:$0xf]
  %v3311 = vld [vmem:[%s9 + $0xa0] sm:$0xf]
  %v3312 = vld [vmem:[%s9 + $0xa4] sm:$0xf]
  %v3313 = vld [vmem:[%s9 + $0xa8] sm:$0xf]
  %v3314 = vld [vmem:[%s9 + $0xac] sm:$0xf]
  %v3315 = vld [vmem:[%s9 + $0xb0] sm:$0xf]
  %v3316 = vld [vmem:[%s9 + $0xb4] sm:$0xf]
  %v3317 = vld [vmem:[%s9 + $0xb8] sm:$0xf]
  %v3318 = vld [vmem:[%s9 + $0xbc] sm:$0xf]
  %v3319 = vld [vmem:[%s12 + $0x6] ss:$0 sm:$0xff]
  %v3336 = vunpack.c.l.b16 %v3303
  %v3337 = vunpack.c.l.b16 %v3304
  %v3338 = vunpack.c.l.b16 %v3305
  %v3339 = vunpack.c.l.b16 %v3306
  %v3340 = vunpack.c.l.b16 %v3307
  %v3341 = vunpack.c.l.b16 %v3308
  %v3342 = vunpack.c.l.b16 %v3309
  %v3343 = vunpack.c.l.b16 %v3310
  %v3344 = vunpack.c.l.b16 %v3311
  %v3345 = vunpack.c.l.b16 %v3312
  %v3346 = vunpack.c.l.b16 %v3313
  %v3347 = vunpack.c.l.b16 %v3314
  %v3348 = vunpack.c.l.b16 %v3315
  %v3349 = vunpack.c.l.b16 %v3316
  %v3350 = vunpack.c.l.b16 %v3317
  %v3351 = vunpack.c.l.b16 %v3318
  %v3352 = vpack.c.b16 %v3337, %v3336
  %v3353 = vpack.c.b16 %v3339, %v3338
  %v3354 = vpack.c.b16 %v3341, %v3340
  %v3355 = vpack.c.b16 %v3343, %v3342
  %v3356 = vpack.c.b16 %v3345, %v3344
  %v3357 = vpack.c.b16 %v3347, %v3346
  %v3358 = vpack.c.b16 %v3349, %v3348
  %v3359 = vpack.c.b16 %v3351, %v3350
  %3368 = vmatprep.subr.bf16.mxu0 0
  %3369 = vmatpush1.bf16.msra.mxu0 %v3352
  %3370 = vmatprep.subr.bf16.mxu0 0
  %3371 = vmatpush1.bf16.msra.mxu0 %v3353
  %3372 = vmatprep.subr.bf16.mxu0 0
  %3373 = vmatpush1.bf16.msra.mxu0 %v3354
  %3374 = vmatprep.subr.bf16.mxu0 0
  %3375 = vmatpush1.bf16.msra.mxu0 %v3355
  %3376 = vmatprep.subr.bf16.mxu0 0
  %3377 = vmatpush1.bf16.msra.mxu0 %v3356
  %3378 = vmatprep.subr.bf16.mxu0 0
  %3379 = vmatpush1.bf16.msra.mxu0 %v3357
  %3380 = vmatprep.subr.bf16.mxu0 0
  %3381 = vmatpush1.bf16.msra.mxu0 %v3358
  %3382 = vmatprep.subr.bf16.mxu0 0
  %3383 = vmatpush1.bf16.msra.mxu0 %v3359
  %3384 = vmatprep.subr.bf16.mxu0 0
  %3385 = vmatpush1.bf16.msra.mxu0 0
  %3386 = vmatprep.subr.bf16.mxu0 0
  %3387 = vmatpush1.bf16.msra.mxu0 0
  %3388 = vmatprep.subr.bf16.mxu0 0
  %3389 = vmatpush1.bf16.msra.mxu0 0
  %3390 = vmatprep.subr.bf16.mxu0 0
  %3391 = vmatpush1.bf16.msra.mxu0 0
  %3392 = vmatprep.subr.bf16.mxu0 0
  %3393 = vmatpush1.bf16.msra.mxu0 0
  %3394 = vmatprep.subr.bf16.mxu0 0
  %3395 = vmatpush1.bf16.msra.mxu0 0
  %3396 = vmatprep.subr.bf16.mxu0 0
  %3397 = vmatpush1.bf16.msra.mxu0 0
  %3398 = vmatprep.subr.bf16.mxu0 0
  %3399 = vmatpush1.bf16.msra.mxu0 0
  %3400 = vmatprep.mubr.bf16.mxu0 0
  %3401 = vmatmul.mubr.bf16.gmra.mrb[0].mxu0 %v3302
  %v3402 = vpop.f32.mrb[0].mxu0
  %v3403 = vadd.f32 %v3319, %v3402
  %v3404 = vpop.f32.mrb[0].mxu0
  %v3405 = vpop.f32.mrb[0].mxu0
  %v3406 = vpop.f32.mrb[0].mxu0
  %3407 = vdwg.mxu0
  %3408 = vst [vmem:[%s13] sm:$0xff] %v3403
  // Predicated region
  $region54: #{cnn_critic_forward.1} parent=0 // pred_check
    _
  $region55: #{cnn_critic_forward.1} parent=0 // pred_check_branch
    %3410 = sbr.rel (0) target = $region57
  $region56: #{cnn_critic_forward.1} parent=0 // pred_region
    _
  $region57: #{cnn_critic_forward.1} parent=0 // pred_fallthru
    _
  // Predicated region
  $region58: #{cnn_critic_forward.1} parent=0 // pred_check
    _
  $region59: #{cnn_critic_forward.1} parent=0 // pred_check_branch
    %3412 = sbr.rel (0) target = $region61
  $region60: #{cnn_critic_forward.1} parent=0 // pred_region
    _
  $region61: #{cnn_critic_forward.1} parent=0 // pred_fallthru
    _

</llo_original>
